<compile_context>
chip_gen: v7x
topology: tpu7x:2x2x1
jax: 0.10.0
libtpu: 0.0.40
codegen_flags: <defaults>
</compile_context>

<pallas_src>
import jax
import jax.numpy as jnp
from jax.experimental import pallas as pl
from jax.experimental.pallas import tpu as pltpu

EPS = 1e-5


def _conv3x3_im2col(pad_ref, w2d, H, W, C):
    """3x3 conv as one im2col matmul.

    pad_ref: (H+2, W+2, C) bf16 VMEM ref with a zero border.
    w2d:     (9*C, Cout) bf16 weight slab.
    Returns  (H*W, Cout) f32.
    """
    taps = [pad_ref[dy:dy + H, dx:dx + W, :]
            for dy in range(3) for dx in range(3)]
    patches = jnp.concatenate(taps, axis=-1).reshape(H * W, 9 * C)   # bf16
    return jax.lax.dot_general(
        patches, w2d,
        dimension_numbers=(((1,), (0,)), ((), ())),
        preferred_element_type=jnp.float32)


def _instance_norm(y, inv_n):
    """One-pass InstanceNorm over axis 0 of a (H*W, C) f32 tensor (biased var)."""
    s = jnp.sum(y, axis=0, keepdims=True)
    ss = jnp.sum(y * y, axis=0, keepdims=True)
    mean = s * inv_n
    var = jnp.maximum(ss * inv_n - mean * mean, 0.0)
    return (y - mean) * jax.lax.rsqrt(var + EPS)


def resblock_kernel(x_ref, w1_ref, w2_ref, out_ref, pad_ref):
    _, H, W, C = x_ref.shape
    Hp, Wp = H + 2, W + 2
    inv_n = 1.0 / float(H * W)

    # Clear only the 1-px border of the persistent pad scratch (4 thin stores).
    # The (H, W) interior is fully overwritten below every step.  Done each
    # step so it stays correct if the (parallel) batch axis is sharded across
    # TensorCores.
    zrow = jnp.zeros((1, Wp, C), pad_ref.dtype)
    zcol = jnp.zeros((Hp, 1, C), pad_ref.dtype)
    pad_ref[0:1, :, :] = zrow
    pad_ref[Hp - 1:Hp, :, :] = zrow
    pad_ref[:, 0:1, :] = zcol
    pad_ref[:, Wp - 1:Wp, :] = zcol

    x = x_ref[0]                                  # (H, W, C) f32, aligned load
    x2d = x.reshape(H * W, C)                     # residual branch

    # conv1 -> InstanceNorm -> ReLU
    pad_ref[1:H + 1, 1:W + 1, :] = x.astype(pad_ref.dtype)
    h = _conv3x3_im2col(pad_ref, w1_ref[...], H, W, C)
    h = jnp.maximum(_instance_norm(h, inv_n), 0.0)

    # conv2 -> InstanceNorm -> +residual -> ReLU
    pad_ref[1:H + 1, 1:W + 1, :] = h.reshape(H, W, C).astype(pad_ref.dtype)
    h2 = _conv3x3_im2col(pad_ref, w2_ref[...], H, W, C)
    h2 = _instance_norm(h2, inv_n)

    out_ref[0] = jnp.maximum(h2 + x2d, 0.0)


def resblock_forward(x_nchw, w1_torch, w2_torch):
    """x_nchw: (N, C, H, W) f32; w*_torch: (Cout, Cin, 3, 3) f32 (PyTorch layout)."""
    N, C, H, W = x_nchw.shape
    x = jnp.transpose(x_nchw, (0, 2, 3, 1)).astype(jnp.float32)      # NHWC, no pad

    # (Cout, Cin, 3, 3) -> (3, 3, Cin, Cout) -> (9*Cin, Cout); bf16 MXU operands.
    w1 = jnp.transpose(w1_torch, (2, 3, 1, 0)).reshape(9 * C, C).astype(jnp.bfloat16)
    w2 = jnp.transpose(w2_torch, (2, 3, 1, 0)).reshape(9 * C, C).astype(jnp.bfloat16)

    # VMEM budget: double-buffered in/out blocks + resident weights + bf16 pad
    # scratch + im2col slab and f32 temporary headroom.
    est = (4 * H * W * C * 4
           + 4 * 9 * C * C * 2
           + (H + 2) * (W + 2) * C * 2
           + 2 * 9 * H * W * C * 2
           + 8 * H * W * C * 4)
    vmem_limit = int(min(64 * 1024 * 1024, max(est, 4 * 1024 * 1024)))

    out_flat = pl.pallas_call(
        resblock_kernel,
        out_shape=jax.ShapeDtypeStruct((N, H * W, C), jnp.float32),
        grid_spec=pltpu.PrefetchScalarGridSpec(
            num_scalar_prefetch=0,
            grid=(N,),
            in_specs=[
                pl.BlockSpec((1, H, W, C), lambda b: (b, 0, 0, 0)),
                pl.BlockSpec((9 * C, C), lambda b: (0, 0)),   # resident weights
                pl.BlockSpec((9 * C, C), lambda b: (0, 0)),
            ],
            out_specs=pl.BlockSpec((1, H * W, C), lambda b: (b, 0, 0)),
            scratch_shapes=[pltpu.VMEM((H + 2, W + 2, C), jnp.bfloat16)],
        ),
        compiler_params=pltpu.CompilerParams(
            dimension_semantics=("parallel",),
            vmem_limit_bytes=vmem_limit),
    )(x, w1, w2)

    out = out_flat.reshape(N, H, W, C)
    return jnp.transpose(out, (0, 3, 1, 2))                          # back to NCHW


if __name__ == "__main__":
    key = jax.random.PRNGKey(0)
    k_x, k_w1, k_w2 = jax.random.split(key, 3)

    N, C, H, W = 2, 4, 16, 16
    x = jax.random.normal(k_x, (N, C, H, W), dtype=jnp.float32)
    # deterministic synthetic conv weights, PyTorch layout (Cout, Cin, kH, kW)
    w1 = 0.1 * jax.random.normal(k_w1, (C, C, 3, 3), dtype=jnp.float32)
    w2 = 0.1 * jax.random.normal(k_w2, (C, C, 3, 3), dtype=jnp.float32)

    out = resblock_forward(x, w1, w2)
    jax.block_until_ready(out)
    assert out.shape == (N, C, H, W)
    print("KERNEL_OK")
</pallas_src>

<mosaic_0001>
module attributes {stable_mosaic.version = 11 : i64} {
  func.func @resblock_kernel(%arg0: i32, %arg1: memref<1x16x16x4xf32, #tpu.memory_space<vmem>>, %arg2: memref<36x4xbf16, #tpu.memory_space<vmem>>, %arg3: memref<36x4xbf16, #tpu.memory_space<vmem>>, %arg4: memref<1x256x4xf32, #tpu.memory_space<vmem>>, %arg5: memref<18x18x4xbf16, #tpu.memory_space<vmem>>) attributes {dimension_semantics = [#tpu.dimension_semantics<parallel>], iteration_bounds = array<i64: 2>, scalar_prefetch = 0 : i64, scratch_operands = 1 : i64, tpu.core_type = #tpu.core_type<tc>, window_params = [{transform_indices = @transform_0, window_bounds = array<i64: 1, 16, 16, 4>}, {pipeline_mode = #tpu.pipeline_mode<synchronous>, transform_indices = @transform_1, window_bounds = array<i64: 36, 4>}, {pipeline_mode = #tpu.pipeline_mode<synchronous>, transform_indices = @transform_2, window_bounds = array<i64: 36, 4>}, {transform_indices = @transform_3, window_bounds = array<i64: 1, 256, 4>}]} {
    %cst = arith.constant 0.000000e+00 : bf16
    %0 = vector.broadcast %cst : bf16 to vector<1x18x4xbf16>
    %cst_0 = arith.constant 0.000000e+00 : bf16
    %1 = vector.broadcast %cst_0 : bf16 to vector<18x1x4xbf16>
    %c0 = arith.constant 0 : index
    %c0_1 = arith.constant 0 : index
    %c0_2 = arith.constant 0 : index
    %2 = vector.load %arg5[%c0, %c0_1, %c0_2] : memref<18x18x4xbf16, #tpu.memory_space<vmem>>, vector<1x18x4xbf16>
    tpu.vector_store %arg5[%c0, %c0_1, %c0_2], %0 {strides = array<i32>} : memref<18x18x4xbf16, #tpu.memory_space<vmem>>, vector<1x18x4xbf16>,
    %c17 = arith.constant 17 : index
    %c0_3 = arith.constant 0 : index
    %c0_4 = arith.constant 0 : index
    %3 = vector.load %arg5[%c17, %c0_3, %c0_4] : memref<18x18x4xbf16, #tpu.memory_space<vmem>>, vector<1x18x4xbf16>
    tpu.vector_store %arg5[%c17, %c0_3, %c0_4], %0 {strides = array<i32>} : memref<18x18x4xbf16, #tpu.memory_space<vmem>>, vector<1x18x4xbf16>,
    %c0_5 = arith.constant 0 : index
    %c0_6 = arith.constant 0 : index
    %c0_7 = arith.constant 0 : index
    %4 = vector.load %arg5[%c0_5, %c0_6, %c0_7] : memref<18x18x4xbf16, #tpu.memory_space<vmem>>, vector<18x1x4xbf16>
    tpu.vector_store %arg5[%c0_5, %c0_6, %c0_7], %1 {strides = array<i32>} : memref<18x18x4xbf16, #tpu.memory_space<vmem>>, vector<18x1x4xbf16>,
    %c0_8 = arith.constant 0 : index
    %c17_9 = arith.constant 17 : index
    %c0_10 = arith.constant 0 : index
    %5 = vector.load %arg5[%c0_8, %c17_9, %c0_10] : memref<18x18x4xbf16, #tpu.memory_space<vmem>>, vector<18x1x4xbf16>
    tpu.vector_store %arg5[%c0_8, %c17_9, %c0_10], %1 {strides = array<i32>} : memref<18x18x4xbf16, #tpu.memory_space<vmem>>, vector<18x1x4xbf16>,
    %c0_11 = arith.constant 0 : index
    %c0_12 = arith.constant 0 : index
    %c0_13 = arith.constant 0 : index
    %c0_14 = arith.constant 0 : index
    %6 = vector.load %arg1[%c0_11, %c0_12, %c0_13, %c0_14] : memref<1x16x16x4xf32, #tpu.memory_space<vmem>>, vector<1x16x16x4xf32>
    %7 = vector.shape_cast %6 : vector<1x16x16x4xf32> to vector<16x16x4xf32>
    %8 = vector.shape_cast %7 : vector<16x16x4xf32> to vector<256x4xf32>
    %9 = arith.truncf %7 : vector<16x16x4xf32> to vector<16x16x4xbf16>
    %c1 = arith.constant 1 : index
    %c1_15 = arith.constant 1 : index
    %c0_16 = arith.constant 0 : index
    %10 = vector.load %arg5[%c1, %c1_15, %c0_16] : memref<18x18x4xbf16, #tpu.memory_space<vmem>>, vector<16x16x4xbf16>
    tpu.vector_store %arg5[%c1, %c1_15, %c0_16], %9 {strides = array<i32>} : memref<18x18x4xbf16, #tpu.memory_space<vmem>>, vector<16x16x4xbf16>,
    %c0_17 = arith.constant 0 : index
    %c0_18 = arith.constant 0 : index
    %11 = vector.load %arg2[%c0_17, %c0_18] : memref<36x4xbf16, #tpu.memory_space<vmem>>, vector<36x4xbf16>
    %c0_19 = arith.constant 0 : index
    %c0_20 = arith.constant 0 : index
    %c0_21 = arith.constant 0 : index
    %12 = vector.load %arg5[%c0_19, %c0_20, %c0_21] : memref<18x18x4xbf16, #tpu.memory_space<vmem>>, vector<16x16x4xbf16>
    %c0_22 = arith.constant 0 : index
    %c1_23 = arith.constant 1 : index
    %c0_24 = arith.constant 0 : index
    %13 = vector.load %arg5[%c0_22, %c1_23, %c0_24] : memref<18x18x4xbf16, #tpu.memory_space<vmem>>, vector<16x16x4xbf16>
    %c0_25 = arith.constant 0 : index
    %c2 = arith.constant 2 : index
    %c0_26 = arith.constant 0 : index
    %14 = vector.load %arg5[%c0_25, %c2, %c0_26] : memref<18x18x4xbf16, #tpu.memory_space<vmem>>, vector<16x16x4xbf16>
    %c1_27 = arith.constant 1 : index
    %c0_28 = arith.constant 0 : index
    %c0_29 = arith.constant 0 : index
    %15 = vector.load %arg5[%c1_27, %c0_28, %c0_29] : memref<18x18x4xbf16, #tpu.memory_space<vmem>>, vector<16x16x4xbf16>
    %c1_30 = arith.constant 1 : index
    %c1_31 = arith.constant 1 : index
    %c0_32 = arith.constant 0 : index
    %16 = vector.load %arg5[%c1_30, %c1_31, %c0_32] : memref<18x18x4xbf16, #tpu.memory_space<vmem>>, vector<16x16x4xbf16>
    %c1_33 = arith.constant 1 : index
    %c2_34 = arith.constant 2 : index
    %c0_35 = arith.constant 0 : index
    %17 = vector.load %arg5[%c1_33, %c2_34, %c0_35] : memref<18x18x4xbf16, #tpu.memory_space<vmem>>, vector<16x16x4xbf16>
    %c2_36 = arith.constant 2 : index
    %c0_37 = arith.constant 0 : index
    %c0_38 = arith.constant 0 : index
    %18 = vector.load %arg5[%c2_36, %c0_37, %c0_38] : memref<18x18x4xbf16, #tpu.memory_space<vmem>>, vector<16x16x4xbf16>
    %c2_39 = arith.constant 2 : index
    %c1_40 = arith.constant 1 : index
    %c0_41 = arith.constant 0 : index
    %19 = vector.load %arg5[%c2_39, %c1_40, %c0_41] : memref<18x18x4xbf16, #tpu.memory_space<vmem>>, vector<16x16x4xbf16>
    %c2_42 = arith.constant 2 : index
    %c2_43 = arith.constant 2 : index
    %c0_44 = arith.constant 0 : index
    %20 = vector.load %arg5[%c2_42, %c2_43, %c0_44] : memref<18x18x4xbf16, #tpu.memory_space<vmem>>, vector<16x16x4xbf16>
    %21 = tpu.concatenate %12, %13, %14, %15, %16, %17, %18, %19, %20 in 2 : vector<16x16x4xbf16>, vector<16x16x4xbf16>, vector<16x16x4xbf16>, vector<16x16x4xbf16>, vector<16x16x4xbf16>, vector<16x16x4xbf16>, vector<16x16x4xbf16>, vector<16x16x4xbf16>, vector<16x16x4xbf16> -> vector<16x16x36xbf16>
    %22 = vector.shape_cast %21 : vector<16x16x36xbf16> to vector<256x36xbf16>
    %cst_45 = arith.constant dense<0.000000e+00> : vector<256x4xf32>
    %23 = tpu.matmul %22, %11, %cst_45 {dimension_numbers = #tpu.dot_dimension_numbers<[1], [0], [0], [1], [0, 0, 1, 1], [], []>} : vector<256x36xbf16>, vector<36x4xbf16>, vector<256x4xf32> -> vector<256x4xf32>
    %cst_46 = arith.constant dense<0.000000e+00> : vector<4xf32>
    %24 = vector.multi_reduction <add>, %23, %cst_46 [0] : vector<256x4xf32> to vector<4xf32>
    %25 = vector.shape_cast %24 : vector<4xf32> to vector<1x4xf32>
    %26 = arith.mulf %23, %23 : vector<256x4xf32>
    %cst_47 = arith.constant dense<0.000000e+00> : vector<4xf32>
    %27 = vector.multi_reduction <add>, %26, %cst_47 [0] : vector<256x4xf32> to vector<4xf32>
    %28 = vector.shape_cast %27 : vector<4xf32> to vector<1x4xf32>
    %cst_48 = arith.constant 3.906250e-03 : f32
    %29 = vector.broadcast %cst_48 : f32 to vector<1x4xf32>
    %30 = arith.mulf %25, %29 : vector<1x4xf32>
    %cst_49 = arith.constant 3.906250e-03 : f32
    %31 = vector.broadcast %cst_49 : f32 to vector<1x4xf32>
    %32 = arith.mulf %28, %31 : vector<1x4xf32>
    %33 = arith.mulf %30, %30 : vector<1x4xf32>
    %34 = arith.subf %32, %33 : vector<1x4xf32>
    %cst_50 = arith.constant 0.000000e+00 : f32
    %35 = vector.broadcast %cst_50 : f32 to vector<1x4xf32>
    %36 = arith.maximumf %34, %35 : vector<1x4xf32>
    %37 = vector.broadcast %30 : vector<1x4xf32> to vector<256x4xf32>
    %38 = arith.subf %23, %37 : vector<256x4xf32>
    %cst_51 = arith.constant 9.99999974E-6 : f32
    %39 = vector.broadcast %cst_51 : f32 to vector<1x4xf32>
    %40 = arith.addf %36, %39 : vector<1x4xf32>
    %41 = math.rsqrt %40 : vector<1x4xf32>
    %42 = vector.broadcast %41 : vector<1x4xf32> to vector<256x4xf32>
    %43 = arith.mulf %38, %42 : vector<256x4xf32>
    %cst_52 = arith.constant 0.000000e+00 : f32
    %44 = vector.broadcast %cst_52 : f32 to vector<256x4xf32>
    %45 = arith.maximumf %43, %44 : vector<256x4xf32>
    %46 = vector.shape_cast %45 : vector<256x4xf32> to vector<16x16x4xf32>
    %47 = arith.truncf %46 : vector<16x16x4xf32> to vector<16x16x4xbf16>
    %c1_53 = arith.constant 1 : index
    %c1_54 = arith.constant 1 : index
    %c0_55 = arith.constant 0 : index
    %48 = vector.load %arg5[%c1_53, %c1_54, %c0_55] : memref<18x18x4xbf16, #tpu.memory_space<vmem>>, vector<16x16x4xbf16>
    tpu.vector_store %arg5[%c1_53, %c1_54, %c0_55], %47 {strides = array<i32>} : memref<18x18x4xbf16, #tpu.memory_space<vmem>>, vector<16x16x4xbf16>,
    %c0_56 = arith.constant 0 : index
    %c0_57 = arith.constant 0 : index
    %49 = vector.load %arg3[%c0_56, %c0_57] : memref<36x4xbf16, #tpu.memory_space<vmem>>, vector<36x4xbf16>
    %c0_58 = arith.constant 0 : index
    %c0_59 = arith.constant 0 : index
    %c0_60 = arith.constant 0 : index
    %50 = vector.load %arg5[%c0_58, %c0_59, %c0_60] : memref<18x18x4xbf16, #tpu.memory_space<vmem>>, vector<16x16x4xbf16>
    %c0_61 = arith.constant 0 : index
    %c1_62 = arith.constant 1 : index
    %c0_63 = arith.constant 0 : index
    %51 = vector.load %arg5[%c0_61, %c1_62, %c0_63] : memref<18x18x4xbf16, #tpu.memory_space<vmem>>, vector<16x16x4xbf16>
    %c0_64 = arith.constant 0 : index
    %c2_65 = arith.constant 2 : index
    %c0_66 = arith.constant 0 : index
    %52 = vector.load %arg5[%c0_64, %c2_65, %c0_66] : memref<18x18x4xbf16, #tpu.memory_space<vmem>>, vector<16x16x4xbf16>
    %c1_67 = arith.constant 1 : index
    %c0_68 = arith.constant 0 : index
    %c0_69 = arith.constant 0 : index
    %53 = vector.load %arg5[%c1_67, %c0_68, %c0_69] : memref<18x18x4xbf16, #tpu.memory_space<vmem>>, vector<16x16x4xbf16>
    %c1_70 = arith.constant 1 : index
    %c1_71 = arith.constant 1 : index
    %c0_72 = arith.constant 0 : index
    %54 = vector.load %arg5[%c1_70, %c1_71, %c0_72] : memref<18x18x4xbf16, #tpu.memory_space<vmem>>, vector<16x16x4xbf16>
    %c1_73 = arith.constant 1 : index
    %c2_74 = arith.constant 2 : index
    %c0_75 = arith.constant 0 : index
    %55 = vector.load %arg5[%c1_73, %c2_74, %c0_75] : memref<18x18x4xbf16, #tpu.memory_space<vmem>>, vector<16x16x4xbf16>
    %c2_76 = arith.constant 2 : index
    %c0_77 = arith.constant 0 : index
    %c0_78 = arith.constant 0 : index
    %56 = vector.load %arg5[%c2_76, %c0_77, %c0_78] : memref<18x18x4xbf16, #tpu.memory_space<vmem>>, vector<16x16x4xbf16>
    %c2_79 = arith.constant 2 : index
    %c1_80 = arith.constant 1 : index
    %c0_81 = arith.constant 0 : index
    %57 = vector.load %arg5[%c2_79, %c1_80, %c0_81] : memref<18x18x4xbf16, #tpu.memory_space<vmem>>, vector<16x16x4xbf16>
    %c2_82 = arith.constant 2 : index
    %c2_83 = arith.constant 2 : index
    %c0_84 = arith.constant 0 : index
    %58 = vector.load %arg5[%c2_82, %c2_83, %c0_84] : memref<18x18x4xbf16, #tpu.memory_space<vmem>>, vector<16x16x4xbf16>
    %59 = tpu.concatenate %50, %51, %52, %53, %54, %55, %56, %57, %58 in 2 : vector<16x16x4xbf16>, vector<16x16x4xbf16>, vector<16x16x4xbf16>, vector<16x16x4xbf16>, vector<16x16x4xbf16>, vector<16x16x4xbf16>, vector<16x16x4xbf16>, vector<16x16x4xbf16>, vector<16x16x4xbf16> -> vector<16x16x36xbf16>
    %60 = vector.shape_cast %59 : vector<16x16x36xbf16> to vector<256x36xbf16>
    %cst_85 = arith.constant dense<0.000000e+00> : vector<256x4xf32>
    %61 = tpu.matmul %60, %49, %cst_85 {dimension_numbers = #tpu.dot_dimension_numbers<[1], [0], [0], [1], [0, 0, 1, 1], [], []>} : vector<256x36xbf16>, vector<36x4xbf16>, vector<256x4xf32> -> vector<256x4xf32>
    %cst_86 = arith.constant dense<0.000000e+00> : vector<4xf32>
    %62 = vector.multi_reduction <add>, %61, %cst_86 [0] : vector<256x4xf32> to vector<4xf32>
    %63 = vector.shape_cast %62 : vector<4xf32> to vector<1x4xf32>
    %64 = arith.mulf %61, %61 : vector<256x4xf32>
    %cst_87 = arith.constant dense<0.000000e+00> : vector<4xf32>
    %65 = vector.multi_reduction <add>, %64, %cst_87 [0] : vector<256x4xf32> to vector<4xf32>
    %66 = vector.shape_cast %65 : vector<4xf32> to vector<1x4xf32>
    %cst_88 = arith.constant 3.906250e-03 : f32
    %67 = vector.broadcast %cst_88 : f32 to vector<1x4xf32>
    %68 = arith.mulf %63, %67 : vector<1x4xf32>
    %cst_89 = arith.constant 3.906250e-03 : f32
    %69 = vector.broadcast %cst_89 : f32 to vector<1x4xf32>
    %70 = arith.mulf %66, %69 : vector<1x4xf32>
    %71 = arith.mulf %68, %68 : vector<1x4xf32>
    %72 = arith.subf %70, %71 : vector<1x4xf32>
    %cst_90 = arith.constant 0.000000e+00 : f32
    %73 = vector.broadcast %cst_90 : f32 to vector<1x4xf32>
    %74 = arith.maximumf %72, %73 : vector<1x4xf32>
    %75 = vector.broadcast %68 : vector<1x4xf32> to vector<256x4xf32>
    %76 = arith.subf %61, %75 : vector<256x4xf32>
    %cst_91 = arith.constant 9.99999974E-6 : f32
    %77 = vector.broadcast %cst_91 : f32 to vector<1x4xf32>
    %78 = arith.addf %74, %77 : vector<1x4xf32>
    %79 = math.rsqrt %78 : vector<1x4xf32>
    %80 = vector.broadcast %79 : vector<1x4xf32> to vector<256x4xf32>
    %81 = arith.mulf %76, %80 : vector<256x4xf32>
    %82 = arith.addf %81, %8 : vector<256x4xf32>
    %cst_92 = arith.constant 0.000000e+00 : f32
    %83 = vector.broadcast %cst_92 : f32 to vector<256x4xf32>
    %84 = arith.maximumf %82, %83 : vector<256x4xf32>
    %c0_93 = arith.constant 0 : index
    %c0_94 = arith.constant 0 : index
    %c0_95 = arith.constant 0 : index
    %85 = vector.load %arg4[%c0_93, %c0_94, %c0_95] : memref<1x256x4xf32, #tpu.memory_space<vmem>>, vector<1x256x4xf32>
    %86 = vector.shape_cast %85 : vector<1x256x4xf32> to vector<256x4xf32>
    %87 = vector.shape_cast %84 : vector<256x4xf32> to vector<1x256x4xf32>
    tpu.vector_store %arg4[%c0_93, %c0_94, %c0_95], %87 {strides = array<i32>} : memref<1x256x4xf32, #tpu.memory_space<vmem>>, vector<1x256x4xf32>,
    return
  }
  func.func @transform_0(%arg0: i32) -> (i32, i32, i32, i32) {
    %c0_i32 = arith.constant 0 : i32
    %c0_i32_0 = arith.constant 0 : i32
    %c0_i32_1 = arith.constant 0 : i32
    %c0_i32_2 = arith.constant 0 : i32
    return %arg0, %c0_i32, %c0_i32_0, %c0_i32_1 : i32, i32, i32, i32
  }
  func.func @transform_1(%arg0: i32) -> (i32, i32) {
    %c0_i32 = arith.constant 0 : i32
    %c0_i32_0 = arith.constant 0 : i32
    %c0_i32_1 = arith.constant 0 : i32
    return %c0_i32, %c0_i32_0 : i32, i32
  }
  func.func @transform_2(%arg0: i32) -> (i32, i32) {
    %c0_i32 = arith.constant 0 : i32
    %c0_i32_0 = arith.constant 0 : i32
    %c0_i32_1 = arith.constant 0 : i32
    return %c0_i32, %c0_i32_0 : i32, i32
  }
  func.func @transform_3(%arg0: i32) -> (i32, i32, i32) {
    %c0_i32 = arith.constant 0 : i32
    %c0_i32_0 = arith.constant 0 : i32
    %c0_i32_1 = arith.constant 0 : i32
    return %arg0, %c0_i32, %c0_i32_0 : i32, i32, i32
  }
}

</mosaic_0001>

<llo_original>
// kernel: tpu_custom_call.1
$region0: #{tpu_custom_call.1}
  #allocation0 [shape = 'u32[]', space=smem, size = 0x4, offset = 0x4, fixed_abs, tag = 'smem constant byte address 0x4 - core index']
  #allocation1 [shape = 'u32[144,128]{1,0:T(1,128)}', space=vmem, size = 0x12000, scoped, tag = 'internal scratch']
  #allocation2 [shape = 'bf16[18,18,4]{2,1,0:T(8,128)(2,1)}', space=vmem, size = 0x1b000, scoped, tag = 'scratch operand']
  %s0 = inlined_call_operand.vmem [shape: f32[2,16,16,4], index: 0, kind: input, shape index: {}]
  %s1 = inlined_call_operand.vmem [shape: bf16[36,4], index: 1, kind: input, shape index: {}]
  %s2 = inlined_call_operand.vmem [shape: bf16[36,4], index: 2, kind: input, shape index: {}]
  %s3 = inlined_call_operand.vmem [shape: f32[2,256,4], index: 3, kind: output, shape index: {}]
  %s4 = sld [smem:[#allocation0]]
  $region45: #{tpu_custom_call.1} parent=0
    _
  %s6 = ssub.s32 1, %s4
  %s7 = scalar_select 0, %s6, %s4
  loop: start=0, step=1, limit=4
  $region2: #{tpu_custom_call.1} parent=0 // loop_pre_header
    _
  $region3: #{tpu_custom_call.1} parent=0 // loop_header
    %s9 = sphi 0, %s13
    %p10 = scmp.ge.s32.totalorder %s9, 4
    %s19 = sphi 0, %s21
    %s22 = sphi 0, %s19
    %s23 = sphi 0, %s22
    %s39 = sphi 0, %s23
    %s43 = sphi 0, %s43
    %s45 = sphi 0, %s43
    %s46 = sphi 0, %s45
    %s60 = sphi 0, %s46
    %s64 = sphi 0, %s64
    %s66 = sphi 0, %s64
    %s67 = sphi 0, %s66
    %s81 = sphi 0, %s67
    %s87 = sphi 0, %s89
    %s90 = sphi 0, %s87
    %s91 = sphi 0, %s90
    %s107 = sphi 0, %s91
  $region4: #{tpu_custom_call.1} parent=0 // loop_header_branch
    %12 = sbr.rel (%p10) target = $region8
  $region5: #{tpu_custom_call.1} parent=0 // loop_body
    %s14 = ssub.s32 %s9, 1
    %s15 = ssub.s32 %s9, 2
    %s16 = sadd.s32 %s9, 1
    %s17 = ssub.s32 %s9, %s16
    %p18 = scmp.eq.s32.totalorder %s17, 0
    %s20 = sadd.s32 %s19, 1
    %s21 = scalar_select %p18, %s19, %s20
    %p24 = pneg %p18
    %p25 = scmp.eq.s32.totalorder %s9, 1
    %p26 = por %p24, %p25
    %p27 = scmp.ne.s32.totalorder %s19, %s22
    %p28 = scmp.eq.s32.totalorder %s9, 0
    %p29 = por %p27, %p28
    %p30 = scmp.ne.s32.totalorder %s19, %s22
    %p31 = scmp.eq.s32.totalorder %s14, 1
    %p32 = por %p30, %p31
    %p33 = scmp.ne.s32.totalorder %s22, %s23
    %p34 = scmp.eq.s32.totalorder %s14, 0
    %p35 = por %p33, %p34
    %p36 = scmp.ne.s32.totalorder %s22, %s23
    %p37 = scmp.eq.s32.totalorder %s15, 1
    %p38 = por %p36, %p37
    %p40 = scmp.ne.s32.totalorder %s23, %s39
    %p41 = scmp.eq.s32.totalorder %s15, 0
    %p42 = por %p40, %p41
    %s44 = sadd.s32 %s43, 1
    %p47 = scmp.eq.s32.totalorder %s9, 1
    %p48 = scmp.ne.s32.totalorder %s43, %s45
    %p49 = scmp.eq.s32.totalorder %s9, 0
    %p50 = por %p48, %p49
    %p51 = scmp.ne.s32.totalorder %s43, %s45
    %p52 = scmp.eq.s32.totalorder %s14, 1
    %p53 = por %p51, %p52
    %p54 = scmp.ne.s32.totalorder %s45, %s46
    %p55 = scmp.eq.s32.totalorder %s14, 0
    %p56 = por %p54, %p55
    %p57 = scmp.ne.s32.totalorder %s45, %s46
    %p58 = scmp.eq.s32.totalorder %s15, 1
    %p59 = por %p57, %p58
    %p61 = scmp.ne.s32.totalorder %s46, %s60
    %p62 = scmp.eq.s32.totalorder %s15, 0
    %p63 = por %p61, %p62
    %s65 = sadd.s32 %s64, 1
    %p68 = scmp.eq.s32.totalorder %s9, 1
    %p69 = scmp.ne.s32.totalorder %s64, %s66
    %p70 = scmp.eq.s32.totalorder %s9, 0
    %p71 = por %p69, %p70
    %p72 = scmp.ne.s32.totalorder %s64, %s66
    %p73 = scmp.eq.s32.totalorder %s14, 1
    %p74 = por %p72, %p73
    %p75 = scmp.ne.s32.totalorder %s66, %s67
    %p76 = scmp.eq.s32.totalorder %s14, 0
    %p77 = por %p75, %p76
    %p78 = scmp.ne.s32.totalorder %s66, %s67
    %p79 = scmp.eq.s32.totalorder %s15, 1
    %p80 = por %p78, %p79
    %p82 = scmp.ne.s32.totalorder %s67, %s81
    %p83 = scmp.eq.s32.totalorder %s15, 0
    %p84 = por %p82, %p83
    %s85 = ssub.s32 %s9, %s16
    %p86 = scmp.eq.s32.totalorder %s85, 0
    %s88 = sadd.s32 %s87, 1
    %s89 = scalar_select %p86, %s87, %s88
    %p92 = pneg %p86
    %p93 = scmp.eq.s32.totalorder %s9, 1
    %p94 = por %p92, %p93
    %p95 = scmp.ne.s32.totalorder %s87, %s90
    %p96 = scmp.eq.s32.totalorder %s9, 0
    %p97 = por %p95, %p96
    %p98 = scmp.ne.s32.totalorder %s87, %s90
    %p99 = scmp.eq.s32.totalorder %s14, 1
    %p100 = por %p98, %p99
    %p101 = scmp.ne.s32.totalorder %s90, %s91
    %p102 = scmp.eq.s32.totalorder %s14, 0
    %p103 = por %p101, %p102
    %p104 = scmp.ne.s32.totalorder %s90, %s91
    %p105 = scmp.eq.s32.totalorder %s15, 1
    %p106 = por %p104, %p105
    %p108 = scmp.ne.s32.totalorder %s91, %s107
    %p109 = scmp.eq.s32.totalorder %s15, 0
    %p110 = por %p108, %p109
    %p111 = scmp.le.s32.totalorder 1, %s9
    %p112 = scmp.lt.s32.totalorder %s9, 3
    %p113 = pnand %p111, %p112
    %p114 = pneg %p113
    // Predicated region
    $region9: #{tpu_custom_call.1} parent=5 // pred_check
      _
    $region10: #{tpu_custom_call.1} parent=5 // pred_check_branch
      %116 = sbr.rel (%p113) target = $region12
    $region11: #{tpu_custom_call.1} parent=5 // pred_region
      %s117 = ssub.s32 %s9, 1
      // Predicated region
      $region13: #{tpu_custom_call.1} parent=11 // pred_check
        %p118 = pneg %p56
      $region14: #{tpu_custom_call.1} parent=11 // pred_check_branch
        %120 = sbr.rel (%p118) target = $region16
      $region15: #{tpu_custom_call.1} parent=11 // pred_region
        _
      $region16: #{tpu_custom_call.1} parent=11 // pred_fallthru
        _
      // Predicated region
      $region17: #{tpu_custom_call.1} parent=11 // pred_check
        %p121 = pneg %p77
      $region18: #{tpu_custom_call.1} parent=11 // pred_check_branch
        %123 = sbr.rel (%p121) target = $region20
      $region19: #{tpu_custom_call.1} parent=11 // pred_region
        _
      $region20: #{tpu_custom_call.1} parent=11 // pred_fallthru
        _
    $region12: #{tpu_custom_call.1} parent=5 // pred_fallthru
      _
    %p124 = scmp.lt.s32.totalorder %s9, 2
    // Predicated region
    $region21: #{tpu_custom_call.1} parent=5 // pred_check
      %p125 = pneg %p124
    $region22: #{tpu_custom_call.1} parent=5 // pred_check_branch
      %127 = sbr.rel (%p125) target = $region24
    $region23: #{tpu_custom_call.1} parent=5 // pred_region
      // Predicated region
      $region25: #{tpu_custom_call.1} parent=23 // pred_check
        %p128 = pneg %p29
      $region26: #{tpu_custom_call.1} parent=23 // pred_check_branch
        %130 = sbr.rel (%p128) target = $region28
      $region27: #{tpu_custom_call.1} parent=23 // pred_region
        %p131 = scmp.lt.s32.totalorder %s9, 1
        %s132 = scalar_select %p131, %s9, 1
        %s133 = smul.addr %s132, 32
        %s134 = smul.addr %s133, 8
        %s135 = scalar_lea.vmem %s0, %s134
      $region28: #{tpu_custom_call.1} parent=23 // pred_fallthru
        _
    $region24: #{tpu_custom_call.1} parent=5 // pred_fallthru
      _
    %p136 = scmp.le.s32.totalorder 1, %s9
    %p137 = scmp.lt.s32.totalorder %s9, 3
    %p138 = pnand %p136, %p137
    %p139 = pneg %p138
    // Predicated region
    $region29: #{tpu_custom_call.1} parent=5 // pred_check
      _
    $region30: #{tpu_custom_call.1} parent=5 // pred_check_branch
      %141 = sbr.rel (%p138) target = $region32
    $region31: #{tpu_custom_call.1} parent=5 // pred_region
      %s142 = ssub.s32 %s9, 1
      %p143 = scmp.lt.s32.totalorder %s14, 1
      %s144 = scalar_select %p143, %s14, 1
      %s145 = smul.addr %s144, 32
      %s146 = smul.addr %s145, 8
      %s147 = scalar_lea.vmem %s0, %s146
      %p148 = pneg %p35
      %p149 = pneg %p32
      %p150 = pneg %p56
      %p151 = pneg %p53
      %p152 = pneg %p77
      %p153 = pneg %p74
      %p154 = pneg %p103
      %p155 = pneg %p100
      %p156 = scmp.lt.s32.totalorder %s14, 1
      %s157 = scalar_select %p156, %s14, 1
      %s158 = smul.addr %s157, 32
      %s159 = smul.addr %s158, 8
      %s160 = scalar_lea.vmem %s3, %s159
      %p161 = scmp.lt.s32.totalorder %s14, 1
      %s162 = scalar_select %p161, %s14, 1
      %s163 = smul.addr %s162, 32
      %s164 = smul.addr %s163, 8
      %s165 = scalar_lea.vmem %s0, %s164
      %p166 = scmp.lt.s32.totalorder %s14, 1
      %s167 = scalar_select %p166, %s14, 1
      %s168 = smul.addr %s167, 32
      %s169 = smul.addr %s168, 8
      %s170 = scalar_lea.vmem %s3, %s169
      %vm172 = vcmask 27648
      %173 = vst.msk [vmem:[#allocation2] sm:$0xf] %vm172, 0
      %174 = vst.msk [vmem:[#allocation2 + $0x4] sm:$0xf] %vm172, 0
      %vm175 = vcmask 24576
      %176 = vst.msk [vmem:[#allocation2 + $0x8] sm:$0x1] %vm175, 0
      %s177 = scalar_lea.vmem [#allocation2], 204
      %178 = vst.msk [vmem:[%s177] sm:$0xf] %vm172, 0
      %179 = vst.msk [vmem:[%s177 + $0x4] sm:$0xf] %vm172, 0
      %180 = vst.msk [vmem:[%s177 + $0x8] sm:$0x1] %vm175, 0
      %vm181 = vcmask 24576
      %vm182 = vsmask.f32 256
      %vm183 = vmand %vm181, %vm182
      %v184 = vld [vmem:[#allocation2] sm:$0x1]
      %v185 = vsel %vm183, 0, %v184
      %186 = vst [vmem:[#allocation2] sm:$0x1] %v185
      %v187 = vld [vmem:[#allocation2 + $0xc] sm:$0x1]
      %v188 = vsel %vm183, 0, %v187
      %189 = vst [vmem:[#allocation2 + $0xc] sm:$0x1] %v188
      %v190 = vld [vmem:[#allocation2 + $0x18] sm:$0x1]
      %v191 = vsel %vm183, 0, %v190
      %192 = vst [vmem:[#allocation2 + $0x18] sm:$0x1] %v191
      %v193 = vld [vmem:[#allocation2 + $0x24] sm:$0x1]
      %v194 = vsel %vm183, 0, %v193
      %195 = vst [vmem:[#allocation2 + $0x24] sm:$0x1] %v194
      %v196 = vld [vmem:[#allocation2 + $0x30] sm:$0x1]
      %v197 = vsel %vm183, 0, %v196
      %198 = vst [vmem:[#allocation2 + $0x30] sm:$0x1] %v197
      %v199 = vld [vmem:[#allocation2 + $0x3c] sm:$0x1]
      %v200 = vsel %vm183, 0, %v199
      %201 = vst [vmem:[#allocation2 + $0x3c] sm:$0x1] %v200
      %v202 = vld [vmem:[#allocation2 + $0x48] sm:$0x1]
      %v203 = vsel %vm183, 0, %v202
      %204 = vst [vmem:[#allocation2 + $0x48] sm:$0x1] %v203
      %v205 = vld [vmem:[#allocation2 + $0x54] sm:$0x1]
      %v206 = vsel %vm183, 0, %v205
      %207 = vst [vmem:[#allocation2 + $0x54] sm:$0x1] %v206
      %v208 = vld [vmem:[#allocation2 + $0x60] sm:$0x1]
      %v209 = vsel %vm183, 0, %v208
      %210 = vst [vmem:[#allocation2 + $0x60] sm:$0x1] %v209
      %v211 = vld [vmem:[#allocation2 + $0x6c] sm:$0x1]
      %v212 = vsel %vm183, 0, %v211
      %213 = vst [vmem:[#allocation2 + $0x6c] sm:$0x1] %v212
      %v214 = vld [vmem:[#allocation2 + $0x78] sm:$0x1]
      %v215 = vsel %vm183, 0, %v214
      %216 = vst [vmem:[#allocation2 + $0x78] sm:$0x1] %v215
      %v217 = vld [vmem:[#allocation2 + $0x84] sm:$0x1]
      %v218 = vsel %vm183, 0, %v217
      %219 = vst [vmem:[#allocation2 + $0x84] sm:$0x1] %v218
      %v220 = vld [vmem:[#allocation2 + $0x90] sm:$0x1]
      %v221 = vsel %vm183, 0, %v220
      %222 = vst [vmem:[#allocation2 + $0x90] sm:$0x1] %v221
      %v223 = vld [vmem:[#allocation2 + $0x9c] sm:$0x1]
      %v224 = vsel %vm183, 0, %v223
      %225 = vst [vmem:[#allocation2 + $0x9c] sm:$0x1] %v224
      %v226 = vld [vmem:[#allocation2 + $0xa8] sm:$0x1]
      %v227 = vsel %vm183, 0, %v226
      %228 = vst [vmem:[#allocation2 + $0xa8] sm:$0x1] %v227
      %v229 = vld [vmem:[#allocation2 + $0xb4] sm:$0x1]
      %v230 = vsel %vm183, 0, %v229
      %231 = vst [vmem:[#allocation2 + $0xb4] sm:$0x1] %v230
      %v232 = vld [vmem:[#allocation2 + $0xc0] sm:$0x1]
      %v233 = vsel %vm183, 0, %v232
      %234 = vst [vmem:[#allocation2 + $0xc0] sm:$0x1] %v233
      %v235 = vld [vmem:[#allocation2 + $0xcc] sm:$0x1]
      %v236 = vsel %vm183, 0, %v235
      %237 = vst [vmem:[#allocation2 + $0xcc] sm:$0x1] %v236
      %vm238 = vsmask.f32 7938
      %vm239 = vmand %vm181, %vm238
      %v240 = vld [vmem:[#allocation2 + $0x8] sm:$0x1]
      %v241 = vsel %vm239, 0, %v240
      %242 = vst [vmem:[#allocation2 + $0x8] sm:$0x1] %v241
      %v243 = vld [vmem:[#allocation2 + $0x14] sm:$0x1]
      %v244 = vsel %vm239, 0, %v243
      %245 = vst [vmem:[#allocation2 + $0x14] sm:$0x1] %v244
      %v246 = vld [vmem:[#allocation2 + $0x20] sm:$0x1]
      %v247 = vsel %vm239, 0, %v246
      %248 = vst [vmem:[#allocation2 + $0x20] sm:$0x1] %v247
      %v249 = vld [vmem:[#allocation2 + $0x2c] sm:$0x1]
      %v250 = vsel %vm239, 0, %v249
      %251 = vst [vmem:[#allocation2 + $0x2c] sm:$0x1] %v250
      %v252 = vld [vmem:[#allocation2 + $0x38] sm:$0x1]
      %v253 = vsel %vm239, 0, %v252
      %254 = vst [vmem:[#allocation2 + $0x38] sm:$0x1] %v253
      %v255 = vld [vmem:[#allocation2 + $0x44] sm:$0x1]
      %v256 = vsel %vm239, 0, %v255
      %257 = vst [vmem:[#allocation2 + $0x44] sm:$0x1] %v256
      %v258 = vld [vmem:[#allocation2 + $0x50] sm:$0x1]
      %v259 = vsel %vm239, 0, %v258
      %260 = vst [vmem:[#allocation2 + $0x50] sm:$0x1] %v259
      %v261 = vld [vmem:[#allocation2 + $0x5c] sm:$0x1]
      %v262 = vsel %vm239, 0, %v261
      %263 = vst [vmem:[#allocation2 + $0x5c] sm:$0x1] %v262
      %v264 = vld [vmem:[#allocation2 + $0x68] sm:$0x1]
      %v265 = vsel %vm239, 0, %v264
      %266 = vst [vmem:[#allocation2 + $0x68] sm:$0x1] %v265
      %v267 = vld [vmem:[#allocation2 + $0x74] sm:$0x1]
      %v268 = vsel %vm239, 0, %v267
      %269 = vst [vmem:[#allocation2 + $0x74] sm:$0x1] %v268
      %v270 = vld [vmem:[#allocation2 + $0x80] sm:$0x1]
      %v271 = vsel %vm239, 0, %v270
      %272 = vst [vmem:[#allocation2 + $0x80] sm:$0x1] %v271
      %v273 = vld [vmem:[#allocation2 + $0x8c] sm:$0x1]
      %v274 = vsel %vm239, 0, %v273
      %275 = vst [vmem:[#allocation2 + $0x8c] sm:$0x1] %v274
      %v276 = vld [vmem:[#allocation2 + $0x98] sm:$0x1]
      %v277 = vsel %vm239, 0, %v276
      %278 = vst [vmem:[#allocation2 + $0x98] sm:$0x1] %v277
      %v279 = vld [vmem:[#allocation2 + $0xa4] sm:$0x1]
      %v280 = vsel %vm239, 0, %v279
      %281 = vst [vmem:[#allocation2 + $0xa4] sm:$0x1] %v280
      %v282 = vld [vmem:[#allocation2 + $0xb0] sm:$0x1]
      %v283 = vsel %vm239, 0, %v282
      %284 = vst [vmem:[#allocation2 + $0xb0] sm:$0x1] %v283
      %v285 = vld [vmem:[#allocation2 + $0xbc] sm:$0x1]
      %v286 = vsel %vm239, 0, %v285
      %287 = vst [vmem:[#allocation2 + $0xbc] sm:$0x1] %v286
      %v288 = vld [vmem:[#allocation2 + $0xc8] sm:$0x1]
      %v289 = vsel %vm239, 0, %v288
      %290 = vst [vmem:[#allocation2 + $0xc8] sm:$0x1] %v289
      %v291 = vld [vmem:[#allocation2 + $0xd4] sm:$0x1]
      %v292 = vsel %vm239, 0, %v291
      %293 = vst [vmem:[#allocation2 + $0xd4] sm:$0x1] %v292
      %v294 = vld [vmem:[%s165] sm:$0xff]
      %v295 = vld [vmem:[%s165 + $0x8] sm:$0xff]
      %v296 = vld [vmem:[%s165 + $0x10] sm:$0xff]
      %v297 = vld [vmem:[%s165 + $0x18] sm:$0xff]
      %v298 = vld [vmem:[%s165 + $0x20] sm:$0xff]
      %v299 = vld [vmem:[%s165 + $0x28] sm:$0xff]
      %v300 = vld [vmem:[%s165 + $0x30] sm:$0xff]
      %v301 = vld [vmem:[%s165 + $0x38] sm:$0xff]
      %v302 = vld [vmem:[%s165 + $0x40] sm:$0xff]
      %v303 = vld [vmem:[%s165 + $0x48] sm:$0xff]
      %v304 = vld [vmem:[%s165 + $0x50] sm:$0xff]
      %v305 = vld [vmem:[%s165 + $0x58] sm:$0xff]
      %v306 = vld [vmem:[%s165 + $0x60] sm:$0xff]
      %v307 = vld [vmem:[%s165 + $0x68] sm:$0xff]
      %v308 = vld [vmem:[%s165 + $0x70] sm:$0xff]
      %v309 = vld [vmem:[%s165 + $0x78] sm:$0xff]
      %v310 = vld [vmem:[%s165 + $0x80] sm:$0xff]
      %v311 = vld [vmem:[%s165 + $0x88] sm:$0xff]
      %v312 = vld [vmem:[%s165 + $0x90] sm:$0xff]
      %v313 = vld [vmem:[%s165 + $0x98] sm:$0xff]
      %v314 = vld [vmem:[%s165 + $0xa0] sm:$0xff]
      %v315 = vld [vmem:[%s165 + $0xa8] sm:$0xff]
      %v316 = vld [vmem:[%s165 + $0xb0] sm:$0xff]
      %v317 = vld [vmem:[%s165 + $0xb8] sm:$0xff]
      %v318 = vld [vmem:[%s165 + $0xc0] sm:$0xff]
      %v319 = vld [vmem:[%s165 + $0xc8] sm:$0xff]
      %v320 = vld [vmem:[%s165 + $0xd0] sm:$0xff]
      %v321 = vld [vmem:[%s165 + $0xd8] sm:$0xff]
      %v322 = vld [vmem:[%s165 + $0xe0] sm:$0xff]
      %v323 = vld [vmem:[%s165 + $0xe8] sm:$0xff]
      %v324 = vld [vmem:[%s165 + $0xf0] sm:$0xff]
      %v325 = vld [vmem:[%s165 + $0xf8] sm:$0xff]
      %v326 = vpack.c.bf16 %v295, %v294
      %v327 = vpack.c.bf16 %v297, %v296
      %v328 = vpack.c.bf16 %v299, %v298
      %v329 = vpack.c.bf16 %v301, %v300
      %v330 = vpack.c.bf16 %v303, %v302
      %v331 = vpack.c.bf16 %v305, %v304
      %v332 = vpack.c.bf16 %v307, %v306
      %v333 = vpack.c.bf16 %v309, %v308
      %v334 = vpack.c.bf16 %v311, %v310
      %v335 = vpack.c.bf16 %v313, %v312
      %v336 = vpack.c.bf16 %v315, %v314
      %v337 = vpack.c.bf16 %v317, %v316
      %v338 = vpack.c.bf16 %v319, %v318
      %v339 = vpack.c.bf16 %v321, %v320
      %v340 = vpack.c.bf16 %v323, %v322
      %v341 = vpack.c.bf16 %v325, %v324
      %v358 = vunpack.c.l.b16 %v326
      %v359 = vunpack.c.h.b16 %v326
      %v360 = vunpack.c.l.b16 %v327
      %v361 = vunpack.c.h.b16 %v327
      %v362 = vunpack.c.l.b16 %v328
      %v363 = vunpack.c.h.b16 %v328
      %v364 = vunpack.c.l.b16 %v329
      %v365 = vunpack.c.h.b16 %v329
      %v366 = vunpack.c.l.b16 %v330
      %v367 = vunpack.c.h.b16 %v330
      %v368 = vunpack.c.l.b16 %v331
      %v369 = vunpack.c.h.b16 %v331
      %v370 = vunpack.c.l.b16 %v332
      %v371 = vunpack.c.h.b16 %v332
      %v372 = vunpack.c.l.b16 %v333
      %v373 = vunpack.c.h.b16 %v333
      %v374 = vunpack.c.l.b16 %v334
      %v375 = vunpack.c.h.b16 %v334
      %v376 = vunpack.c.l.b16 %v335
      %v377 = vunpack.c.h.b16 %v335
      %v378 = vunpack.c.l.b16 %v336
      %v379 = vunpack.c.h.b16 %v336
      %v380 = vunpack.c.l.b16 %v337
      %v381 = vunpack.c.h.b16 %v337
      %v382 = vunpack.c.l.b16 %v338
      %v383 = vunpack.c.h.b16 %v338
      %v384 = vunpack.c.l.b16 %v339
      %v385 = vunpack.c.h.b16 %v339
      %v386 = vunpack.c.l.b16 %v340
      %v387 = vunpack.c.h.b16 %v340
      %v388 = vunpack.c.l.b16 %v341
      %v389 = vunpack.c.h.b16 %v341
      %v390 = vpack.c.b16 %v358, %v358
      %v391 = vpack.c.b16 %v359, %v359
      %v392 = vpack.c.b16 %v360, %v360
      %v393 = vpack.c.b16 %v361, %v361
      %v394 = vpack.c.b16 %v362, %v362
      %v395 = vpack.c.b16 %v363, %v363
      %v396 = vpack.c.b16 %v364, %v364
      %v397 = vpack.c.b16 %v365, %v365
      %v398 = vpack.c.b16 %v366, %v366
      %v399 = vpack.c.b16 %v367, %v367
      %v400 = vpack.c.b16 %v368, %v368
      %v401 = vpack.c.b16 %v369, %v369
      %v402 = vpack.c.b16 %v370, %v370
      %v403 = vpack.c.b16 %v371, %v371
      %v404 = vpack.c.b16 %v372, %v372
      %v405 = vpack.c.b16 %v373, %v373
      %v406 = vpack.c.b16 %v374, %v374
      %v407 = vpack.c.b16 %v375, %v375
      %v408 = vpack.c.b16 %v376, %v376
      %v409 = vpack.c.b16 %v377, %v377
      %v410 = vpack.c.b16 %v378, %v378
      %v411 = vpack.c.b16 %v379, %v379
      %v412 = vpack.c.b16 %v380, %v380
      %v413 = vpack.c.b16 %v381, %v381
      %v414 = vpack.c.b16 %v382, %v382
      %v415 = vpack.c.b16 %v383, %v383
      %v416 = vpack.c.b16 %v384, %v384
      %v417 = vpack.c.b16 %v385, %v385
      %v418 = vpack.c.b16 %v386, %v386
      %v419 = vpack.c.b16 %v387, %v387
      %v420 = vpack.c.b16 %v388, %v388
      %v421 = vpack.c.b16 %v389, %v389
      %vm422 = vsmask.f32 4368
      %vm423 = vmor %vm182, %vm422
      %v425 = vshrl.u32 %v390, 16
      %v427 = vrot.slane %v425, 7
      %v428 = vshll.u32 %v390, 16
      %v430 = vor.u32 %v427, %v428
      %v431 = vrot.slane %v427, 4
      %v433 = vshrl.u32 %v391, 16
      %v435 = vrot.slane %v433, 7
      %v436 = vshll.u32 %v391, 16
      %v438 = vor.u32 %v435, %v436
      %v439 = vsel %vm423, %v431, %v438
      %v440 = vrot.slane %v435, 4
      %v442 = vshrl.u32 %v392, 16
      %v444 = vrot.slane %v442, 7
      %v445 = vshll.u32 %v392, 16
      %v447 = vor.u32 %v444, %v445
      %v448 = vrot.slane %v444, 4
      %v450 = vshrl.u32 %v393, 16
      %v452 = vrot.slane %v450, 7
      %v453 = vshll.u32 %v393, 16
      %v455 = vor.u32 %v452, %v453
      %v456 = vsel %vm423, %v448, %v455
      %v457 = vrot.slane %v452, 4
      %v459 = vshrl.u32 %v394, 16
      %v461 = vrot.slane %v459, 7
      %v462 = vshll.u32 %v394, 16
      %v464 = vor.u32 %v461, %v462
      %v465 = vrot.slane %v461, 4
      %v467 = vshrl.u32 %v395, 16
      %v469 = vrot.slane %v467, 7
      %v470 = vshll.u32 %v395, 16
      %v472 = vor.u32 %v469, %v470
      %v473 = vsel %vm423, %v465, %v472
      %v474 = vrot.slane %v469, 4
      %v476 = vshrl.u32 %v396, 16
      %v478 = vrot.slane %v476, 7
      %v479 = vshll.u32 %v396, 16
      %v481 = vor.u32 %v478, %v479
      %v482 = vrot.slane %v478, 4
      %v484 = vshrl.u32 %v397, 16
      %v486 = vrot.slane %v484, 7
      %v487 = vshll.u32 %v397, 16
      %v489 = vor.u32 %v486, %v487
      %v490 = vsel %vm423, %v482, %v489
      %v491 = vrot.slane %v486, 4
      %v493 = vshrl.u32 %v398, 16
      %v495 = vrot.slane %v493, 7
      %v496 = vshll.u32 %v398, 16
      %v498 = vor.u32 %v495, %v496
      %v499 = vrot.slane %v495, 4
      %v501 = vshrl.u32 %v399, 16
      %v503 = vrot.slane %v501, 7
      %v504 = vshll.u32 %v399, 16
      %v506 = vor.u32 %v503, %v504
      %v507 = vsel %vm423, %v499, %v506
      %v508 = vrot.slane %v503, 4
      %v510 = vshrl.u32 %v400, 16
      %v512 = vrot.slane %v510, 7
      %v513 = vshll.u32 %v400, 16
      %v515 = vor.u32 %v512, %v513
      %v516 = vrot.slane %v512, 4
      %v518 = vshrl.u32 %v401, 16
      %v520 = vrot.slane %v518, 7
      %v521 = vshll.u32 %v401, 16
      %v523 = vor.u32 %v520, %v521
      %v524 = vsel %vm423, %v516, %v523
      %v525 = vrot.slane %v520, 4
      %v527 = vshrl.u32 %v402, 16
      %v529 = vrot.slane %v527, 7
      %v530 = vshll.u32 %v402, 16
      %v532 = vor.u32 %v529, %v530
      %v533 = vrot.slane %v529, 4
      %v535 = vshrl.u32 %v403, 16
      %v537 = vrot.slane %v535, 7
      %v538 = vshll.u32 %v403, 16
      %v540 = vor.u32 %v537, %v538
      %v541 = vsel %vm423, %v533, %v540
      %v542 = vrot.slane %v537, 4
      %v544 = vshrl.u32 %v404, 16
      %v546 = vrot.slane %v544, 7
      %v547 = vshll.u32 %v404, 16
      %v549 = vor.u32 %v546, %v547
      %v550 = vrot.slane %v546, 4
      %v552 = vshrl.u32 %v405, 16
      %v554 = vrot.slane %v552, 7
      %v555 = vshll.u32 %v405, 16
      %v557 = vor.u32 %v554, %v555
      %v558 = vsel %vm423, %v550, %v557
      %v559 = vrot.slane %v554, 4
      %v561 = vshrl.u32 %v406, 16
      %v563 = vrot.slane %v561, 7
      %v564 = vshll.u32 %v406, 16
      %v566 = vor.u32 %v563, %v564
      %v567 = vrot.slane %v563, 4
      %v569 = vshrl.u32 %v407, 16
      %v571 = vrot.slane %v569, 7
      %v572 = vshll.u32 %v407, 16
      %v574 = vor.u32 %v571, %v572
      %v575 = vsel %vm423, %v567, %v574
      %v576 = vrot.slane %v571, 4
      %v578 = vshrl.u32 %v408, 16
      %v580 = vrot.slane %v578, 7
      %v581 = vshll.u32 %v408, 16
      %v583 = vor.u32 %v580, %v581
      %v584 = vrot.slane %v580, 4
      %v586 = vshrl.u32 %v409, 16
      %v588 = vrot.slane %v586, 7
      %v589 = vshll.u32 %v409, 16
      %v591 = vor.u32 %v588, %v589
      %v592 = vsel %vm423, %v584, %v591
      %v593 = vrot.slane %v588, 4
      %v595 = vshrl.u32 %v410, 16
      %v597 = vrot.slane %v595, 7
      %v598 = vshll.u32 %v410, 16
      %v600 = vor.u32 %v597, %v598
      %v601 = vrot.slane %v597, 4
      %v603 = vshrl.u32 %v411, 16
      %v605 = vrot.slane %v603, 7
      %v606 = vshll.u32 %v411, 16
      %v608 = vor.u32 %v605, %v606
      %v609 = vsel %vm423, %v601, %v608
      %v610 = vrot.slane %v605, 4
      %v612 = vshrl.u32 %v412, 16
      %v614 = vrot.slane %v612, 7
      %v615 = vshll.u32 %v412, 16
      %v617 = vor.u32 %v614, %v615
      %v618 = vrot.slane %v614, 4
      %v620 = vshrl.u32 %v413, 16
      %v622 = vrot.slane %v620, 7
      %v623 = vshll.u32 %v413, 16
      %v625 = vor.u32 %v622, %v623
      %v626 = vsel %vm423, %v618, %v625
      %v627 = vrot.slane %v622, 4
      %v629 = vshrl.u32 %v414, 16
      %v631 = vrot.slane %v629, 7
      %v632 = vshll.u32 %v414, 16
      %v634 = vor.u32 %v631, %v632
      %v635 = vrot.slane %v631, 4
      %v637 = vshrl.u32 %v415, 16
      %v639 = vrot.slane %v637, 7
      %v640 = vshll.u32 %v415, 16
      %v642 = vor.u32 %v639, %v640
      %v643 = vsel %vm423, %v635, %v642
      %v644 = vrot.slane %v639, 4
      %v646 = vshrl.u32 %v416, 16
      %v648 = vrot.slane %v646, 7
      %v649 = vshll.u32 %v416, 16
      %v651 = vor.u32 %v648, %v649
      %v652 = vrot.slane %v648, 4
      %v654 = vshrl.u32 %v417, 16
      %v656 = vrot.slane %v654, 7
      %v657 = vshll.u32 %v417, 16
      %v659 = vor.u32 %v656, %v657
      %v660 = vsel %vm423, %v652, %v659
      %v661 = vrot.slane %v656, 4
      %v663 = vshrl.u32 %v418, 16
      %v665 = vrot.slane %v663, 7
      %v666 = vshll.u32 %v418, 16
      %v668 = vor.u32 %v665, %v666
      %v669 = vrot.slane %v665, 4
      %v671 = vshrl.u32 %v419, 16
      %v673 = vrot.slane %v671, 7
      %v674 = vshll.u32 %v419, 16
      %v676 = vor.u32 %v673, %v674
      %v677 = vsel %vm423, %v669, %v676
      %v678 = vrot.slane %v673, 4
      %v680 = vshrl.u32 %v420, 16
      %v682 = vrot.slane %v680, 7
      %v683 = vshll.u32 %v420, 16
      %v685 = vor.u32 %v682, %v683
      %v686 = vrot.slane %v682, 4
      %v688 = vshrl.u32 %v421, 16
      %v690 = vrot.slane %v688, 7
      %v691 = vshll.u32 %v421, 16
      %v693 = vor.u32 %v690, %v691
      %v694 = vsel %vm423, %v686, %v693
      %v695 = vrot.slane %v690, 4
      %s744 = scalar_lea.vmem [#allocation2], 12
      %vm745 = vcmask 27648
      %vm746 = vmand %vm745, %vm238
      %v747 = vld [vmem:[%s744] sm:$0xf]
      %v748 = vsel %vm746, %v430, %v747
      %749 = vst [vmem:[%s744] sm:$0xf] %v748
      %750 = vst.msk [vmem:[%s744 + $0x4] sm:$0xf] %vm172, %v439
      %v751 = vld [vmem:[%s744 + $0x8] sm:$0x1]
      %v752 = vsel %vm183, %v440, %v751
      %753 = vst [vmem:[%s744 + $0x8] sm:$0x1] %v752
      %v754 = vld [vmem:[%s744 + $0xc] sm:$0xf]
      %v755 = vsel %vm746, %v447, %v754
      %756 = vst [vmem:[%s744 + $0xc] sm:$0xf] %v755
      %757 = vst.msk [vmem:[%s744 + $0x10] sm:$0xf] %vm172, %v456
      %v758 = vld [vmem:[%s744 + $0x14] sm:$0x1]
      %v759 = vsel %vm183, %v457, %v758
      %760 = vst [vmem:[%s744 + $0x14] sm:$0x1] %v759
      %v761 = vld [vmem:[%s744 + $0x18] sm:$0xf]
      %v762 = vsel %vm746, %v464, %v761
      %763 = vst [vmem:[%s744 + $0x18] sm:$0xf] %v762
      %764 = vst.msk [vmem:[%s744 + $0x1c] sm:$0xf] %vm172, %v473
      %v765 = vld [vmem:[%s744 + $0x20] sm:$0x1]
      %v766 = vsel %vm183, %v474, %v765
      %767 = vst [vmem:[%s744 + $0x20] sm:$0x1] %v766
      %v768 = vld [vmem:[%s744 + $0x24] sm:$0xf]
      %v769 = vsel %vm746, %v481, %v768
      %770 = vst [vmem:[%s744 + $0x24] sm:$0xf] %v769
      %771 = vst.msk [vmem:[%s744 + $0x28] sm:$0xf] %vm172, %v490
      %v772 = vld [vmem:[%s744 + $0x2c] sm:$0x1]
      %v773 = vsel %vm183, %v491, %v772
      %774 = vst [vmem:[%s744 + $0x2c] sm:$0x1] %v773
      %v775 = vld [vmem:[%s744 + $0x30] sm:$0xf]
      %v776 = vsel %vm746, %v498, %v775
      %777 = vst [vmem:[%s744 + $0x30] sm:$0xf] %v776
      %778 = vst.msk [vmem:[%s744 + $0x34] sm:$0xf] %vm172, %v507
      %v779 = vld [vmem:[%s744 + $0x38] sm:$0x1]
      %v780 = vsel %vm183, %v508, %v779
      %781 = vst [vmem:[%s744 + $0x38] sm:$0x1] %v780
      %v782 = vld [vmem:[%s744 + $0x3c] sm:$0xf]
      %v783 = vsel %vm746, %v515, %v782
      %784 = vst [vmem:[%s744 + $0x3c] sm:$0xf] %v783
      %785 = vst.msk [vmem:[%s744 + $0x40] sm:$0xf] %vm172, %v524
      %v786 = vld [vmem:[%s744 + $0x44] sm:$0x1]
      %v787 = vsel %vm183, %v525, %v786
      %788 = vst [vmem:[%s744 + $0x44] sm:$0x1] %v787
      %v789 = vld [vmem:[%s744 + $0x48] sm:$0xf]
      %v790 = vsel %vm746, %v532, %v789
      %791 = vst [vmem:[%s744 + $0x48] sm:$0xf] %v790
      %792 = vst.msk [vmem:[%s744 + $0x4c] sm:$0xf] %vm172, %v541
      %v793 = vld [vmem:[%s744 + $0x50] sm:$0x1]
      %v794 = vsel %vm183, %v542, %v793
      %795 = vst [vmem:[%s744 + $0x50] sm:$0x1] %v794
      %v796 = vld [vmem:[%s744 + $0x54] sm:$0xf]
      %v797 = vsel %vm746, %v549, %v796
      %798 = vst [vmem:[%s744 + $0x54] sm:$0xf] %v797
      %799 = vst.msk [vmem:[%s744 + $0x58] sm:$0xf] %vm172, %v558
      %v800 = vld [vmem:[%s744 + $0x5c] sm:$0x1]
      %v801 = vsel %vm183, %v559, %v800
      %802 = vst [vmem:[%s744 + $0x5c] sm:$0x1] %v801
      %v803 = vld [vmem:[%s744 + $0x60] sm:$0xf]
      %v804 = vsel %vm746, %v566, %v803
      %805 = vst [vmem:[%s744 + $0x60] sm:$0xf] %v804
      %806 = vst.msk [vmem:[%s744 + $0x64] sm:$0xf] %vm172, %v575
      %v807 = vld [vmem:[%s744 + $0x68] sm:$0x1]
      %v808 = vsel %vm183, %v576, %v807
      %809 = vst [vmem:[%s744 + $0x68] sm:$0x1] %v808
      %v810 = vld [vmem:[%s744 + $0x6c] sm:$0xf]
      %v811 = vsel %vm746, %v583, %v810
      %812 = vst [vmem:[%s744 + $0x6c] sm:$0xf] %v811
      %813 = vst.msk [vmem:[%s744 + $0x70] sm:$0xf] %vm172, %v592
      %v814 = vld [vmem:[%s744 + $0x74] sm:$0x1]
      %v815 = vsel %vm183, %v593, %v814
      %816 = vst [vmem:[%s744 + $0x74] sm:$0x1] %v815
      %v817 = vld [vmem:[%s744 + $0x78] sm:$0xf]
      %v818 = vsel %vm746, %v600, %v817
      %819 = vst [vmem:[%s744 + $0x78] sm:$0xf] %v818
      %820 = vst.msk [vmem:[%s744 + $0x7c] sm:$0xf] %vm172, %v609
      %v821 = vld [vmem:[%s744 + $0x80] sm:$0x1]
      %v822 = vsel %vm183, %v610, %v821
      %823 = vst [vmem:[%s744 + $0x80] sm:$0x1] %v822
      %v824 = vld [vmem:[%s744 + $0x84] sm:$0xf]
      %v825 = vsel %vm746, %v617, %v824
      %826 = vst [vmem:[%s744 + $0x84] sm:$0xf] %v825
      %827 = vst.msk [vmem:[%s744 + $0x88] sm:$0xf] %vm172, %v626
      %v828 = vld [vmem:[%s744 + $0x8c] sm:$0x1]
      %v829 = vsel %vm183, %v627, %v828
      %830 = vst [vmem:[%s744 + $0x8c] sm:$0x1] %v829
      %v831 = vld [vmem:[%s744 + $0x90] sm:$0xf]
      %v832 = vsel %vm746, %v634, %v831
      %833 = vst [vmem:[%s744 + $0x90] sm:$0xf] %v832
      %834 = vst.msk [vmem:[%s744 + $0x94] sm:$0xf] %vm172, %v643
      %v835 = vld [vmem:[%s744 + $0x98] sm:$0x1]
      %v836 = vsel %vm183, %v644, %v835
      %837 = vst [vmem:[%s744 + $0x98] sm:$0x1] %v836
      %v838 = vld [vmem:[%s744 + $0x9c] sm:$0xf]
      %v839 = vsel %vm746, %v651, %v838
      %840 = vst [vmem:[%s744 + $0x9c] sm:$0xf] %v839
      %841 = vst.msk [vmem:[%s744 + $0xa0] sm:$0xf] %vm172, %v660
      %v842 = vld [vmem:[%s744 + $0xa4] sm:$0x1]
      %v843 = vsel %vm183, %v661, %v842
      %844 = vst [vmem:[%s744 + $0xa4] sm:$0x1] %v843
      %v845 = vld [vmem:[%s744 + $0xa8] sm:$0xf]
      %v846 = vsel %vm746, %v668, %v845
      %847 = vst [vmem:[%s744 + $0xa8] sm:$0xf] %v846
      %848 = vst.msk [vmem:[%s744 + $0xac] sm:$0xf] %vm172, %v677
      %v849 = vld [vmem:[%s744 + $0xb0] sm:$0x1]
      %v850 = vsel %vm183, %v678, %v849
      %851 = vst [vmem:[%s744 + $0xb0] sm:$0x1] %v850
      %v852 = vld [vmem:[%s744 + $0xb4] sm:$0xf]
      %v853 = vsel %vm746, %v685, %v852
      %854 = vst [vmem:[%s744 + $0xb4] sm:$0xf] %v853
      %855 = vst.msk [vmem:[%s744 + $0xb8] sm:$0xf] %vm172, %v694
      %v856 = vld [vmem:[%s744 + $0xbc] sm:$0x1]
      %v857 = vsel %vm183, %v695, %v856
      %858 = vst [vmem:[%s744 + $0xbc] sm:$0x1] %v857
      %v859 = vld [vmem:[%s1] sm:$0xf]
      %v860 = vld [vmem:[%s1 + $0x4] sm:$0xf]
      %v861 = vld [vmem:[%s1 + $0x8] sm:$0xf]
      %v862 = vld [vmem:[%s1 + $0xc] sm:$0xf]
      %v863 = vld [vmem:[%s1 + $0x10] sm:$0x3]
      %v864 = vld [vmem:[#allocation2] sm:$0xf]
      %v865 = vld [vmem:[#allocation2 + $0x4] sm:$0xf]
      %v866 = vld [vmem:[#allocation2 + $0xc] sm:$0xf]
      %v867 = vld [vmem:[#allocation2 + $0x10] sm:$0xf]
      %v868 = vld [vmem:[#allocation2 + $0x18] sm:$0xf]
      %v869 = vld [vmem:[#allocation2 + $0x1c] sm:$0xf]
      %v870 = vld [vmem:[#allocation2 + $0x24] sm:$0xf]
      %v871 = vld [vmem:[#allocation2 + $0x28] sm:$0xf]
      %v872 = vld [vmem:[#allocation2 + $0x30] sm:$0xf]
      %v873 = vld [vmem:[#allocation2 + $0x34] sm:$0xf]
      %v874 = vld [vmem:[#allocation2 + $0x3c] sm:$0xf]
      %v875 = vld [vmem:[#allocation2 + $0x40] sm:$0xf]
      %v876 = vld [vmem:[#allocation2 + $0x48] sm:$0xf]
      %v877 = vld [vmem:[#allocation2 + $0x4c] sm:$0xf]
      %v878 = vld [vmem:[#allocation2 + $0x54] sm:$0xf]
      %v879 = vld [vmem:[#allocation2 + $0x58] sm:$0xf]
      %v880 = vld [vmem:[#allocation2 + $0x60] sm:$0xf]
      %v881 = vld [vmem:[#allocation2 + $0x64] sm:$0xf]
      %v882 = vld [vmem:[#allocation2 + $0x6c] sm:$0xf]
      %v883 = vld [vmem:[#allocation2 + $0x70] sm:$0xf]
      %v884 = vld [vmem:[#allocation2 + $0x78] sm:$0xf]
      %v885 = vld [vmem:[#allocation2 + $0x7c] sm:$0xf]
      %v886 = vld [vmem:[#allocation2 + $0x84] sm:$0xf]
      %v887 = vld [vmem:[#allocation2 + $0x88] sm:$0xf]
      %v888 = vld [vmem:[#allocation2 + $0x90] sm:$0xf]
      %v889 = vld [vmem:[#allocation2 + $0x94] sm:$0xf]
      %v890 = vld [vmem:[#allocation2 + $0x9c] sm:$0xf]
      %v891 = vld [vmem:[#allocation2 + $0xa0] sm:$0xf]
      %v892 = vld [vmem:[#allocation2 + $0xa8] sm:$0xf]
      %v893 = vld [vmem:[#allocation2 + $0xac] sm:$0xf]
      %v894 = vld [vmem:[#allocation2 + $0xb4] sm:$0xf]
      %v895 = vld [vmem:[#allocation2 + $0xb8] sm:$0xf]
      %v896 = vld [vmem:[#allocation2 + $0x8] sm:$0x1]
      %v897 = vld [vmem:[#allocation2 + $0x14] sm:$0x1]
      %v898 = vld [vmem:[#allocation2 + $0x20] sm:$0x1]
      %v899 = vld [vmem:[#allocation2 + $0x2c] sm:$0x1]
      %v900 = vld [vmem:[#allocation2 + $0x38] sm:$0x1]
      %v901 = vld [vmem:[#allocation2 + $0x44] sm:$0x1]
      %v902 = vld [vmem:[#allocation2 + $0x50] sm:$0x1]
      %v903 = vld [vmem:[#allocation2 + $0x5c] sm:$0x1]
      %v904 = vld [vmem:[#allocation2 + $0x68] sm:$0x1]
      %v905 = vld [vmem:[#allocation2 + $0x74] sm:$0x1]
      %v906 = vld [vmem:[#allocation2 + $0x80] sm:$0x1]
      %v907 = vld [vmem:[#allocation2 + $0x8c] sm:$0x1]
      %v908 = vld [vmem:[#allocation2 + $0x98] sm:$0x1]
      %v909 = vld [vmem:[#allocation2 + $0xa4] sm:$0x1]
      %v910 = vld [vmem:[#allocation2 + $0xb0] sm:$0x1]
      %v911 = vld [vmem:[#allocation2 + $0xbc] sm:$0x1]
      %v912 = vld [vmem:[#allocation2] sm:$0xe]
      %v913 = vld [vmem:[#allocation2 + $0xc] sm:$0xe]
      %v914 = vld [vmem:[#allocation2 + $0x18] sm:$0xe]
      %v915 = vld [vmem:[#allocation2 + $0x24] sm:$0xe]
      %v916 = vld [vmem:[#allocation2 + $0x30] sm:$0xe]
      %v917 = vld [vmem:[#allocation2 + $0x3c] sm:$0xe]
      %v918 = vld [vmem:[#allocation2 + $0x48] sm:$0xe]
      %v919 = vld [vmem:[#allocation2 + $0x54] sm:$0xe]
      %v920 = vld [vmem:[#allocation2 + $0x60] sm:$0xe]
      %v921 = vld [vmem:[#allocation2 + $0x6c] sm:$0xe]
      %v922 = vld [vmem:[#allocation2 + $0x78] sm:$0xe]
      %v923 = vld [vmem:[#allocation2 + $0x84] sm:$0xe]
      %v924 = vld [vmem:[#allocation2 + $0x90] sm:$0xe]
      %v925 = vld [vmem:[#allocation2 + $0x9c] sm:$0xe]
      %v926 = vld [vmem:[#allocation2 + $0xa8] sm:$0xe]
      %v927 = vld [vmem:[#allocation2 + $0xb4] sm:$0xe]
      %v928 = vld [vmem:[%s744] sm:$0xf]
      %v929 = vld [vmem:[%s744 + $0x4] sm:$0xf]
      %v930 = vld [vmem:[%s744 + $0xc] sm:$0xf]
      %v931 = vld [vmem:[%s744 + $0x10] sm:$0xf]
      %v932 = vld [vmem:[%s744 + $0x18] sm:$0xf]
      %v933 = vld [vmem:[%s744 + $0x1c] sm:$0xf]
      %v934 = vld [vmem:[%s744 + $0x24] sm:$0xf]
      %v935 = vld [vmem:[%s744 + $0x28] sm:$0xf]
      %v936 = vld [vmem:[%s744 + $0x30] sm:$0xf]
      %v937 = vld [vmem:[%s744 + $0x34] sm:$0xf]
      %v938 = vld [vmem:[%s744 + $0x3c] sm:$0xf]
      %v939 = vld [vmem:[%s744 + $0x40] sm:$0xf]
      %v940 = vld [vmem:[%s744 + $0x48] sm:$0xf]
      %v941 = vld [vmem:[%s744 + $0x4c] sm:$0xf]
      %v942 = vld [vmem:[%s744 + $0x54] sm:$0xf]
      %v943 = vld [vmem:[%s744 + $0x58] sm:$0xf]
      %v944 = vld [vmem:[%s744 + $0x60] sm:$0xf]
      %v945 = vld [vmem:[%s744 + $0x64] sm:$0xf]
      %v946 = vld [vmem:[%s744 + $0x6c] sm:$0xf]
      %v947 = vld [vmem:[%s744 + $0x70] sm:$0xf]
      %v948 = vld [vmem:[%s744 + $0x78] sm:$0xf]
      %v949 = vld [vmem:[%s744 + $0x7c] sm:$0xf]
      %v950 = vld [vmem:[%s744 + $0x84] sm:$0xf]
      %v951 = vld [vmem:[%s744 + $0x88] sm:$0xf]
      %v952 = vld [vmem:[%s744 + $0x90] sm:$0xf]
      %v953 = vld [vmem:[%s744 + $0x94] sm:$0xf]
      %v954 = vld [vmem:[%s744 + $0x9c] sm:$0xf]
      %v955 = vld [vmem:[%s744 + $0xa0] sm:$0xf]
      %v956 = vld [vmem:[%s744 + $0xa8] sm:$0xf]
      %v957 = vld [vmem:[%s744 + $0xac] sm:$0xf]
      %v958 = vld [vmem:[%s744 + $0xb4] sm:$0xf]
      %v959 = vld [vmem:[%s744 + $0xb8] sm:$0xf]
      %v960 = vld [vmem:[%s744 + $0x8] sm:$0x1]
      %v961 = vld [vmem:[%s744 + $0x14] sm:$0x1]
      %v962 = vld [vmem:[%s744 + $0x20] sm:$0x1]
      %v963 = vld [vmem:[%s744 + $0x2c] sm:$0x1]
      %v964 = vld [vmem:[%s744 + $0x38] sm:$0x1]
      %v965 = vld [vmem:[%s744 + $0x44] sm:$0x1]
      %v966 = vld [vmem:[%s744 + $0x50] sm:$0x1]
      %v967 = vld [vmem:[%s744 + $0x5c] sm:$0x1]
      %v968 = vld [vmem:[%s744 + $0x68] sm:$0x1]
      %v969 = vld [vmem:[%s744 + $0x74] sm:$0x1]
      %v970 = vld [vmem:[%s744 + $0x80] sm:$0x1]
      %v971 = vld [vmem:[%s744 + $0x8c] sm:$0x1]
      %v972 = vld [vmem:[%s744 + $0x98] sm:$0x1]
      %v973 = vld [vmem:[%s744 + $0xa4] sm:$0x1]
      %v974 = vld [vmem:[%s744 + $0xb0] sm:$0x1]
      %v975 = vld [vmem:[%s744 + $0xbc] sm:$0x1]
      %v976 = vld [vmem:[%s744] sm:$0xe]
      %v977 = vld [vmem:[%s744 + $0xc] sm:$0xe]
      %v978 = vld [vmem:[%s744 + $0x18] sm:$0xe]
      %v979 = vld [vmem:[%s744 + $0x24] sm:$0xe]
      %v980 = vld [vmem:[%s744 + $0x30] sm:$0xe]
      %v981 = vld [vmem:[%s744 + $0x3c] sm:$0xe]
      %v982 = vld [vmem:[%s744 + $0x48] sm:$0xe]
      %v983 = vld [vmem:[%s744 + $0x54] sm:$0xe]
      %v984 = vld [vmem:[%s744 + $0x60] sm:$0xe]
      %v985 = vld [vmem:[%s744 + $0x6c] sm:$0xe]
      %v986 = vld [vmem:[%s744 + $0x78] sm:$0xe]
      %v987 = vld [vmem:[%s744 + $0x84] sm:$0xe]
      %v988 = vld [vmem:[%s744 + $0x90] sm:$0xe]
      %v989 = vld [vmem:[%s744 + $0x9c] sm:$0xe]
      %v990 = vld [vmem:[%s744 + $0xa8] sm:$0xe]
      %v991 = vld [vmem:[%s744 + $0xb4] sm:$0xe]
      %s992 = scalar_lea.vmem [#allocation2], 24
      %v993 = vld [vmem:[%s992] sm:$0xf]
      %v994 = vld [vmem:[%s992 + $0x4] sm:$0xf]
      %v995 = vld [vmem:[%s992 + $0xc] sm:$0xf]
      %v996 = vld [vmem:[%s992 + $0x10] sm:$0xf]
      %v997 = vld [vmem:[%s992 + $0x18] sm:$0xf]
      %v998 = vld [vmem:[%s992 + $0x1c] sm:$0xf]
      %v999 = vld [vmem:[%s992 + $0x24] sm:$0xf]
      %v1000 = vld [vmem:[%s992 + $0x28] sm:$0xf]
      %v1001 = vld [vmem:[%s992 + $0x30] sm:$0xf]
      %v1002 = vld [vmem:[%s992 + $0x34] sm:$0xf]
      %v1003 = vld [vmem:[%s992 + $0x3c] sm:$0xf]
      %v1004 = vld [vmem:[%s992 + $0x40] sm:$0xf]
      %v1005 = vld [vmem:[%s992 + $0x48] sm:$0xf]
      %v1006 = vld [vmem:[%s992 + $0x4c] sm:$0xf]
      %v1007 = vld [vmem:[%s992 + $0x54] sm:$0xf]
      %v1008 = vld [vmem:[%s992 + $0x58] sm:$0xf]
      %v1009 = vld [vmem:[%s992 + $0x60] sm:$0xf]
      %v1010 = vld [vmem:[%s992 + $0x64] sm:$0xf]
      %v1011 = vld [vmem:[%s992 + $0x6c] sm:$0xf]
      %v1012 = vld [vmem:[%s992 + $0x70] sm:$0xf]
      %v1013 = vld [vmem:[%s992 + $0x78] sm:$0xf]
      %v1014 = vld [vmem:[%s992 + $0x7c] sm:$0xf]
      %v1015 = vld [vmem:[%s992 + $0x84] sm:$0xf]
      %v1016 = vld [vmem:[%s992 + $0x88] sm:$0xf]
      %v1017 = vld [vmem:[%s992 + $0x90] sm:$0xf]
      %v1018 = vld [vmem:[%s992 + $0x94] sm:$0xf]
      %v1019 = vld [vmem:[%s992 + $0x9c] sm:$0xf]
      %v1020 = vld [vmem:[%s992 + $0xa0] sm:$0xf]
      %v1021 = vld [vmem:[%s992 + $0xa8] sm:$0xf]
      %v1022 = vld [vmem:[%s992 + $0xac] sm:$0xf]
      %v1023 = vld [vmem:[%s992 + $0xb4] sm:$0xf]
      %v1024 = vld [vmem:[%s992 + $0xb8] sm:$0xf]
      %v1025 = vld [vmem:[%s992 + $0x8] sm:$0x1]
      %v1026 = vld [vmem:[%s992 + $0x14] sm:$0x1]
      %v1027 = vld [vmem:[%s992 + $0x20] sm:$0x1]
      %v1028 = vld [vmem:[%s992 + $0x2c] sm:$0x1]
      %v1029 = vld [vmem:[%s992 + $0x38] sm:$0x1]
      %v1030 = vld [vmem:[%s992 + $0x44] sm:$0x1]
      %v1031 = vld [vmem:[%s992 + $0x50] sm:$0x1]
      %v1032 = vld [vmem:[%s992 + $0x5c] sm:$0x1]
      %v1033 = vld [vmem:[%s992 + $0x68] sm:$0x1]
      %v1034 = vld [vmem:[%s992 + $0x74] sm:$0x1]
      %v1035 = vld [vmem:[%s992 + $0x80] sm:$0x1]
      %v1036 = vld [vmem:[%s992 + $0x8c] sm:$0x1]
      %v1037 = vld [vmem:[%s992 + $0x98] sm:$0x1]
      %v1038 = vld [vmem:[%s992 + $0xa4] sm:$0x1]
      %v1039 = vld [vmem:[%s992 + $0xb0] sm:$0x1]
      %v1040 = vld [vmem:[%s992 + $0xbc] sm:$0x1]
      %v1041 = vld [vmem:[%s992] sm:$0xe]
      %v1042 = vld [vmem:[%s992 + $0xc] sm:$0xe]
      %v1043 = vld [vmem:[%s992 + $0x18] sm:$0xe]
      %v1044 = vld [vmem:[%s992 + $0x24] sm:$0xe]
      %v1045 = vld [vmem:[%s992 + $0x30] sm:$0xe]
      %v1046 = vld [vmem:[%s992 + $0x3c] sm:$0xe]
      %v1047 = vld [vmem:[%s992 + $0x48] sm:$0xe]
      %v1048 = vld [vmem:[%s992 + $0x54] sm:$0xe]
      %v1049 = vld [vmem:[%s992 + $0x60] sm:$0xe]
      %v1050 = vld [vmem:[%s992 + $0x6c] sm:$0xe]
      %v1051 = vld [vmem:[%s992 + $0x78] sm:$0xe]
      %v1052 = vld [vmem:[%s992 + $0x84] sm:$0xe]
      %v1053 = vld [vmem:[%s992 + $0x90] sm:$0xe]
      %v1054 = vld [vmem:[%s992 + $0x9c] sm:$0xe]
      %v1055 = vld [vmem:[%s992 + $0xa8] sm:$0xe]
      %v1056 = vld [vmem:[%s992 + $0xb4] sm:$0xe]
      %v1089 = vunpack.c.l.b16 %v864
      %v1090 = vunpack.c.l.b16 %v865
      %v1091 = vunpack.c.l.b16 %v866
      %v1092 = vunpack.c.l.b16 %v867
      %v1093 = vunpack.c.l.b16 %v868
      %v1094 = vunpack.c.l.b16 %v869
      %v1095 = vunpack.c.l.b16 %v870
      %v1096 = vunpack.c.l.b16 %v871
      %v1097 = vunpack.c.l.b16 %v872
      %v1098 = vunpack.c.l.b16 %v873
      %v1099 = vunpack.c.l.b16 %v874
      %v1100 = vunpack.c.l.b16 %v875
      %v1101 = vunpack.c.l.b16 %v876
      %v1102 = vunpack.c.l.b16 %v877
      %v1103 = vunpack.c.l.b16 %v878
      %v1104 = vunpack.c.l.b16 %v879
      %v1105 = vunpack.c.l.b16 %v880
      %v1106 = vunpack.c.l.b16 %v881
      %v1107 = vunpack.c.l.b16 %v882
      %v1108 = vunpack.c.l.b16 %v883
      %v1109 = vunpack.c.l.b16 %v884
      %v1110 = vunpack.c.l.b16 %v885
      %v1111 = vunpack.c.l.b16 %v886
      %v1112 = vunpack.c.l.b16 %v887
      %v1113 = vunpack.c.l.b16 %v888
      %v1114 = vunpack.c.l.b16 %v889
      %v1115 = vunpack.c.l.b16 %v890
      %v1116 = vunpack.c.l.b16 %v891
      %v1117 = vunpack.c.l.b16 %v892
      %v1118 = vunpack.c.l.b16 %v893
      %v1119 = vunpack.c.l.b16 %v894
      %v1120 = vunpack.c.l.b16 %v895
      %v1121 = vpack.c.b16 %v1090, %v1089
      %v1122 = vpack.c.b16 %v1092, %v1091
      %v1123 = vpack.c.b16 %v1094, %v1093
      %v1124 = vpack.c.b16 %v1096, %v1095
      %v1125 = vpack.c.b16 %v1098, %v1097
      %v1126 = vpack.c.b16 %v1100, %v1099
      %v1127 = vpack.c.b16 %v1102, %v1101
      %v1128 = vpack.c.b16 %v1104, %v1103
      %v1129 = vpack.c.b16 %v1106, %v1105
      %v1130 = vpack.c.b16 %v1108, %v1107
      %v1131 = vpack.c.b16 %v1110, %v1109
      %v1132 = vpack.c.b16 %v1112, %v1111
      %v1133 = vpack.c.b16 %v1114, %v1113
      %v1134 = vpack.c.b16 %v1116, %v1115
      %v1135 = vpack.c.b16 %v1118, %v1117
      %v1136 = vpack.c.b16 %v1120, %v1119
      %v1153 = vunpack.c.l.b16 %v896
      %v1154 = vunpack.c.l.b16 %v897
      %v1155 = vunpack.c.l.b16 %v898
      %v1156 = vunpack.c.l.b16 %v899
      %v1157 = vunpack.c.l.b16 %v900
      %v1158 = vunpack.c.l.b16 %v901
      %v1159 = vunpack.c.l.b16 %v902
      %v1160 = vunpack.c.l.b16 %v903
      %v1161 = vunpack.c.l.b16 %v904
      %v1162 = vunpack.c.l.b16 %v905
      %v1163 = vunpack.c.l.b16 %v906
      %v1164 = vunpack.c.l.b16 %v907
      %v1165 = vunpack.c.l.b16 %v908
      %v1166 = vunpack.c.l.b16 %v909
      %v1167 = vunpack.c.l.b16 %v910
      %v1168 = vunpack.c.l.b16 %v911
      %v1169 = vpack.c.b16 %v1153, %v1153
      %v1170 = vpack.c.b16 %v1154, %v1154
      %v1171 = vpack.c.b16 %v1155, %v1155
      %v1172 = vpack.c.b16 %v1156, %v1156
      %v1173 = vpack.c.b16 %v1157, %v1157
      %v1174 = vpack.c.b16 %v1158, %v1158
      %v1175 = vpack.c.b16 %v1159, %v1159
      %v1176 = vpack.c.b16 %v1160, %v1160
      %v1177 = vpack.c.b16 %v1161, %v1161
      %v1178 = vpack.c.b16 %v1162, %v1162
      %v1179 = vpack.c.b16 %v1163, %v1163
      %v1180 = vpack.c.b16 %v1164, %v1164
      %v1181 = vpack.c.b16 %v1165, %v1165
      %v1182 = vpack.c.b16 %v1166, %v1166
      %v1183 = vpack.c.b16 %v1167, %v1167
      %v1184 = vpack.c.b16 %v1168, %v1168
      %vm1185 = vsmask.f32 7424
      %v1187 = vshrl.u32 %v1121, 16
      %v1189 = vshll.u32 %v1121, 16
      %v1191 = vrot.slane %v1189, 1
      %v1192 = vor.u32 %v1187, %v1191
      %v1194 = vshll.u32 %v1169, 16
      %v1196 = vrot.slane %v1194, 1
      %v1197 = vsel %vm1185, %v1192, %v1196
      %v1199 = vshrl.u32 %v1122, 16
      %v1201 = vshll.u32 %v1122, 16
      %v1203 = vrot.slane %v1201, 1
      %v1204 = vor.u32 %v1199, %v1203
      %v1206 = vshll.u32 %v1170, 16
      %v1208 = vrot.slane %v1206, 1
      %v1209 = vsel %vm1185, %v1204, %v1208
      %v1211 = vshrl.u32 %v1123, 16
      %v1213 = vshll.u32 %v1123, 16
      %v1215 = vrot.slane %v1213, 1
      %v1216 = vor.u32 %v1211, %v1215
      %v1218 = vshll.u32 %v1171, 16
      %v1220 = vrot.slane %v1218, 1
      %v1221 = vsel %vm1185, %v1216, %v1220
      %v1223 = vshrl.u32 %v1124, 16
      %v1225 = vshll.u32 %v1124, 16
      %v1227 = vrot.slane %v1225, 1
      %v1228 = vor.u32 %v1223, %v1227
      %v1230 = vshll.u32 %v1172, 16
      %v1232 = vrot.slane %v1230, 1
      %v1233 = vsel %vm1185, %v1228, %v1232
      %v1235 = vshrl.u32 %v1125, 16
      %v1237 = vshll.u32 %v1125, 16
      %v1239 = vrot.slane %v1237, 1
      %v1240 = vor.u32 %v1235, %v1239
      %v1242 = vshll.u32 %v1173, 16
      %v1244 = vrot.slane %v1242, 1
      %v1245 = vsel %vm1185, %v1240, %v1244
      %v1247 = vshrl.u32 %v1126, 16
      %v1249 = vshll.u32 %v1126, 16
      %v1251 = vrot.slane %v1249, 1
      %v1252 = vor.u32 %v1247, %v1251
      %v1254 = vshll.u32 %v1174, 16
      %v1256 = vrot.slane %v1254, 1
      %v1257 = vsel %vm1185, %v1252, %v1256
      %v1259 = vshrl.u32 %v1127, 16
      %v1261 = vshll.u32 %v1127, 16
      %v1263 = vrot.slane %v1261, 1
      %v1264 = vor.u32 %v1259, %v1263
      %v1266 = vshll.u32 %v1175, 16
      %v1268 = vrot.slane %v1266, 1
      %v1269 = vsel %vm1185, %v1264, %v1268
      %v1271 = vshrl.u32 %v1128, 16
      %v1273 = vshll.u32 %v1128, 16
      %v1275 = vrot.slane %v1273, 1
      %v1276 = vor.u32 %v1271, %v1275
      %v1278 = vshll.u32 %v1176, 16
      %v1280 = vrot.slane %v1278, 1
      %v1281 = vsel %vm1185, %v1276, %v1280
      %v1283 = vshrl.u32 %v1129, 16
      %v1285 = vshll.u32 %v1129, 16
      %v1287 = vrot.slane %v1285, 1
      %v1288 = vor.u32 %v1283, %v1287
      %v1290 = vshll.u32 %v1177, 16
      %v1292 = vrot.slane %v1290, 1
      %v1293 = vsel %vm1185, %v1288, %v1292
      %v1295 = vshrl.u32 %v1130, 16
      %v1297 = vshll.u32 %v1130, 16
      %v1299 = vrot.slane %v1297, 1
      %v1300 = vor.u32 %v1295, %v1299
      %v1302 = vshll.u32 %v1178, 16
      %v1304 = vrot.slane %v1302, 1
      %v1305 = vsel %vm1185, %v1300, %v1304
      %v1307 = vshrl.u32 %v1131, 16
      %v1309 = vshll.u32 %v1131, 16
      %v1311 = vrot.slane %v1309, 1
      %v1312 = vor.u32 %v1307, %v1311
      %v1314 = vshll.u32 %v1179, 16
      %v1316 = vrot.slane %v1314, 1
      %v1317 = vsel %vm1185, %v1312, %v1316
      %v1319 = vshrl.u32 %v1132, 16
      %v1321 = vshll.u32 %v1132, 16
      %v1323 = vrot.slane %v1321, 1
      %v1324 = vor.u32 %v1319, %v1323
      %v1326 = vshll.u32 %v1180, 16
      %v1328 = vrot.slane %v1326, 1
      %v1329 = vsel %vm1185, %v1324, %v1328
      %v1331 = vshrl.u32 %v1133, 16
      %v1333 = vshll.u32 %v1133, 16
      %v1335 = vrot.slane %v1333, 1
      %v1336 = vor.u32 %v1331, %v1335
      %v1338 = vshll.u32 %v1181, 16
      %v1340 = vrot.slane %v1338, 1
      %v1341 = vsel %vm1185, %v1336, %v1340
      %v1343 = vshrl.u32 %v1134, 16
      %v1345 = vshll.u32 %v1134, 16
      %v1347 = vrot.slane %v1345, 1
      %v1348 = vor.u32 %v1343, %v1347
      %v1350 = vshll.u32 %v1182, 16
      %v1352 = vrot.slane %v1350, 1
      %v1353 = vsel %vm1185, %v1348, %v1352
      %v1355 = vshrl.u32 %v1135, 16
      %v1357 = vshll.u32 %v1135, 16
      %v1359 = vrot.slane %v1357, 1
      %v1360 = vor.u32 %v1355, %v1359
      %v1362 = vshll.u32 %v1183, 16
      %v1364 = vrot.slane %v1362, 1
      %v1365 = vsel %vm1185, %v1360, %v1364
      %v1367 = vshrl.u32 %v1136, 16
      %v1369 = vshll.u32 %v1136, 16
      %v1371 = vrot.slane %v1369, 1
      %v1372 = vor.u32 %v1367, %v1371
      %v1374 = vshll.u32 %v1184, 16
      %v1376 = vrot.slane %v1374, 1
      %v1377 = vsel %vm1185, %v1372, %v1376
      %1378 = vrot.lane.b32.xlu0 %v1197, 4
      %v1379 = vpop.permute.xlu0 %1378
      %1380 = vrot.lane.b32.xlu0 %v1209, 4
      %v1381 = vpop.permute.xlu0 %1380
      %1382 = vrot.lane.b32.xlu0 %v1221, 4
      %v1383 = vpop.permute.xlu0 %1382
      %1384 = vrot.lane.b32.xlu0 %v1233, 4
      %v1385 = vpop.permute.xlu0 %1384
      %1386 = vrot.lane.b32.xlu0 %v1245, 4
      %v1387 = vpop.permute.xlu0 %1386
      %1388 = vrot.lane.b32.xlu0 %v1257, 4
      %v1389 = vpop.permute.xlu0 %1388
      %1390 = vrot.lane.b32.xlu0 %v1269, 4
      %v1391 = vpop.permute.xlu0 %1390
      %1392 = vrot.lane.b32.xlu0 %v1281, 4
      %v1393 = vpop.permute.xlu0 %1392
      %1394 = vrot.lane.b32.xlu0 %v1293, 4
      %v1395 = vpop.permute.xlu0 %1394
      %1396 = vrot.lane.b32.xlu0 %v1305, 4
      %v1397 = vpop.permute.xlu0 %1396
      %1398 = vrot.lane.b32.xlu0 %v1317, 4
      %v1399 = vpop.permute.xlu0 %1398
      %1400 = vrot.lane.b32.xlu0 %v1329, 4
      %v1401 = vpop.permute.xlu0 %1400
      %1402 = vrot.lane.b32.xlu0 %v1341, 4
      %v1403 = vpop.permute.xlu0 %1402
      %1404 = vrot.lane.b32.xlu0 %v1353, 4
      %v1405 = vpop.permute.xlu0 %1404
      %1406 = vrot.lane.b32.xlu0 %v1365, 4
      %v1407 = vpop.permute.xlu0 %1406
      %1408 = vrot.lane.b32.xlu0 %v1377, 4
      %v1409 = vpop.permute.xlu0 %1408
      %v1426 = vunpack.c.l.b16 %v912
      %v1427 = vunpack.c.l.b16 %v913
      %v1428 = vunpack.c.l.b16 %v914
      %v1429 = vunpack.c.l.b16 %v915
      %v1430 = vunpack.c.l.b16 %v916
      %v1431 = vunpack.c.l.b16 %v917
      %v1432 = vunpack.c.l.b16 %v918
      %v1433 = vunpack.c.l.b16 %v919
      %v1434 = vunpack.c.l.b16 %v920
      %v1435 = vunpack.c.l.b16 %v921
      %v1436 = vunpack.c.l.b16 %v922
      %v1437 = vunpack.c.l.b16 %v923
      %v1438 = vunpack.c.l.b16 %v924
      %v1439 = vunpack.c.l.b16 %v925
      %v1440 = vunpack.c.l.b16 %v926
      %v1441 = vunpack.c.l.b16 %v927
      %v1442 = vpack.c.b16 %v1090, %v1426
      %v1443 = vpack.c.b16 %v1092, %v1427
      %v1444 = vpack.c.b16 %v1094, %v1428
      %v1445 = vpack.c.b16 %v1096, %v1429
      %v1446 = vpack.c.b16 %v1098, %v1430
      %v1447 = vpack.c.b16 %v1100, %v1431
      %v1448 = vpack.c.b16 %v1102, %v1432
      %v1449 = vpack.c.b16 %v1104, %v1433
      %v1450 = vpack.c.b16 %v1106, %v1434
      %v1451 = vpack.c.b16 %v1108, %v1435
      %v1452 = vpack.c.b16 %v1110, %v1436
      %v1453 = vpack.c.b16 %v1112, %v1437
      %v1454 = vpack.c.b16 %v1114, %v1438
      %v1455 = vpack.c.b16 %v1116, %v1439
      %v1456 = vpack.c.b16 %v1118, %v1440
      %v1457 = vpack.c.b16 %v1120, %v1441
      %vm1458 = vcmask 1046528
      %v1459 = vrot.slane %v1442, 1
      %v1460 = vrot.slane %v1169, 1
      %v1461 = vsel %vm1458, %v1459, %v1460
      %v1462 = vrot.slane %v1443, 1
      %v1463 = vrot.slane %v1170, 1
      %v1464 = vsel %vm1458, %v1462, %v1463
      %v1465 = vrot.slane %v1444, 1
      %v1466 = vrot.slane %v1171, 1
      %v1467 = vsel %vm1458, %v1465, %v1466
      %v1468 = vrot.slane %v1445, 1
      %v1469 = vrot.slane %v1172, 1
      %v1470 = vsel %vm1458, %v1468, %v1469
      %v1471 = vrot.slane %v1446, 1
      %v1472 = vrot.slane %v1173, 1
      %v1473 = vsel %vm1458, %v1471, %v1472
      %v1474 = vrot.slane %v1447, 1
      %v1475 = vrot.slane %v1174, 1
      %v1476 = vsel %vm1458, %v1474, %v1475
      %v1477 = vrot.slane %v1448, 1
      %v1478 = vrot.slane %v1175, 1
      %v1479 = vsel %vm1458, %v1477, %v1478
      %v1480 = vrot.slane %v1449, 1
      %v1481 = vrot.slane %v1176, 1
      %v1482 = vsel %vm1458, %v1480, %v1481
      %v1483 = vrot.slane %v1450, 1
      %v1484 = vrot.slane %v1177, 1
      %v1485 = vsel %vm1458, %v1483, %v1484
      %v1486 = vrot.slane %v1451, 1
      %v1487 = vrot.slane %v1178, 1
      %v1488 = vsel %vm1458, %v1486, %v1487
      %v1489 = vrot.slane %v1452, 1
      %v1490 = vrot.slane %v1179, 1
      %v1491 = vsel %vm1458, %v1489, %v1490
      %v1492 = vrot.slane %v1453, 1
      %v1493 = vrot.slane %v1180, 1
      %v1494 = vsel %vm1458, %v1492, %v1493
      %v1495 = vrot.slane %v1454, 1
      %v1496 = vrot.slane %v1181, 1
      %v1497 = vsel %vm1458, %v1495, %v1496
      %v1498 = vrot.slane %v1455, 1
      %v1499 = vrot.slane %v1182, 1
      %v1500 = vsel %vm1458, %v1498, %v1499
      %v1501 = vrot.slane %v1456, 1
      %v1502 = vrot.slane %v1183, 1
      %v1503 = vsel %vm1458, %v1501, %v1502
      %v1504 = vrot.slane %v1457, 1
      %v1505 = vrot.slane %v1184, 1
      %v1506 = vsel %vm1458, %v1504, %v1505
      %1507 = vrot.lane.b32.xlu0 %v1461, 8
      %v1508 = vpop.permute.xlu0 %1507
      %1509 = vrot.lane.b32.xlu0 %v1464, 8
      %v1510 = vpop.permute.xlu0 %1509
      %1511 = vrot.lane.b32.xlu0 %v1467, 8
      %v1512 = vpop.permute.xlu0 %1511
      %1513 = vrot.lane.b32.xlu0 %v1470, 8
      %v1514 = vpop.permute.xlu0 %1513
      %1515 = vrot.lane.b32.xlu0 %v1473, 8
      %v1516 = vpop.permute.xlu0 %1515
      %1517 = vrot.lane.b32.xlu0 %v1476, 8
      %v1518 = vpop.permute.xlu0 %1517
      %1519 = vrot.lane.b32.xlu0 %v1479, 8
      %v1520 = vpop.permute.xlu0 %1519
      %1521 = vrot.lane.b32.xlu0 %v1482, 8
      %v1522 = vpop.permute.xlu0 %1521
      %1523 = vrot.lane.b32.xlu0 %v1485, 8
      %v1524 = vpop.permute.xlu0 %1523
      %1525 = vrot.lane.b32.xlu0 %v1488, 8
      %v1526 = vpop.permute.xlu0 %1525
      %1527 = vrot.lane.b32.xlu0 %v1491, 8
      %v1528 = vpop.permute.xlu0 %1527
      %1529 = vrot.lane.b32.xlu0 %v1494, 8
      %v1530 = vpop.permute.xlu0 %1529
      %1531 = vrot.lane.b32.xlu0 %v1497, 8
      %v1532 = vpop.permute.xlu0 %1531
      %1533 = vrot.lane.b32.xlu0 %v1500, 8
      %v1534 = vpop.permute.xlu0 %1533
      %1535 = vrot.lane.b32.xlu0 %v1503, 8
      %v1536 = vpop.permute.xlu0 %1535
      %1537 = vrot.lane.b32.xlu0 %v1506, 8
      %v1538 = vpop.permute.xlu0 %1537
      %v1571 = vunpack.c.l.b16 %v928
      %v1572 = vunpack.c.l.b16 %v929
      %v1573 = vunpack.c.l.b16 %v930
      %v1574 = vunpack.c.l.b16 %v931
      %v1575 = vunpack.c.l.b16 %v932
      %v1576 = vunpack.c.l.b16 %v933
      %v1577 = vunpack.c.l.b16 %v934
      %v1578 = vunpack.c.l.b16 %v935
      %v1579 = vunpack.c.l.b16 %v936
      %v1580 = vunpack.c.l.b16 %v937
      %v1581 = vunpack.c.l.b16 %v938
      %v1582 = vunpack.c.l.b16 %v939
      %v1583 = vunpack.c.l.b16 %v940
      %v1584 = vunpack.c.l.b16 %v941
      %v1585 = vunpack.c.l.b16 %v942
      %v1586 = vunpack.c.l.b16 %v943
      %v1587 = vunpack.c.l.b16 %v944
      %v1588 = vunpack.c.l.b16 %v945
      %v1589 = vunpack.c.l.b16 %v946
      %v1590 = vunpack.c.l.b16 %v947
      %v1591 = vunpack.c.l.b16 %v948
      %v1592 = vunpack.c.l.b16 %v949
      %v1593 = vunpack.c.l.b16 %v950
      %v1594 = vunpack.c.l.b16 %v951
      %v1595 = vunpack.c.l.b16 %v952
      %v1596 = vunpack.c.l.b16 %v953
      %v1597 = vunpack.c.l.b16 %v954
      %v1598 = vunpack.c.l.b16 %v955
      %v1599 = vunpack.c.l.b16 %v956
      %v1600 = vunpack.c.l.b16 %v957
      %v1601 = vunpack.c.l.b16 %v958
      %v1602 = vunpack.c.l.b16 %v959
      %v1603 = vpack.c.b16 %v1572, %v1571
      %v1604 = vpack.c.b16 %v1574, %v1573
      %v1605 = vpack.c.b16 %v1576, %v1575
      %v1606 = vpack.c.b16 %v1578, %v1577
      %v1607 = vpack.c.b16 %v1580, %v1579
      %v1608 = vpack.c.b16 %v1582, %v1581
      %v1609 = vpack.c.b16 %v1584, %v1583
      %v1610 = vpack.c.b16 %v1586, %v1585
      %v1611 = vpack.c.b16 %v1588, %v1587
      %v1612 = vpack.c.b16 %v1590, %v1589
      %v1613 = vpack.c.b16 %v1592, %v1591
      %v1614 = vpack.c.b16 %v1594, %v1593
      %v1615 = vpack.c.b16 %v1596, %v1595
      %v1616 = vpack.c.b16 %v1598, %v1597
      %v1617 = vpack.c.b16 %v1600, %v1599
      %v1618 = vpack.c.b16 %v1602, %v1601
      %1619 = vrot.lane.b32.xlu0 %v1603, 12
      %v1620 = vpop.permute.xlu0 %1619
      %1621 = vrot.lane.b32.xlu0 %v1604, 12
      %v1622 = vpop.permute.xlu0 %1621
      %1623 = vrot.lane.b32.xlu0 %v1605, 12
      %v1624 = vpop.permute.xlu0 %1623
      %1625 = vrot.lane.b32.xlu0 %v1606, 12
      %v1626 = vpop.permute.xlu0 %1625
      %1627 = vrot.lane.b32.xlu0 %v1607, 12
      %v1628 = vpop.permute.xlu0 %1627
      %1629 = vrot.lane.b32.xlu0 %v1608, 12
      %v1630 = vpop.permute.xlu0 %1629
      %1631 = vrot.lane.b32.xlu0 %v1609, 12
      %v1632 = vpop.permute.xlu0 %1631
      %1633 = vrot.lane.b32.xlu0 %v1610, 12
      %v1634 = vpop.permute.xlu0 %1633
      %1635 = vrot.lane.b32.xlu0 %v1611, 12
      %v1636 = vpop.permute.xlu0 %1635
      %1637 = vrot.lane.b32.xlu0 %v1612, 12
      %v1638 = vpop.permute.xlu0 %1637
      %1639 = vrot.lane.b32.xlu0 %v1613, 12
      %v1640 = vpop.permute.xlu0 %1639
      %1641 = vrot.lane.b32.xlu0 %v1614, 12
      %v1642 = vpop.permute.xlu0 %1641
      %1643 = vrot.lane.b32.xlu0 %v1615, 12
      %v1644 = vpop.permute.xlu0 %1643
      %1645 = vrot.lane.b32.xlu0 %v1616, 12
      %v1646 = vpop.permute.xlu0 %1645
      %1647 = vrot.lane.b32.xlu0 %v1617, 12
      %v1648 = vpop.permute.xlu0 %1647
      %1649 = vrot.lane.b32.xlu0 %v1618, 12
      %v1650 = vpop.permute.xlu0 %1649
      %v1667 = vunpack.c.l.b16 %v960
      %v1668 = vunpack.c.l.b16 %v961
      %v1669 = vunpack.c.l.b16 %v962
      %v1670 = vunpack.c.l.b16 %v963
      %v1671 = vunpack.c.l.b16 %v964
      %v1672 = vunpack.c.l.b16 %v965
      %v1673 = vunpack.c.l.b16 %v966
      %v1674 = vunpack.c.l.b16 %v967
      %v1675 = vunpack.c.l.b16 %v968
      %v1676 = vunpack.c.l.b16 %v969
      %v1677 = vunpack.c.l.b16 %v970
      %v1678 = vunpack.c.l.b16 %v971
      %v1679 = vunpack.c.l.b16 %v972
      %v1680 = vunpack.c.l.b16 %v973
      %v1681 = vunpack.c.l.b16 %v974
      %v1682 = vunpack.c.l.b16 %v975
      %v1683 = vpack.c.b16 %v1667, %v1667
      %v1684 = vpack.c.b16 %v1668, %v1668
      %v1685 = vpack.c.b16 %v1669, %v1669
      %v1686 = vpack.c.b16 %v1670, %v1670
      %v1687 = vpack.c.b16 %v1671, %v1671
      %v1688 = vpack.c.b16 %v1672, %v1672
      %v1689 = vpack.c.b16 %v1673, %v1673
      %v1690 = vpack.c.b16 %v1674, %v1674
      %v1691 = vpack.c.b16 %v1675, %v1675
      %v1692 = vpack.c.b16 %v1676, %v1676
      %v1693 = vpack.c.b16 %v1677, %v1677
      %v1694 = vpack.c.b16 %v1678, %v1678
      %v1695 = vpack.c.b16 %v1679, %v1679
      %v1696 = vpack.c.b16 %v1680, %v1680
      %v1697 = vpack.c.b16 %v1681, %v1681
      %v1698 = vpack.c.b16 %v1682, %v1682
      %v1700 = vshrl.u32 %v1603, 16
      %v1702 = vshll.u32 %v1603, 16
      %v1704 = vrot.slane %v1702, 1
      %v1705 = vor.u32 %v1700, %v1704
      %v1707 = vshll.u32 %v1683, 16
      %v1709 = vrot.slane %v1707, 1
      %v1710 = vsel %vm1185, %v1705, %v1709
      %v1712 = vshrl.u32 %v1604, 16
      %v1714 = vshll.u32 %v1604, 16
      %v1716 = vrot.slane %v1714, 1
      %v1717 = vor.u32 %v1712, %v1716
      %v1719 = vshll.u32 %v1684, 16
      %v1721 = vrot.slane %v1719, 1
      %v1722 = vsel %vm1185, %v1717, %v1721
      %v1724 = vshrl.u32 %v1605, 16
      %v1726 = vshll.u32 %v1605, 16
      %v1728 = vrot.slane %v1726, 1
      %v1729 = vor.u32 %v1724, %v1728
      %v1731 = vshll.u32 %v1685, 16
      %v1733 = vrot.slane %v1731, 1
      %v1734 = vsel %vm1185, %v1729, %v1733
      %v1736 = vshrl.u32 %v1606, 16
      %v1738 = vshll.u32 %v1606, 16
      %v1740 = vrot.slane %v1738, 1
      %v1741 = vor.u32 %v1736, %v1740
      %v1743 = vshll.u32 %v1686, 16
      %v1745 = vrot.slane %v1743, 1
      %v1746 = vsel %vm1185, %v1741, %v1745
      %v1748 = vshrl.u32 %v1607, 16
      %v1750 = vshll.u32 %v1607, 16
      %v1752 = vrot.slane %v1750, 1
      %v1753 = vor.u32 %v1748, %v1752
      %v1755 = vshll.u32 %v1687, 16
      %v1757 = vrot.slane %v1755, 1
      %v1758 = vsel %vm1185, %v1753, %v1757
      %v1760 = vshrl.u32 %v1608, 16
      %v1762 = vshll.u32 %v1608, 16
      %v1764 = vrot.slane %v1762, 1
      %v1765 = vor.u32 %v1760, %v1764
      %v1767 = vshll.u32 %v1688, 16
      %v1769 = vrot.slane %v1767, 1
      %v1770 = vsel %vm1185, %v1765, %v1769
      %v1772 = vshrl.u32 %v1609, 16
      %v1774 = vshll.u32 %v1609, 16
      %v1776 = vrot.slane %v1774, 1
      %v1777 = vor.u32 %v1772, %v1776
      %v1779 = vshll.u32 %v1689, 16
      %v1781 = vrot.slane %v1779, 1
      %v1782 = vsel %vm1185, %v1777, %v1781
      %v1784 = vshrl.u32 %v1610, 16
      %v1786 = vshll.u32 %v1610, 16
      %v1788 = vrot.slane %v1786, 1
      %v1789 = vor.u32 %v1784, %v1788
      %v1791 = vshll.u32 %v1690, 16
      %v1793 = vrot.slane %v1791, 1
      %v1794 = vsel %vm1185, %v1789, %v1793
      %v1796 = vshrl.u32 %v1611, 16
      %v1798 = vshll.u32 %v1611, 16
      %v1800 = vrot.slane %v1798, 1
      %v1801 = vor.u32 %v1796, %v1800
      %v1803 = vshll.u32 %v1691, 16
      %v1805 = vrot.slane %v1803, 1
      %v1806 = vsel %vm1185, %v1801, %v1805
      %v1808 = vshrl.u32 %v1612, 16
      %v1810 = vshll.u32 %v1612, 16
      %v1812 = vrot.slane %v1810, 1
      %v1813 = vor.u32 %v1808, %v1812
      %v1815 = vshll.u32 %v1692, 16
      %v1817 = vrot.slane %v1815, 1
      %v1818 = vsel %vm1185, %v1813, %v1817
      %v1820 = vshrl.u32 %v1613, 16
      %v1822 = vshll.u32 %v1613, 16
      %v1824 = vrot.slane %v1822, 1
      %v1825 = vor.u32 %v1820, %v1824
      %v1827 = vshll.u32 %v1693, 16
      %v1829 = vrot.slane %v1827, 1
      %v1830 = vsel %vm1185, %v1825, %v1829
      %v1832 = vshrl.u32 %v1614, 16
      %v1834 = vshll.u32 %v1614, 16
      %v1836 = vrot.slane %v1834, 1
      %v1837 = vor.u32 %v1832, %v1836
      %v1839 = vshll.u32 %v1694, 16
      %v1841 = vrot.slane %v1839, 1
      %v1842 = vsel %vm1185, %v1837, %v1841
      %v1844 = vshrl.u32 %v1615, 16
      %v1846 = vshll.u32 %v1615, 16
      %v1848 = vrot.slane %v1846, 1
      %v1849 = vor.u32 %v1844, %v1848
      %v1851 = vshll.u32 %v1695, 16
      %v1853 = vrot.slane %v1851, 1
      %v1854 = vsel %vm1185, %v1849, %v1853
      %v1856 = vshrl.u32 %v1616, 16
      %v1858 = vshll.u32 %v1616, 16
      %v1860 = vrot.slane %v1858, 1
      %v1861 = vor.u32 %v1856, %v1860
      %v1863 = vshll.u32 %v1696, 16
      %v1865 = vrot.slane %v1863, 1
      %v1866 = vsel %vm1185, %v1861, %v1865
      %v1868 = vshrl.u32 %v1617, 16
      %v1870 = vshll.u32 %v1617, 16
      %v1872 = vrot.slane %v1870, 1
      %v1873 = vor.u32 %v1868, %v1872
      %v1875 = vshll.u32 %v1697, 16
      %v1877 = vrot.slane %v1875, 1
      %v1878 = vsel %vm1185, %v1873, %v1877
      %v1880 = vshrl.u32 %v1618, 16
      %v1882 = vshll.u32 %v1618, 16
      %v1884 = vrot.slane %v1882, 1
      %v1885 = vor.u32 %v1880, %v1884
      %v1887 = vshll.u32 %v1698, 16
      %v1889 = vrot.slane %v1887, 1
      %v1890 = vsel %vm1185, %v1885, %v1889
      %1891 = vrot.lane.b32.xlu0 %v1710, 16
      %v1892 = vpop.permute.xlu0 %1891
      %1893 = vrot.lane.b32.xlu0 %v1722, 16
      %v1894 = vpop.permute.xlu0 %1893
      %1895 = vrot.lane.b32.xlu0 %v1734, 16
      %v1896 = vpop.permute.xlu0 %1895
      %1897 = vrot.lane.b32.xlu0 %v1746, 16
      %v1898 = vpop.permute.xlu0 %1897
      %1899 = vrot.lane.b32.xlu0 %v1758, 16
      %v1900 = vpop.permute.xlu0 %1899
      %1901 = vrot.lane.b32.xlu0 %v1770, 16
      %v1902 = vpop.permute.xlu0 %1901
      %1903 = vrot.lane.b32.xlu0 %v1782, 16
      %v1904 = vpop.permute.xlu0 %1903
      %1905 = vrot.lane.b32.xlu0 %v1794, 16
      %v1906 = vpop.permute.xlu0 %1905
      %1907 = vrot.lane.b32.xlu0 %v1806, 16
      %v1908 = vpop.permute.xlu0 %1907
      %1909 = vrot.lane.b32.xlu0 %v1818, 16
      %v1910 = vpop.permute.xlu0 %1909
      %1911 = vrot.lane.b32.xlu0 %v1830, 16
      %v1912 = vpop.permute.xlu0 %1911
      %1913 = vrot.lane.b32.xlu0 %v1842, 16
      %v1914 = vpop.permute.xlu0 %1913
      %1915 = vrot.lane.b32.xlu0 %v1854, 16
      %v1916 = vpop.permute.xlu0 %1915
      %1917 = vrot.lane.b32.xlu0 %v1866, 16
      %v1918 = vpop.permute.xlu0 %1917
      %1919 = vrot.lane.b32.xlu0 %v1878, 16
      %v1920 = vpop.permute.xlu0 %1919
      %1921 = vrot.lane.b32.xlu0 %v1890, 16
      %v1922 = vpop.permute.xlu0 %1921
      %v1939 = vunpack.c.l.b16 %v976
      %v1940 = vunpack.c.l.b16 %v977
      %v1941 = vunpack.c.l.b16 %v978
      %v1942 = vunpack.c.l.b16 %v979
      %v1943 = vunpack.c.l.b16 %v980
      %v1944 = vunpack.c.l.b16 %v981
      %v1945 = vunpack.c.l.b16 %v982
      %v1946 = vunpack.c.l.b16 %v983
      %v1947 = vunpack.c.l.b16 %v984
      %v1948 = vunpack.c.l.b16 %v985
      %v1949 = vunpack.c.l.b16 %v986
      %v1950 = vunpack.c.l.b16 %v987
      %v1951 = vunpack.c.l.b16 %v988
      %v1952 = vunpack.c.l.b16 %v989
      %v1953 = vunpack.c.l.b16 %v990
      %v1954 = vunpack.c.l.b16 %v991
      %v1955 = vpack.c.b16 %v1572, %v1939
      %v1956 = vpack.c.b16 %v1574, %v1940
      %v1957 = vpack.c.b16 %v1576, %v1941
      %v1958 = vpack.c.b16 %v1578, %v1942
      %v1959 = vpack.c.b16 %v1580, %v1943
      %v1960 = vpack.c.b16 %v1582, %v1944
      %v1961 = vpack.c.b16 %v1584, %v1945
      %v1962 = vpack.c.b16 %v1586, %v1946
      %v1963 = vpack.c.b16 %v1588, %v1947
      %v1964 = vpack.c.b16 %v1590, %v1948
      %v1965 = vpack.c.b16 %v1592, %v1949
      %v1966 = vpack.c.b16 %v1594, %v1950
      %v1967 = vpack.c.b16 %v1596, %v1951
      %v1968 = vpack.c.b16 %v1598, %v1952
      %v1969 = vpack.c.b16 %v1600, %v1953
      %v1970 = vpack.c.b16 %v1602, %v1954
      %v1971 = vrot.slane %v1955, 1
      %v1972 = vrot.slane %v1683, 1
      %v1973 = vsel %vm1458, %v1971, %v1972
      %v1974 = vrot.slane %v1956, 1
      %v1975 = vrot.slane %v1684, 1
      %v1976 = vsel %vm1458, %v1974, %v1975
      %v1977 = vrot.slane %v1957, 1
      %v1978 = vrot.slane %v1685, 1
      %v1979 = vsel %vm1458, %v1977, %v1978
      %v1980 = vrot.slane %v1958, 1
      %v1981 = vrot.slane %v1686, 1
      %v1982 = vsel %vm1458, %v1980, %v1981
      %v1983 = vrot.slane %v1959, 1
      %v1984 = vrot.slane %v1687, 1
      %v1985 = vsel %vm1458, %v1983, %v1984
      %v1986 = vrot.slane %v1960, 1
      %v1987 = vrot.slane %v1688, 1
      %v1988 = vsel %vm1458, %v1986, %v1987
      %v1989 = vrot.slane %v1961, 1
      %v1990 = vrot.slane %v1689, 1
      %v1991 = vsel %vm1458, %v1989, %v1990
      %v1992 = vrot.slane %v1962, 1
      %v1993 = vrot.slane %v1690, 1
      %v1994 = vsel %vm1458, %v1992, %v1993
      %v1995 = vrot.slane %v1963, 1
      %v1996 = vrot.slane %v1691, 1
      %v1997 = vsel %vm1458, %v1995, %v1996
      %v1998 = vrot.slane %v1964, 1
      %v1999 = vrot.slane %v1692, 1
      %v2000 = vsel %vm1458, %v1998, %v1999
      %v2001 = vrot.slane %v1965, 1
      %v2002 = vrot.slane %v1693, 1
      %v2003 = vsel %vm1458, %v2001, %v2002
      %v2004 = vrot.slane %v1966, 1
      %v2005 = vrot.slane %v1694, 1
      %v2006 = vsel %vm1458, %v2004, %v2005
      %v2007 = vrot.slane %v1967, 1
      %v2008 = vrot.slane %v1695, 1
      %v2009 = vsel %vm1458, %v2007, %v2008
      %v2010 = vrot.slane %v1968, 1
      %v2011 = vrot.slane %v1696, 1
      %v2012 = vsel %vm1458, %v2010, %v2011
      %v2013 = vrot.slane %v1969, 1
      %v2014 = vrot.slane %v1697, 1
      %v2015 = vsel %vm1458, %v2013, %v2014
      %v2016 = vrot.slane %v1970, 1
      %v2017 = vrot.slane %v1698, 1
      %v2018 = vsel %vm1458, %v2016, %v2017
      %2019 = vrot.lane.b32.xlu0 %v1973, 20
      %v2020 = vpop.permute.xlu0 %2019
      %2021 = vrot.lane.b32.xlu0 %v1976, 20
      %v2022 = vpop.permute.xlu0 %2021
      %2023 = vrot.lane.b32.xlu0 %v1979, 20
      %v2024 = vpop.permute.xlu0 %2023
      %2025 = vrot.lane.b32.xlu0 %v1982, 20
      %v2026 = vpop.permute.xlu0 %2025
      %2027 = vrot.lane.b32.xlu0 %v1985, 20
      %v2028 = vpop.permute.xlu0 %2027
      %2029 = vrot.lane.b32.xlu0 %v1988, 20
      %v2030 = vpop.permute.xlu0 %2029
      %2031 = vrot.lane.b32.xlu0 %v1991, 20
      %v2032 = vpop.permute.xlu0 %2031
      %2033 = vrot.lane.b32.xlu0 %v1994, 20
      %v2034 = vpop.permute.xlu0 %2033
      %2035 = vrot.lane.b32.xlu0 %v1997, 20
      %v2036 = vpop.permute.xlu0 %2035
      %2037 = vrot.lane.b32.xlu0 %v2000, 20
      %v2038 = vpop.permute.xlu0 %2037
      %2039 = vrot.lane.b32.xlu0 %v2003, 20
      %v2040 = vpop.permute.xlu0 %2039
      %2041 = vrot.lane.b32.xlu0 %v2006, 20
      %v2042 = vpop.permute.xlu0 %2041
      %2043 = vrot.lane.b32.xlu0 %v2009, 20
      %v2044 = vpop.permute.xlu0 %2043
      %2045 = vrot.lane.b32.xlu0 %v2012, 20
      %v2046 = vpop.permute.xlu0 %2045
      %2047 = vrot.lane.b32.xlu0 %v2015, 20
      %v2048 = vpop.permute.xlu0 %2047
      %2049 = vrot.lane.b32.xlu0 %v2018, 20
      %v2050 = vpop.permute.xlu0 %2049
      %v2083 = vunpack.c.l.b16 %v993
      %v2084 = vunpack.c.l.b16 %v994
      %v2085 = vunpack.c.l.b16 %v995
      %v2086 = vunpack.c.l.b16 %v996
      %v2087 = vunpack.c.l.b16 %v997
      %v2088 = vunpack.c.l.b16 %v998
      %v2089 = vunpack.c.l.b16 %v999
      %v2090 = vunpack.c.l.b16 %v1000
      %v2091 = vunpack.c.l.b16 %v1001
      %v2092 = vunpack.c.l.b16 %v1002
      %v2093 = vunpack.c.l.b16 %v1003
      %v2094 = vunpack.c.l.b16 %v1004
      %v2095 = vunpack.c.l.b16 %v1005
      %v2096 = vunpack.c.l.b16 %v1006
      %v2097 = vunpack.c.l.b16 %v1007
      %v2098 = vunpack.c.l.b16 %v1008
      %v2099 = vunpack.c.l.b16 %v1009
      %v2100 = vunpack.c.l.b16 %v1010
      %v2101 = vunpack.c.l.b16 %v1011
      %v2102 = vunpack.c.l.b16 %v1012
      %v2103 = vunpack.c.l.b16 %v1013
      %v2104 = vunpack.c.l.b16 %v1014
      %v2105 = vunpack.c.l.b16 %v1015
      %v2106 = vunpack.c.l.b16 %v1016
      %v2107 = vunpack.c.l.b16 %v1017
      %v2108 = vunpack.c.l.b16 %v1018
      %v2109 = vunpack.c.l.b16 %v1019
      %v2110 = vunpack.c.l.b16 %v1020
      %v2111 = vunpack.c.l.b16 %v1021
      %v2112 = vunpack.c.l.b16 %v1022
      %v2113 = vunpack.c.l.b16 %v1023
      %v2114 = vunpack.c.l.b16 %v1024
      %v2115 = vpack.c.b16 %v2084, %v2083
      %v2116 = vpack.c.b16 %v2086, %v2085
      %v2117 = vpack.c.b16 %v2088, %v2087
      %v2118 = vpack.c.b16 %v2090, %v2089
      %v2119 = vpack.c.b16 %v2092, %v2091
      %v2120 = vpack.c.b16 %v2094, %v2093
      %v2121 = vpack.c.b16 %v2096, %v2095
      %v2122 = vpack.c.b16 %v2098, %v2097
      %v2123 = vpack.c.b16 %v2100, %v2099
      %v2124 = vpack.c.b16 %v2102, %v2101
      %v2125 = vpack.c.b16 %v2104, %v2103
      %v2126 = vpack.c.b16 %v2106, %v2105
      %v2127 = vpack.c.b16 %v2108, %v2107
      %v2128 = vpack.c.b16 %v2110, %v2109
      %v2129 = vpack.c.b16 %v2112, %v2111
      %v2130 = vpack.c.b16 %v2114, %v2113
      %2131 = vrot.lane.b32.xlu0 %v2115, 24
      %v2132 = vpop.permute.xlu0 %2131
      %2133 = vrot.lane.b32.xlu0 %v2116, 24
      %v2134 = vpop.permute.xlu0 %2133
      %2135 = vrot.lane.b32.xlu0 %v2117, 24
      %v2136 = vpop.permute.xlu0 %2135
      %2137 = vrot.lane.b32.xlu0 %v2118, 24
      %v2138 = vpop.permute.xlu0 %2137
      %2139 = vrot.lane.b32.xlu0 %v2119, 24
      %v2140 = vpop.permute.xlu0 %2139
      %2141 = vrot.lane.b32.xlu0 %v2120, 24
      %v2142 = vpop.permute.xlu0 %2141
      %2143 = vrot.lane.b32.xlu0 %v2121, 24
      %v2144 = vpop.permute.xlu0 %2143
      %2145 = vrot.lane.b32.xlu0 %v2122, 24
      %v2146 = vpop.permute.xlu0 %2145
      %2147 = vrot.lane.b32.xlu0 %v2123, 24
      %v2148 = vpop.permute.xlu0 %2147
      %2149 = vrot.lane.b32.xlu0 %v2124, 24
      %v2150 = vpop.permute.xlu0 %2149
      %2151 = vrot.lane.b32.xlu0 %v2125, 24
      %v2152 = vpop.permute.xlu0 %2151
      %2153 = vrot.lane.b32.xlu0 %v2126, 24
      %v2154 = vpop.permute.xlu0 %2153
      %2155 = vrot.lane.b32.xlu0 %v2127, 24
      %v2156 = vpop.permute.xlu0 %2155
      %2157 = vrot.lane.b32.xlu0 %v2128, 24
      %v2158 = vpop.permute.xlu0 %2157
      %2159 = vrot.lane.b32.xlu0 %v2129, 24
      %v2160 = vpop.permute.xlu0 %2159
      %2161 = vrot.lane.b32.xlu0 %v2130, 24
      %v2162 = vpop.permute.xlu0 %2161
      %v2179 = vunpack.c.l.b16 %v1025
      %v2180 = vunpack.c.l.b16 %v1026
      %v2181 = vunpack.c.l.b16 %v1027
      %v2182 = vunpack.c.l.b16 %v1028
      %v2183 = vunpack.c.l.b16 %v1029
      %v2184 = vunpack.c.l.b16 %v1030
      %v2185 = vunpack.c.l.b16 %v1031
      %v2186 = vunpack.c.l.b16 %v1032
      %v2187 = vunpack.c.l.b16 %v1033
      %v2188 = vunpack.c.l.b16 %v1034
      %v2189 = vunpack.c.l.b16 %v1035
      %v2190 = vunpack.c.l.b16 %v1036
      %v2191 = vunpack.c.l.b16 %v1037
      %v2192 = vunpack.c.l.b16 %v1038
      %v2193 = vunpack.c.l.b16 %v1039
      %v2194 = vunpack.c.l.b16 %v1040
      %v2195 = vpack.c.b16 %v2179, %v2179
      %v2196 = vpack.c.b16 %v2180, %v2180
      %v2197 = vpack.c.b16 %v2181, %v2181
      %v2198 = vpack.c.b16 %v2182, %v2182
      %v2199 = vpack.c.b16 %v2183, %v2183
      %v2200 = vpack.c.b16 %v2184, %v2184
      %v2201 = vpack.c.b16 %v2185, %v2185
      %v2202 = vpack.c.b16 %v2186, %v2186
      %v2203 = vpack.c.b16 %v2187, %v2187
      %v2204 = vpack.c.b16 %v2188, %v2188
      %v2205 = vpack.c.b16 %v2189, %v2189
      %v2206 = vpack.c.b16 %v2190, %v2190
      %v2207 = vpack.c.b16 %v2191, %v2191
      %v2208 = vpack.c.b16 %v2192, %v2192
      %v2209 = vpack.c.b16 %v2193, %v2193
      %v2210 = vpack.c.b16 %v2194, %v2194
      %v2212 = vshrl.u32 %v2115, 16
      %v2214 = vshll.u32 %v2115, 16
      %v2216 = vrot.slane %v2214, 1
      %v2217 = vor.u32 %v2212, %v2216
      %v2219 = vshll.u32 %v2195, 16
      %v2221 = vrot.slane %v2219, 1
      %v2222 = vsel %vm1185, %v2217, %v2221
      %v2224 = vshrl.u32 %v2116, 16
      %v2226 = vshll.u32 %v2116, 16
      %v2228 = vrot.slane %v2226, 1
      %v2229 = vor.u32 %v2224, %v2228
      %v2231 = vshll.u32 %v2196, 16
      %v2233 = vrot.slane %v2231, 1
      %v2234 = vsel %vm1185, %v2229, %v2233
      %v2236 = vshrl.u32 %v2117, 16
      %v2238 = vshll.u32 %v2117, 16
      %v2240 = vrot.slane %v2238, 1
      %v2241 = vor.u32 %v2236, %v2240
      %v2243 = vshll.u32 %v2197, 16
      %v2245 = vrot.slane %v2243, 1
      %v2246 = vsel %vm1185, %v2241, %v2245
      %v2248 = vshrl.u32 %v2118, 16
      %v2250 = vshll.u32 %v2118, 16
      %v2252 = vrot.slane %v2250, 1
      %v2253 = vor.u32 %v2248, %v2252
      %v2255 = vshll.u32 %v2198, 16
      %v2257 = vrot.slane %v2255, 1
      %v2258 = vsel %vm1185, %v2253, %v2257
      %v2260 = vshrl.u32 %v2119, 16
      %v2262 = vshll.u32 %v2119, 16
      %v2264 = vrot.slane %v2262, 1
      %v2265 = vor.u32 %v2260, %v2264
      %v2267 = vshll.u32 %v2199, 16
      %v2269 = vrot.slane %v2267, 1
      %v2270 = vsel %vm1185, %v2265, %v2269
      %v2272 = vshrl.u32 %v2120, 16
      %v2274 = vshll.u32 %v2120, 16
      %v2276 = vrot.slane %v2274, 1
      %v2277 = vor.u32 %v2272, %v2276
      %v2279 = vshll.u32 %v2200, 16
      %v2281 = vrot.slane %v2279, 1
      %v2282 = vsel %vm1185, %v2277, %v2281
      %v2284 = vshrl.u32 %v2121, 16
      %v2286 = vshll.u32 %v2121, 16
      %v2288 = vrot.slane %v2286, 1
      %v2289 = vor.u32 %v2284, %v2288
      %v2291 = vshll.u32 %v2201, 16
      %v2293 = vrot.slane %v2291, 1
      %v2294 = vsel %vm1185, %v2289, %v2293
      %v2296 = vshrl.u32 %v2122, 16
      %v2298 = vshll.u32 %v2122, 16
      %v2300 = vrot.slane %v2298, 1
      %v2301 = vor.u32 %v2296, %v2300
      %v2303 = vshll.u32 %v2202, 16
      %v2305 = vrot.slane %v2303, 1
      %v2306 = vsel %vm1185, %v2301, %v2305
      %v2308 = vshrl.u32 %v2123, 16
      %v2310 = vshll.u32 %v2123, 16
      %v2312 = vrot.slane %v2310, 1
      %v2313 = vor.u32 %v2308, %v2312
      %v2315 = vshll.u32 %v2203, 16
      %v2317 = vrot.slane %v2315, 1
      %v2318 = vsel %vm1185, %v2313, %v2317
      %v2320 = vshrl.u32 %v2124, 16
      %v2322 = vshll.u32 %v2124, 16
      %v2324 = vrot.slane %v2322, 1
      %v2325 = vor.u32 %v2320, %v2324
      %v2327 = vshll.u32 %v2204, 16
      %v2329 = vrot.slane %v2327, 1
      %v2330 = vsel %vm1185, %v2325, %v2329
      %v2332 = vshrl.u32 %v2125, 16
      %v2334 = vshll.u32 %v2125, 16
      %v2336 = vrot.slane %v2334, 1
      %v2337 = vor.u32 %v2332, %v2336
      %v2339 = vshll.u32 %v2205, 16
      %v2341 = vrot.slane %v2339, 1
      %v2342 = vsel %vm1185, %v2337, %v2341
      %v2344 = vshrl.u32 %v2126, 16
      %v2346 = vshll.u32 %v2126, 16
      %v2348 = vrot.slane %v2346, 1
      %v2349 = vor.u32 %v2344, %v2348
      %v2351 = vshll.u32 %v2206, 16
      %v2353 = vrot.slane %v2351, 1
      %v2354 = vsel %vm1185, %v2349, %v2353
      %v2356 = vshrl.u32 %v2127, 16
      %v2358 = vshll.u32 %v2127, 16
      %v2360 = vrot.slane %v2358, 1
      %v2361 = vor.u32 %v2356, %v2360
      %v2363 = vshll.u32 %v2207, 16
      %v2365 = vrot.slane %v2363, 1
      %v2366 = vsel %vm1185, %v2361, %v2365
      %v2368 = vshrl.u32 %v2128, 16
      %v2370 = vshll.u32 %v2128, 16
      %v2372 = vrot.slane %v2370, 1
      %v2373 = vor.u32 %v2368, %v2372
      %v2375 = vshll.u32 %v2208, 16
      %v2377 = vrot.slane %v2375, 1
      %v2378 = vsel %vm1185, %v2373, %v2377
      %v2380 = vshrl.u32 %v2129, 16
      %v2382 = vshll.u32 %v2129, 16
      %v2384 = vrot.slane %v2382, 1
      %v2385 = vor.u32 %v2380, %v2384
      %v2387 = vshll.u32 %v2209, 16
      %v2389 = vrot.slane %v2387, 1
      %v2390 = vsel %vm1185, %v2385, %v2389
      %v2392 = vshrl.u32 %v2130, 16
      %v2394 = vshll.u32 %v2130, 16
      %v2396 = vrot.slane %v2394, 1
      %v2397 = vor.u32 %v2392, %v2396
      %v2399 = vshll.u32 %v2210, 16
      %v2401 = vrot.slane %v2399, 1
      %v2402 = vsel %vm1185, %v2397, %v2401
      %2403 = vrot.lane.b32.xlu0 %v2222, 28
      %v2404 = vpop.permute.xlu0 %2403
      %2405 = vrot.lane.b32.xlu0 %v2234, 28
      %v2406 = vpop.permute.xlu0 %2405
      %2407 = vrot.lane.b32.xlu0 %v2246, 28
      %v2408 = vpop.permute.xlu0 %2407
      %2409 = vrot.lane.b32.xlu0 %v2258, 28
      %v2410 = vpop.permute.xlu0 %2409
      %2411 = vrot.lane.b32.xlu0 %v2270, 28
      %v2412 = vpop.permute.xlu0 %2411
      %2413 = vrot.lane.b32.xlu0 %v2282, 28
      %v2414 = vpop.permute.xlu0 %2413
      %2415 = vrot.lane.b32.xlu0 %v2294, 28
      %v2416 = vpop.permute.xlu0 %2415
      %2417 = vrot.lane.b32.xlu0 %v2306, 28
      %v2418 = vpop.permute.xlu0 %2417
      %2419 = vrot.lane.b32.xlu0 %v2318, 28
      %v2420 = vpop.permute.xlu0 %2419
      %2421 = vrot.lane.b32.xlu0 %v2330, 28
      %v2422 = vpop.permute.xlu0 %2421
      %2423 = vrot.lane.b32.xlu0 %v2342, 28
      %v2424 = vpop.permute.xlu0 %2423
      %2425 = vrot.lane.b32.xlu0 %v2354, 28
      %v2426 = vpop.permute.xlu0 %2425
      %2427 = vrot.lane.b32.xlu0 %v2366, 28
      %v2428 = vpop.permute.xlu0 %2427
      %2429 = vrot.lane.b32.xlu0 %v2378, 28
      %v2430 = vpop.permute.xlu0 %2429
      %2431 = vrot.lane.b32.xlu0 %v2390, 28
      %v2432 = vpop.permute.xlu0 %2431
      %2433 = vrot.lane.b32.xlu0 %v2402, 28
      %v2434 = vpop.permute.xlu0 %2433
      %v2451 = vunpack.c.l.b16 %v1041
      %v2452 = vunpack.c.l.b16 %v1042
      %v2453 = vunpack.c.l.b16 %v1043
      %v2454 = vunpack.c.l.b16 %v1044
      %v2455 = vunpack.c.l.b16 %v1045
      %v2456 = vunpack.c.l.b16 %v1046
      %v2457 = vunpack.c.l.b16 %v1047
      %v2458 = vunpack.c.l.b16 %v1048
      %v2459 = vunpack.c.l.b16 %v1049
      %v2460 = vunpack.c.l.b16 %v1050
      %v2461 = vunpack.c.l.b16 %v1051
      %v2462 = vunpack.c.l.b16 %v1052
      %v2463 = vunpack.c.l.b16 %v1053
      %v2464 = vunpack.c.l.b16 %v1054
      %v2465 = vunpack.c.l.b16 %v1055
      %v2466 = vunpack.c.l.b16 %v1056
      %v2467 = vpack.c.b16 %v2084, %v2451
      %v2468 = vpack.c.b16 %v2086, %v2452
      %v2469 = vpack.c.b16 %v2088, %v2453
      %v2470 = vpack.c.b16 %v2090, %v2454
      %v2471 = vpack.c.b16 %v2092, %v2455
      %v2472 = vpack.c.b16 %v2094, %v2456
      %v2473 = vpack.c.b16 %v2096, %v2457
      %v2474 = vpack.c.b16 %v2098, %v2458
      %v2475 = vpack.c.b16 %v2100, %v2459
      %v2476 = vpack.c.b16 %v2102, %v2460
      %v2477 = vpack.c.b16 %v2104, %v2461
      %v2478 = vpack.c.b16 %v2106, %v2462
      %v2479 = vpack.c.b16 %v2108, %v2463
      %v2480 = vpack.c.b16 %v2110, %v2464
      %v2481 = vpack.c.b16 %v2112, %v2465
      %v2482 = vpack.c.b16 %v2114, %v2466
      %v2483 = vrot.slane %v2467, 1
      %v2484 = vrot.slane %v2195, 1
      %v2485 = vsel %vm1458, %v2483, %v2484
      %v2486 = vrot.slane %v2468, 1
      %v2487 = vrot.slane %v2196, 1
      %v2488 = vsel %vm1458, %v2486, %v2487
      %v2489 = vrot.slane %v2469, 1
      %v2490 = vrot.slane %v2197, 1
      %v2491 = vsel %vm1458, %v2489, %v2490
      %v2492 = vrot.slane %v2470, 1
      %v2493 = vrot.slane %v2198, 1
      %v2494 = vsel %vm1458, %v2492, %v2493
      %v2495 = vrot.slane %v2471, 1
      %v2496 = vrot.slane %v2199, 1
      %v2497 = vsel %vm1458, %v2495, %v2496
      %v2498 = vrot.slane %v2472, 1
      %v2499 = vrot.slane %v2200, 1
      %v2500 = vsel %vm1458, %v2498, %v2499
      %v2501 = vrot.slane %v2473, 1
      %v2502 = vrot.slane %v2201, 1
      %v2503 = vsel %vm1458, %v2501, %v2502
      %v2504 = vrot.slane %v2474, 1
      %v2505 = vrot.slane %v2202, 1
      %v2506 = vsel %vm1458, %v2504, %v2505
      %v2507 = vrot.slane %v2475, 1
      %v2508 = vrot.slane %v2203, 1
      %v2509 = vsel %vm1458, %v2507, %v2508
      %v2510 = vrot.slane %v2476, 1
      %v2511 = vrot.slane %v2204, 1
      %v2512 = vsel %vm1458, %v2510, %v2511
      %v2513 = vrot.slane %v2477, 1
      %v2514 = vrot.slane %v2205, 1
      %v2515 = vsel %vm1458, %v2513, %v2514
      %v2516 = vrot.slane %v2478, 1
      %v2517 = vrot.slane %v2206, 1
      %v2518 = vsel %vm1458, %v2516, %v2517
      %v2519 = vrot.slane %v2479, 1
      %v2520 = vrot.slane %v2207, 1
      %v2521 = vsel %vm1458, %v2519, %v2520
      %v2522 = vrot.slane %v2480, 1
      %v2523 = vrot.slane %v2208, 1
      %v2524 = vsel %vm1458, %v2522, %v2523
      %v2525 = vrot.slane %v2481, 1
      %v2526 = vrot.slane %v2209, 1
      %v2527 = vsel %vm1458, %v2525, %v2526
      %v2528 = vrot.slane %v2482, 1
      %v2529 = vrot.slane %v2210, 1
      %v2530 = vsel %vm1458, %v2528, %v2529
      %2531 = vrot.lane.b32.xlu0 %v2485, 32
      %v2532 = vpop.permute.xlu0 %2531
      %2533 = vrot.lane.b32.xlu0 %v2488, 32
      %v2534 = vpop.permute.xlu0 %2533
      %2535 = vrot.lane.b32.xlu0 %v2491, 32
      %v2536 = vpop.permute.xlu0 %2535
      %2537 = vrot.lane.b32.xlu0 %v2494, 32
      %v2538 = vpop.permute.xlu0 %2537
      %2539 = vrot.lane.b32.xlu0 %v2497, 32
      %v2540 = vpop.permute.xlu0 %2539
      %2541 = vrot.lane.b32.xlu0 %v2500, 32
      %v2542 = vpop.permute.xlu0 %2541
      %2543 = vrot.lane.b32.xlu0 %v2503, 32
      %v2544 = vpop.permute.xlu0 %2543
      %2545 = vrot.lane.b32.xlu0 %v2506, 32
      %v2546 = vpop.permute.xlu0 %2545
      %2547 = vrot.lane.b32.xlu0 %v2509, 32
      %v2548 = vpop.permute.xlu0 %2547
      %2549 = vrot.lane.b32.xlu0 %v2512, 32
      %v2550 = vpop.permute.xlu0 %2549
      %2551 = vrot.lane.b32.xlu0 %v2515, 32
      %v2552 = vpop.permute.xlu0 %2551
      %2553 = vrot.lane.b32.xlu0 %v2518, 32
      %v2554 = vpop.permute.xlu0 %2553
      %2555 = vrot.lane.b32.xlu0 %v2521, 32
      %v2556 = vpop.permute.xlu0 %2555
      %2557 = vrot.lane.b32.xlu0 %v2524, 32
      %v2558 = vpop.permute.xlu0 %2557
      %2559 = vrot.lane.b32.xlu0 %v2527, 32
      %v2560 = vpop.permute.xlu0 %2559
      %2561 = vrot.lane.b32.xlu0 %v2530, 32
      %v2562 = vpop.permute.xlu0 %2561
      %vm2563 = vcmask 31744
      %v2565 = vsel %vm2563, %v1121, %v1379
      %v2567 = vsel %vm2563, %v1122, %v1381
      %v2569 = vsel %vm2563, %v1123, %v1383
      %v2571 = vsel %vm2563, %v1124, %v1385
      %v2573 = vsel %vm2563, %v1125, %v1387
      %v2575 = vsel %vm2563, %v1126, %v1389
      %v2577 = vsel %vm2563, %v1127, %v1391
      %v2579 = vsel %vm2563, %v1128, %v1393
      %v2581 = vsel %vm2563, %v1129, %v1395
      %v2583 = vsel %vm2563, %v1130, %v1397
      %v2585 = vsel %vm2563, %v1131, %v1399
      %v2587 = vsel %vm2563, %v1132, %v1401
      %v2589 = vsel %vm2563, %v1133, %v1403
      %v2591 = vsel %vm2563, %v1134, %v1405
      %v2593 = vsel %vm2563, %v1135, %v1407
      %v2595 = vsel %vm2563, %v1136, %v1409
      %vm2596 = vcmask 64512
      %v2598 = vsel %vm2596, %v2565, %v1508
      %v2600 = vsel %vm2596, %v2567, %v1510
      %v2602 = vsel %vm2596, %v2569, %v1512
      %v2604 = vsel %vm2596, %v2571, %v1514
      %v2606 = vsel %vm2596, %v2573, %v1516
      %v2608 = vsel %vm2596, %v2575, %v1518
      %v2610 = vsel %vm2596, %v2577, %v1520
      %v2612 = vsel %vm2596, %v2579, %v1522
      %v2614 = vsel %vm2596, %v2581, %v1524
      %v2616 = vsel %vm2596, %v2583, %v1526
      %v2618 = vsel %vm2596, %v2585, %v1528
      %v2620 = vsel %vm2596, %v2587, %v1530
      %v2622 = vsel %vm2596, %v2589, %v1532
      %v2624 = vsel %vm2596, %v2591, %v1534
      %v2626 = vsel %vm2596, %v2593, %v1536
      %v2628 = vsel %vm2596, %v2595, %v1538
      %vm2629 = vcmask 97280
      %v2631 = vsel %vm2629, %v2598, %v1620
      %v2633 = vsel %vm2629, %v2600, %v1622
      %v2635 = vsel %vm2629, %v2602, %v1624
      %v2637 = vsel %vm2629, %v2604, %v1626
      %v2639 = vsel %vm2629, %v2606, %v1628
      %v2641 = vsel %vm2629, %v2608, %v1630
      %v2643 = vsel %vm2629, %v2610, %v1632
      %v2645 = vsel %vm2629, %v2612, %v1634
      %v2647 = vsel %vm2629, %v2614, %v1636
      %v2649 = vsel %vm2629, %v2616, %v1638
      %v2651 = vsel %vm2629, %v2618, %v1640
      %v2653 = vsel %vm2629, %v2620, %v1642
      %v2655 = vsel %vm2629, %v2622, %v1644
      %v2657 = vsel %vm2629, %v2624, %v1646
      %v2659 = vsel %vm2629, %v2626, %v1648
      %v2661 = vsel %vm2629, %v2628, %v1650
      %vm2662 = vcmask 130048
      %v2664 = vsel %vm2662, %v2631, %v1892
      %v2666 = vsel %vm2662, %v2633, %v1894
      %v2668 = vsel %vm2662, %v2635, %v1896
      %v2670 = vsel %vm2662, %v2637, %v1898
      %v2672 = vsel %vm2662, %v2639, %v1900
      %v2674 = vsel %vm2662, %v2641, %v1902
      %v2676 = vsel %vm2662, %v2643, %v1904
      %v2678 = vsel %vm2662, %v2645, %v1906
      %v2680 = vsel %vm2662, %v2647, %v1908
      %v2682 = vsel %vm2662, %v2649, %v1910
      %v2684 = vsel %vm2662, %v2651, %v1912
      %v2686 = vsel %vm2662, %v2653, %v1914
      %v2688 = vsel %vm2662, %v2655, %v1916
      %v2690 = vsel %vm2662, %v2657, %v1918
      %v2692 = vsel %vm2662, %v2659, %v1920
      %v2694 = vsel %vm2662, %v2661, %v1922
      %vm2695 = vcmask 162816
      %v2697 = vsel %vm2695, %v2664, %v2020
      %v2699 = vsel %vm2695, %v2666, %v2022
      %v2701 = vsel %vm2695, %v2668, %v2024
      %v2703 = vsel %vm2695, %v2670, %v2026
      %v2705 = vsel %vm2695, %v2672, %v2028
      %v2707 = vsel %vm2695, %v2674, %v2030
      %v2709 = vsel %vm2695, %v2676, %v2032
      %v2711 = vsel %vm2695, %v2678, %v2034
      %v2713 = vsel %vm2695, %v2680, %v2036
      %v2715 = vsel %vm2695, %v2682, %v2038
      %v2717 = vsel %vm2695, %v2684, %v2040
      %v2719 = vsel %vm2695, %v2686, %v2042
      %v2721 = vsel %vm2695, %v2688, %v2044
      %v2723 = vsel %vm2695, %v2690, %v2046
      %v2725 = vsel %vm2695, %v2692, %v2048
      %v2727 = vsel %vm2695, %v2694, %v2050
      %vm2728 = vcmask 195584
      %v2730 = vsel %vm2728, %v2697, %v2132
      %v2732 = vsel %vm2728, %v2699, %v2134
      %v2734 = vsel %vm2728, %v2701, %v2136
      %v2736 = vsel %vm2728, %v2703, %v2138
      %v2738 = vsel %vm2728, %v2705, %v2140
      %v2740 = vsel %vm2728, %v2707, %v2142
      %v2742 = vsel %vm2728, %v2709, %v2144
      %v2744 = vsel %vm2728, %v2711, %v2146
      %v2746 = vsel %vm2728, %v2713, %v2148
      %v2748 = vsel %vm2728, %v2715, %v2150
      %v2750 = vsel %vm2728, %v2717, %v2152
      %v2752 = vsel %vm2728, %v2719, %v2154
      %v2754 = vsel %vm2728, %v2721, %v2156
      %v2756 = vsel %vm2728, %v2723, %v2158
      %v2758 = vsel %vm2728, %v2725, %v2160
      %v2760 = vsel %vm2728, %v2727, %v2162
      %vm2761 = vcmask 228352
      %v2763 = vsel %vm2761, %v2730, %v2404
      %v2765 = vsel %vm2761, %v2732, %v2406
      %v2767 = vsel %vm2761, %v2734, %v2408
      %v2769 = vsel %vm2761, %v2736, %v2410
      %v2771 = vsel %vm2761, %v2738, %v2412
      %v2773 = vsel %vm2761, %v2740, %v2414
      %v2775 = vsel %vm2761, %v2742, %v2416
      %v2777 = vsel %vm2761, %v2744, %v2418
      %v2779 = vsel %vm2761, %v2746, %v2420
      %v2781 = vsel %vm2761, %v2748, %v2422
      %v2783 = vsel %vm2761, %v2750, %v2424
      %v2785 = vsel %vm2761, %v2752, %v2426
      %v2787 = vsel %vm2761, %v2754, %v2428
      %v2789 = vsel %vm2761, %v2756, %v2430
      %v2791 = vsel %vm2761, %v2758, %v2432
      %v2793 = vsel %vm2761, %v2760, %v2434
      %vm2794 = vcmask 261120
      %v2796 = vsel %vm2794, %v2763, %v2532
      %v2798 = vsel %vm2794, %v2765, %v2534
      %v2800 = vsel %vm2794, %v2767, %v2536
      %v2802 = vsel %vm2794, %v2769, %v2538
      %v2804 = vsel %vm2794, %v2771, %v2540
      %v2806 = vsel %vm2794, %v2773, %v2542
      %v2808 = vsel %vm2794, %v2775, %v2544
      %v2810 = vsel %vm2794, %v2777, %v2546
      %v2812 = vsel %vm2794, %v2779, %v2548
      %v2814 = vsel %vm2794, %v2781, %v2550
      %v2816 = vsel %vm2794, %v2783, %v2552
      %v2818 = vsel %vm2794, %v2785, %v2554
      %v2820 = vsel %vm2794, %v2787, %v2556
      %v2822 = vsel %vm2794, %v2789, %v2558
      %v2824 = vsel %vm2794, %v2791, %v2560
      %v2826 = vsel %vm2794, %v2793, %v2562
      %v2832 = vunpack.c.l.b16 %v859
      %v2833 = vunpack.c.l.b16 %v860
      %v2834 = vunpack.c.l.b16 %v861
      %v2835 = vunpack.c.l.b16 %v862
      %v2836 = vunpack.c.l.b16 %v863
      %v2837 = vpack.c.b16 %v2833, %v2832
      %v2838 = vpack.c.b16 %v2835, %v2834
      %v2839 = vpack.c.b16 %v2836, %v2836
      %vm2842 = vcmask 293888
      %v2843 = vsel %vm2842, %v2796, 0
      %v2845 = vsel %vm2842, %v2798, 0
      %v2847 = vsel %vm2842, %v2800, 0
      %v2849 = vsel %vm2842, %v2802, 0
      %v2851 = vsel %vm2842, %v2804, 0
      %v2853 = vsel %vm2842, %v2806, 0
      %v2855 = vsel %vm2842, %v2808, 0
      %v2857 = vsel %vm2842, %v2810, 0
      %v2859 = vsel %vm2842, %v2812, 0
      %v2861 = vsel %vm2842, %v2814, 0
      %v2863 = vsel %vm2842, %v2816, 0
      %v2865 = vsel %vm2842, %v2818, 0
      %v2867 = vsel %vm2842, %v2820, 0
      %v2869 = vsel %vm2842, %v2822, 0
      %v2871 = vsel %vm2842, %v2824, 0
      %v2873 = vsel %vm2842, %v2826, 0
      %vm2875 = vcmask 1041408
      %v2877 = vsel %vm2875, %v2839, 0
      %2879 = vmatprep.subr.bf16.mxu0 0
      %2880 = vmatpush1.bf16.msra.mxu0 %v2837
      %2881 = vmatprep.subr.bf16.mxu0 0
      %2882 = vmatpush1.bf16.msra.mxu0 %v2838
      %2883 = vmatprep.subr.bf16.mxu0 0
      %2884 = vmatpush1.bf16.msra.mxu0 %v2877
      %2885 = vmatprep.subr.bf16.mxu0 0
      %2886 = vmatpush1.bf16.msra.mxu0 0
      %2887 = vmatprep.subr.bf16.mxu0 0
      %2888 = vmatpush1.bf16.msra.mxu0 0
      %2889 = vmatprep.subr.bf16.mxu0 0
      %2890 = vmatpush1.bf16.msra.mxu0 0
      %2891 = vmatprep.subr.bf16.mxu0 0
      %2892 = vmatpush1.bf16.msra.mxu0 0
      %2893 = vmatprep.subr.bf16.mxu0 0
      %2894 = vmatpush1.bf16.msra.mxu0 0
      %2895 = vmatprep.subr.bf16.mxu0 0
      %2896 = vmatpush1.bf16.msra.mxu0 0
      %2897 = vmatprep.subr.bf16.mxu0 0
      %2898 = vmatpush1.bf16.msra.mxu0 0
      %2899 = vmatprep.subr.bf16.mxu0 0
      %2900 = vmatpush1.bf16.msra.mxu0 0
      %2901 = vmatprep.subr.bf16.mxu0 0
      %2902 = vmatpush1.bf16.msra.mxu0 0
      %2903 = vmatprep.subr.bf16.mxu0 0
      %2904 = vmatpush1.bf16.msra.mxu0 0
      %2905 = vmatprep.subr.bf16.mxu0 0
      %2906 = vmatpush1.bf16.msra.mxu0 0
      %2907 = vmatprep.subr.bf16.mxu0 0
      %2908 = vmatpush1.bf16.msra.mxu0 0
      %2909 = vmatprep.subr.bf16.mxu0 0
      %2910 = vmatpush1.bf16.msra.mxu0 0
      %2911 = vmatprep.mubr.bf16.mxu0 0
      %2912 = vmatmul.mubr.bf16.gmra.mrb[0].mxu0 %v2843
      %v2913 = vpop.f32.mrb[0].mxu0
      %v2914 = vadd.f32 0.0, %v2913
      %v2915 = vpop.f32.mrb[0].mxu0
      %v2916 = vpop.f32.mrb[0].mxu0
      %v2917 = vadd.f32 0.0, %v2916
      %v2918 = vpop.f32.mrb[0].mxu0
      %2919 = vmatprep.mubr.bf16.mxu0 0
      %2920 = vmatmul.mubr.bf16.gmra.mrb[0].mxu0 %v2845
      %v2921 = vpop.f32.mrb[0].mxu0
      %v2922 = vadd.f32 0.0, %v2921
      %v2923 = vpop.f32.mrb[0].mxu0
      %v2924 = vpop.f32.mrb[0].mxu0
      %v2925 = vadd.f32 0.0, %v2924
      %v2926 = vpop.f32.mrb[0].mxu0
      %2927 = vmatprep.mubr.bf16.mxu0 0
      %2928 = vmatmul.mubr.bf16.gmra.mrb[0].mxu0 %v2847
      %v2929 = vpop.f32.mrb[0].mxu0
      %v2930 = vadd.f32 0.0, %v2929
      %v2931 = vpop.f32.mrb[0].mxu0
      %v2932 = vpop.f32.mrb[0].mxu0
      %v2933 = vadd.f32 0.0, %v2932
      %v2934 = vpop.f32.mrb[0].mxu0
      %2935 = vmatprep.mubr.bf16.mxu0 0
      %2936 = vmatmul.mubr.bf16.gmra.mrb[0].mxu0 %v2849
      %v2937 = vpop.f32.mrb[0].mxu0
      %v2938 = vadd.f32 0.0, %v2937
      %v2939 = vpop.f32.mrb[0].mxu0
      %v2940 = vpop.f32.mrb[0].mxu0
      %v2941 = vadd.f32 0.0, %v2940
      %v2942 = vpop.f32.mrb[0].mxu0
      %2943 = vmatprep.mubr.bf16.mxu0 0
      %2944 = vmatmul.mubr.bf16.gmra.mrb[0].mxu0 %v2851
      %v2945 = vpop.f32.mrb[0].mxu0
      %v2946 = vadd.f32 0.0, %v2945
      %v2947 = vpop.f32.mrb[0].mxu0
      %v2948 = vpop.f32.mrb[0].mxu0
      %v2949 = vadd.f32 0.0, %v2948
      %v2950 = vpop.f32.mrb[0].mxu0
      %2951 = vmatprep.mubr.bf16.mxu0 0
      %2952 = vmatmul.mubr.bf16.gmra.mrb[0].mxu0 %v2853
      %v2953 = vpop.f32.mrb[0].mxu0
      %v2954 = vadd.f32 0.0, %v2953
      %v2955 = vpop.f32.mrb[0].mxu0
      %v2956 = vpop.f32.mrb[0].mxu0
      %v2957 = vadd.f32 0.0, %v2956
      %v2958 = vpop.f32.mrb[0].mxu0
      %2959 = vmatprep.mubr.bf16.mxu0 0
      %2960 = vmatmul.mubr.bf16.gmra.mrb[0].mxu0 %v2855
      %v2961 = vpop.f32.mrb[0].mxu0
      %v2962 = vadd.f32 0.0, %v2961
      %v2963 = vpop.f32.mrb[0].mxu0
      %v2964 = vpop.f32.mrb[0].mxu0
      %v2965 = vadd.f32 0.0, %v2964
      %v2966 = vpop.f32.mrb[0].mxu0
      %2967 = vmatprep.mubr.bf16.mxu0 0
      %2968 = vmatmul.mubr.bf16.gmra.mrb[0].mxu0 %v2857
      %v2969 = vpop.f32.mrb[0].mxu0
      %v2970 = vadd.f32 0.0, %v2969
      %v2971 = vpop.f32.mrb[0].mxu0
      %v2972 = vpop.f32.mrb[0].mxu0
      %v2973 = vadd.f32 0.0, %v2972
      %v2974 = vpop.f32.mrb[0].mxu0
      %2975 = vmatprep.mubr.bf16.mxu0 0
      %2976 = vmatmul.mubr.bf16.gmra.mrb[0].mxu0 %v2859
      %v2977 = vpop.f32.mrb[0].mxu0
      %v2978 = vadd.f32 0.0, %v2977
      %v2979 = vpop.f32.mrb[0].mxu0
      %v2980 = vpop.f32.mrb[0].mxu0
      %v2981 = vadd.f32 0.0, %v2980
      %v2982 = vpop.f32.mrb[0].mxu0
      %2983 = vmatprep.mubr.bf16.mxu0 0
      %2984 = vmatmul.mubr.bf16.gmra.mrb[0].mxu0 %v2861
      %v2985 = vpop.f32.mrb[0].mxu0
      %v2986 = vadd.f32 0.0, %v2985
      %v2987 = vpop.f32.mrb[0].mxu0
      %v2988 = vpop.f32.mrb[0].mxu0
      %v2989 = vadd.f32 0.0, %v2988
      %v2990 = vpop.f32.mrb[0].mxu0
      %2991 = vmatprep.mubr.bf16.mxu0 0
      %2992 = vmatmul.mubr.bf16.gmra.mrb[0].mxu0 %v2863
      %v2993 = vpop.f32.mrb[0].mxu0
      %v2994 = vadd.f32 0.0, %v2993
      %v2995 = vpop.f32.mrb[0].mxu0
      %v2996 = vpop.f32.mrb[0].mxu0
      %v2997 = vadd.f32 0.0, %v2996
      %v2998 = vpop.f32.mrb[0].mxu0
      %2999 = vmatprep.mubr.bf16.mxu0 0
      %3000 = vmatmul.mubr.bf16.gmra.mrb[0].mxu0 %v2865
      %v3001 = vpop.f32.mrb[0].mxu0
      %v3002 = vadd.f32 0.0, %v3001
      %v3003 = vpop.f32.mrb[0].mxu0
      %v3004 = vpop.f32.mrb[0].mxu0
      %v3005 = vadd.f32 0.0, %v3004
      %v3006 = vpop.f32.mrb[0].mxu0
      %3007 = vmatprep.mubr.bf16.mxu0 0
      %3008 = vmatmul.mubr.bf16.gmra.mrb[0].mxu0 %v2867
      %v3009 = vpop.f32.mrb[0].mxu0
      %v3010 = vadd.f32 0.0, %v3009
      %v3011 = vpop.f32.mrb[0].mxu0
      %v3012 = vpop.f32.mrb[0].mxu0
      %v3013 = vadd.f32 0.0, %v3012
      %v3014 = vpop.f32.mrb[0].mxu0
      %3015 = vmatprep.mubr.bf16.mxu0 0
      %3016 = vmatmul.mubr.bf16.gmra.mrb[0].mxu0 %v2869
      %v3017 = vpop.f32.mrb[0].mxu0
      %v3018 = vadd.f32 0.0, %v3017
      %v3019 = vpop.f32.mrb[0].mxu0
      %v3020 = vpop.f32.mrb[0].mxu0
      %v3021 = vadd.f32 0.0, %v3020
      %v3022 = vpop.f32.mrb[0].mxu0
      %3023 = vmatprep.mubr.bf16.mxu0 0
      %3024 = vmatmul.mubr.bf16.gmra.mrb[0].mxu0 %v2871
      %v3025 = vpop.f32.mrb[0].mxu0
      %v3026 = vadd.f32 0.0, %v3025
      %v3027 = vpop.f32.mrb[0].mxu0
      %v3028 = vpop.f32.mrb[0].mxu0
      %v3029 = vadd.f32 0.0, %v3028
      %v3030 = vpop.f32.mrb[0].mxu0
      %3031 = vmatprep.mubr.bf16.mxu0 0
      %3032 = vmatmul.mubr.bf16.gmra.mrb[0].mxu0 %v2873
      %v3033 = vpop.f32.mrb[0].mxu0
      %v3034 = vadd.f32 0.0, %v3033
      %v3035 = vpop.f32.mrb[0].mxu0
      %v3036 = vpop.f32.mrb[0].mxu0
      %v3037 = vadd.f32 0.0, %v3036
      %v3038 = vpop.f32.mrb[0].mxu0
      %3039 = vdwg.mxu0
      %v3040 = vsel %vm2563, %v2914, 0.0
      %v3041 = vsel %vm2563, %v2917, 0.0
      %v3042 = vadd.f32 %v3040, %v3041
      %v3043 = vsel %vm2563, %v2922, 0.0
      %v3044 = vadd.f32 %v3042, %v3043
      %v3045 = vsel %vm2563, %v2925, 0.0
      %v3046 = vadd.f32 %v3044, %v3045
      %v3047 = vsel %vm2563, %v2930, 0.0
      %v3048 = vadd.f32 %v3046, %v3047
      %v3049 = vsel %vm2563, %v2933, 0.0
      %v3050 = vadd.f32 %v3048, %v3049
      %v3051 = vsel %vm2563, %v2938, 0.0
      %v3052 = vadd.f32 %v3050, %v3051
      %v3053 = vsel %vm2563, %v2941, 0.0
      %v3054 = vadd.f32 %v3052, %v3053
      %v3055 = vsel %vm2563, %v2946, 0.0
      %v3056 = vadd.f32 %v3054, %v3055
      %v3057 = vsel %vm2563, %v2949, 0.0
      %v3058 = vadd.f32 %v3056, %v3057
      %v3059 = vsel %vm2563, %v2954, 0.0
      %v3060 = vadd.f32 %v3058, %v3059
      %v3061 = vsel %vm2563, %v2957, 0.0
      %v3062 = vadd.f32 %v3060, %v3061
      %v3063 = vsel %vm2563, %v2962, 0.0
      %v3064 = vadd.f32 %v3062, %v3063
      %v3065 = vsel %vm2563, %v2965, 0.0
      %v3066 = vadd.f32 %v3064, %v3065
      %v3067 = vsel %vm2563, %v2970, 0.0
      %v3068 = vadd.f32 %v3066, %v3067
      %v3069 = vsel %vm2563, %v2973, 0.0
      %v3070 = vadd.f32 %v3068, %v3069
      %v3071 = vsel %vm2563, %v2978, 0.0
      %v3072 = vadd.f32 %v3070, %v3071
      %v3073 = vsel %vm2563, %v2981, 0.0
      %v3074 = vadd.f32 %v3072, %v3073
      %v3075 = vsel %vm2563, %v2986, 0.0
      %v3076 = vadd.f32 %v3074, %v3075
      %v3077 = vsel %vm2563, %v2989, 0.0
      %v3078 = vadd.f32 %v3076, %v3077
      %v3079 = vsel %vm2563, %v2994, 0.0
      %v3080 = vadd.f32 %v3078, %v3079
      %v3081 = vsel %vm2563, %v2997, 0.0
      %v3082 = vadd.f32 %v3080, %v3081
      %v3083 = vsel %vm2563, %v3002, 0.0
      %v3084 = vadd.f32 %v3082, %v3083
      %v3085 = vsel %vm2563, %v3005, 0.0
      %v3086 = vadd.f32 %v3084, %v3085
      %v3087 = vsel %vm2563, %v3010, 0.0
      %v3088 = vadd.f32 %v3086, %v3087
      %v3089 = vsel %vm2563, %v3013, 0.0
      %v3090 = vadd.f32 %v3088, %v3089
      %v3091 = vsel %vm2563, %v3018, 0.0
      %v3092 = vadd.f32 %v3090, %v3091
      %v3093 = vsel %vm2563, %v3021, 0.0
      %v3094 = vadd.f32 %v3092, %v3093
      %v3095 = vsel %vm2563, %v3026, 0.0
      %v3096 = vadd.f32 %v3094, %v3095
      %v3097 = vsel %vm2563, %v3029, 0.0
      %v3098 = vadd.f32 %v3096, %v3097
      %v3099 = vsel %vm2563, %v3034, 0.0
      %v3100 = vadd.f32 %v3098, %v3099
      %v3101 = vsel %vm2563, %v3037, 0.0
      %v3102 = vadd.f32 %v3100, %v3101
      %v3103 = vrot.slane %v3102, 4
      %v3104 = vadd.f32 %v3102, %v3103
      %v3105 = vrot.slane %v3104, 2
      %v3106 = vadd.f32 %v3104, %v3105
      %v3107 = vrot.slane %v3106, 1
      %v3108 = vadd.f32 %v3106, %v3107
      %v3109 = vmul.f32 %v2914, %v2914
      %v3110 = vmul.f32 %v2917, %v2917
      %v3111 = vmul.f32 %v2922, %v2922
      %v3112 = vmul.f32 %v2925, %v2925
      %v3113 = vmul.f32 %v2930, %v2930
      %v3114 = vmul.f32 %v2933, %v2933
      %v3115 = vmul.f32 %v2938, %v2938
      %v3116 = vmul.f32 %v2941, %v2941
      %v3117 = vmul.f32 %v2946, %v2946
      %v3118 = vmul.f32 %v2949, %v2949
      %v3119 = vmul.f32 %v2954, %v2954
      %v3120 = vmul.f32 %v2957, %v2957
      %v3121 = vmul.f32 %v2962, %v2962
      %v3122 = vmul.f32 %v2965, %v2965
      %v3123 = vmul.f32 %v2970, %v2970
      %v3124 = vmul.f32 %v2973, %v2973
      %v3125 = vmul.f32 %v2978, %v2978
      %v3126 = vmul.f32 %v2981, %v2981
      %v3127 = vmul.f32 %v2986, %v2986
      %v3128 = vmul.f32 %v2989, %v2989
      %v3129 = vmul.f32 %v2994, %v2994
      %v3130 = vmul.f32 %v2997, %v2997
      %v3131 = vmul.f32 %v3002, %v3002
      %v3132 = vmul.f32 %v3005, %v3005
      %v3133 = vmul.f32 %v3010, %v3010
      %v3134 = vmul.f32 %v3013, %v3013
      %v3135 = vmul.f32 %v3018, %v3018
      %v3136 = vmul.f32 %v3021, %v3021
      %v3137 = vmul.f32 %v3026, %v3026
      %v3138 = vmul.f32 %v3029, %v3029
      %v3139 = vmul.f32 %v3034, %v3034
      %v3140 = vmul.f32 %v3037, %v3037
      %v3141 = vsel %vm2563, %v3109, 0.0
      %v3142 = vsel %vm2563, %v3110, 0.0
      %v3143 = vadd.f32 %v3141, %v3142
      %v3144 = vsel %vm2563, %v3111, 0.0
      %v3145 = vadd.f32 %v3143, %v3144
      %v3146 = vsel %vm2563, %v3112, 0.0
      %v3147 = vadd.f32 %v3145, %v3146
      %v3148 = vsel %vm2563, %v3113, 0.0
      %v3149 = vadd.f32 %v3147, %v3148
      %v3150 = vsel %vm2563, %v3114, 0.0
      %v3151 = vadd.f32 %v3149, %v3150
      %v3152 = vsel %vm2563, %v3115, 0.0
      %v3153 = vadd.f32 %v3151, %v3152
      %v3154 = vsel %vm2563, %v3116, 0.0
      %v3155 = vadd.f32 %v3153, %v3154
      %v3156 = vsel %vm2563, %v3117, 0.0
      %v3157 = vadd.f32 %v3155, %v3156
      %v3158 = vsel %vm2563, %v3118, 0.0
      %v3159 = vadd.f32 %v3157, %v3158
      %v3160 = vsel %vm2563, %v3119, 0.0
      %v3161 = vadd.f32 %v3159, %v3160
      %v3162 = vsel %vm2563, %v3120, 0.0
      %v3163 = vadd.f32 %v3161, %v3162
      %v3164 = vsel %vm2563, %v3121, 0.0
      %v3165 = vadd.f32 %v3163, %v3164
      %v3166 = vsel %vm2563, %v3122, 0.0
      %v3167 = vadd.f32 %v3165, %v3166
      %v3168 = vsel %vm2563, %v3123, 0.0
      %v3169 = vadd.f32 %v3167, %v3168
      %v3170 = vsel %vm2563, %v3124, 0.0
      %v3171 = vadd.f32 %v3169, %v3170
      %v3172 = vsel %vm2563, %v3125, 0.0
      %v3173 = vadd.f32 %v3171, %v3172
      %v3174 = vsel %vm2563, %v3126, 0.0
      %v3175 = vadd.f32 %v3173, %v3174
      %v3176 = vsel %vm2563, %v3127, 0.0
      %v3177 = vadd.f32 %v3175, %v3176
      %v3178 = vsel %vm2563, %v3128, 0.0
      %v3179 = vadd.f32 %v3177, %v3178
      %v3180 = vsel %vm2563, %v3129, 0.0
      %v3181 = vadd.f32 %v3179, %v3180
      %v3182 = vsel %vm2563, %v3130, 0.0
      %v3183 = vadd.f32 %v3181, %v3182
      %v3184 = vsel %vm2563, %v3131, 0.0
      %v3185 = vadd.f32 %v3183, %v3184
      %v3186 = vsel %vm2563, %v3132, 0.0
      %v3187 = vadd.f32 %v3185, %v3186
      %v3188 = vsel %vm2563, %v3133, 0.0
      %v3189 = vadd.f32 %v3187, %v3188
      %v3190 = vsel %vm2563, %v3134, 0.0
      %v3191 = vadd.f32 %v3189, %v3190
      %v3192 = vsel %vm2563, %v3135, 0.0
      %v3193 = vadd.f32 %v3191, %v3192
      %v3194 = vsel %vm2563, %v3136, 0.0
      %v3195 = vadd.f32 %v3193, %v3194
      %v3196 = vsel %vm2563, %v3137, 0.0
      %v3197 = vadd.f32 %v3195, %v3196
      %v3198 = vsel %vm2563, %v3138, 0.0
      %v3199 = vadd.f32 %v3197, %v3198
      %v3200 = vsel %vm2563, %v3139, 0.0
      %v3201 = vadd.f32 %v3199, %v3200
      %v3202 = vsel %vm2563, %v3140, 0.0
      %v3203 = vadd.f32 %v3201, %v3202
      %v3204 = vrot.slane %v3203, 4
      %v3205 = vadd.f32 %v3203, %v3204
      %v3206 = vrot.slane %v3205, 2
      %v3207 = vadd.f32 %v3205, %v3206
      %v3208 = vrot.slane %v3207, 1
      %v3209 = vadd.f32 %v3207, %v3208
      %v3210 = vmul.f32 %v3108, 0.00390625
      %v3211 = vmul.f32 %v3209, 0.00390625
      %v3212 = vmul.f32 %v3210, %v3210
      %v3213 = vsub.f32 %v3211, %v3212
      %v3214 = vmax.f32 %v3213, 0.0
      %v3215 = vsub.f32 %v2914, %v3210
      %v3216 = vsub.f32 %v2917, %v3210
      %v3217 = vsub.f32 %v2922, %v3210
      %v3218 = vsub.f32 %v2925, %v3210
      %v3219 = vsub.f32 %v2930, %v3210
      %v3220 = vsub.f32 %v2933, %v3210
      %v3221 = vsub.f32 %v2938, %v3210
      %v3222 = vsub.f32 %v2941, %v3210
      %v3223 = vsub.f32 %v2946, %v3210
      %v3224 = vsub.f32 %v2949, %v3210
      %v3225 = vsub.f32 %v2954, %v3210
      %v3226 = vsub.f32 %v2957, %v3210
      %v3227 = vsub.f32 %v2962, %v3210
      %v3228 = vsub.f32 %v2965, %v3210
      %v3229 = vsub.f32 %v2970, %v3210
      %v3230 = vsub.f32 %v2973, %v3210
      %v3231 = vsub.f32 %v2978, %v3210
      %v3232 = vsub.f32 %v2981, %v3210
      %v3233 = vsub.f32 %v2986, %v3210
      %v3234 = vsub.f32 %v2989, %v3210
      %v3235 = vsub.f32 %v2994, %v3210
      %v3236 = vsub.f32 %v2997, %v3210
      %v3237 = vsub.f32 %v3002, %v3210
      %v3238 = vsub.f32 %v3005, %v3210
      %v3239 = vsub.f32 %v3010, %v3210
      %v3240 = vsub.f32 %v3013, %v3210
      %v3241 = vsub.f32 %v3018, %v3210
      %v3242 = vsub.f32 %v3021, %v3210
      %v3243 = vsub.f32 %v3026, %v3210
      %v3244 = vsub.f32 %v3029, %v3210
      %v3245 = vsub.f32 %v3034, %v3210
      %v3246 = vsub.f32 %v3037, %v3210
      %v3247 = vadd.f32 %v3214, 1e-05
      %v3248 = vrsqrt.pop %v3247
      %v3249 = vmul.f32 %v3215, %v3248
      %v3250 = vmul.f32 %v3216, %v3248
      %v3251 = vmul.f32 %v3217, %v3248
      %v3252 = vmul.f32 %v3218, %v3248
      %v3253 = vmul.f32 %v3219, %v3248
      %v3254 = vmul.f32 %v3220, %v3248
      %v3255 = vmul.f32 %v3221, %v3248
      %v3256 = vmul.f32 %v3222, %v3248
      %v3257 = vmul.f32 %v3223, %v3248
      %v3258 = vmul.f32 %v3224, %v3248
      %v3259 = vmul.f32 %v3225, %v3248
      %v3260 = vmul.f32 %v3226, %v3248
      %v3261 = vmul.f32 %v3227, %v3248
      %v3262 = vmul.f32 %v3228, %v3248
      %v3263 = vmul.f32 %v3229, %v3248
      %v3264 = vmul.f32 %v3230, %v3248
      %v3265 = vmul.f32 %v3231, %v3248
      %v3266 = vmul.f32 %v3232, %v3248
      %v3267 = vmul.f32 %v3233, %v3248
      %v3268 = vmul.f32 %v3234, %v3248
      %v3269 = vmul.f32 %v3235, %v3248
      %v3270 = vmul.f32 %v3236, %v3248
      %v3271 = vmul.f32 %v3237, %v3248
      %v3272 = vmul.f32 %v3238, %v3248
      %v3273 = vmul.f32 %v3239, %v3248
      %v3274 = vmul.f32 %v3240, %v3248
      %v3275 = vmul.f32 %v3241, %v3248
      %v3276 = vmul.f32 %v3242, %v3248
      %v3277 = vmul.f32 %v3243, %v3248
      %v3278 = vmul.f32 %v3244, %v3248
      %v3279 = vmul.f32 %v3245, %v3248
      %v3280 = vmul.f32 %v3246, %v3248
      %v3281 = vmax.f32 %v3249, 0.0
      %v3282 = vmax.f32 %v3250, 0.0
      %v3283 = vmax.f32 %v3251, 0.0
      %v3284 = vmax.f32 %v3252, 0.0
      %v3285 = vmax.f32 %v3253, 0.0
      %v3286 = vmax.f32 %v3254, 0.0
      %v3287 = vmax.f32 %v3255, 0.0
      %v3288 = vmax.f32 %v3256, 0.0
      %v3289 = vmax.f32 %v3257, 0.0
      %v3290 = vmax.f32 %v3258, 0.0
      %v3291 = vmax.f32 %v3259, 0.0
      %v3292 = vmax.f32 %v3260, 0.0
      %v3293 = vmax.f32 %v3261, 0.0
      %v3294 = vmax.f32 %v3262, 0.0
      %v3295 = vmax.f32 %v3263, 0.0
      %v3296 = vmax.f32 %v3264, 0.0
      %v3297 = vmax.f32 %v3265, 0.0
      %v3298 = vmax.f32 %v3266, 0.0
      %v3299 = vmax.f32 %v3267, 0.0
      %v3300 = vmax.f32 %v3268, 0.0
      %v3301 = vmax.f32 %v3269, 0.0
      %v3302 = vmax.f32 %v3270, 0.0
      %v3303 = vmax.f32 %v3271, 0.0
      %v3304 = vmax.f32 %v3272, 0.0
      %v3305 = vmax.f32 %v3273, 0.0
      %v3306 = vmax.f32 %v3274, 0.0
      %v3307 = vmax.f32 %v3275, 0.0
      %v3308 = vmax.f32 %v3276, 0.0
      %v3309 = vmax.f32 %v3277, 0.0
      %v3310 = vmax.f32 %v3278, 0.0
      %v3311 = vmax.f32 %v3279, 0.0
      %v3312 = vmax.f32 %v3280, 0.0
      %v3313 = vpack.c.bf16 %v3282, %v3281
      %v3314 = vpack.c.bf16 %v3284, %v3283
      %v3315 = vpack.c.bf16 %v3286, %v3285
      %v3316 = vpack.c.bf16 %v3288, %v3287
      %v3317 = vpack.c.bf16 %v3290, %v3289
      %v3318 = vpack.c.bf16 %v3292, %v3291
      %v3319 = vpack.c.bf16 %v3294, %v3293
      %v3320 = vpack.c.bf16 %v3296, %v3295
      %v3321 = vpack.c.bf16 %v3298, %v3297
      %v3322 = vpack.c.bf16 %v3300, %v3299
      %v3323 = vpack.c.bf16 %v3302, %v3301
      %v3324 = vpack.c.bf16 %v3304, %v3303
      %v3325 = vpack.c.bf16 %v3306, %v3305
      %v3326 = vpack.c.bf16 %v3308, %v3307
      %v3327 = vpack.c.bf16 %v3310, %v3309
      %v3328 = vpack.c.bf16 %v3312, %v3311
      %v3345 = vunpack.c.l.b16 %v3313
      %v3346 = vunpack.c.h.b16 %v3313
      %v3347 = vunpack.c.l.b16 %v3314
      %v3348 = vunpack.c.h.b16 %v3314
      %v3349 = vunpack.c.l.b16 %v3315
      %v3350 = vunpack.c.h.b16 %v3315
      %v3351 = vunpack.c.l.b16 %v3316
      %v3352 = vunpack.c.h.b16 %v3316
      %v3353 = vunpack.c.l.b16 %v3317
      %v3354 = vunpack.c.h.b16 %v3317
      %v3355 = vunpack.c.l.b16 %v3318
      %v3356 = vunpack.c.h.b16 %v3318
      %v3357 = vunpack.c.l.b16 %v3319
      %v3358 = vunpack.c.h.b16 %v3319
      %v3359 = vunpack.c.l.b16 %v3320
      %v3360 = vunpack.c.h.b16 %v3320
      %v3361 = vunpack.c.l.b16 %v3321
      %v3362 = vunpack.c.h.b16 %v3321
      %v3363 = vunpack.c.l.b16 %v3322
      %v3364 = vunpack.c.h.b16 %v3322
      %v3365 = vunpack.c.l.b16 %v3323
      %v3366 = vunpack.c.h.b16 %v3323
      %v3367 = vunpack.c.l.b16 %v3324
      %v3368 = vunpack.c.h.b16 %v3324
      %v3369 = vunpack.c.l.b16 %v3325
      %v3370 = vunpack.c.h.b16 %v3325
      %v3371 = vunpack.c.l.b16 %v3326
      %v3372 = vunpack.c.h.b16 %v3326
      %v3373 = vunpack.c.l.b16 %v3327
      %v3374 = vunpack.c.h.b16 %v3327
      %v3375 = vunpack.c.l.b16 %v3328
      %v3376 = vunpack.c.h.b16 %v3328
      %v3377 = vpack.c.b16 %v3345, %v3345
      %v3378 = vpack.c.b16 %v3346, %v3346
      %v3379 = vpack.c.b16 %v3347, %v3347
      %v3380 = vpack.c.b16 %v3348, %v3348
      %v3381 = vpack.c.b16 %v3349, %v3349
      %v3382 = vpack.c.b16 %v3350, %v3350
      %v3383 = vpack.c.b16 %v3351, %v3351
      %v3384 = vpack.c.b16 %v3352, %v3352
      %v3385 = vpack.c.b16 %v3353, %v3353
      %v3386 = vpack.c.b16 %v3354, %v3354
      %v3387 = vpack.c.b16 %v3355, %v3355
      %v3388 = vpack.c.b16 %v3356, %v3356
      %v3389 = vpack.c.b16 %v3357, %v3357
      %v3390 = vpack.c.b16 %v3358, %v3358
      %v3391 = vpack.c.b16 %v3359, %v3359
      %v3392 = vpack.c.b16 %v3360, %v3360
      %v3393 = vpack.c.b16 %v3361, %v3361
      %v3394 = vpack.c.b16 %v3362, %v3362
      %v3395 = vpack.c.b16 %v3363, %v3363
      %v3396 = vpack.c.b16 %v3364, %v3364
      %v3397 = vpack.c.b16 %v3365, %v3365
      %v3398 = vpack.c.b16 %v3366, %v3366
      %v3399 = vpack.c.b16 %v3367, %v3367
      %v3400 = vpack.c.b16 %v3368, %v3368
      %v3401 = vpack.c.b16 %v3369, %v3369
      %v3402 = vpack.c.b16 %v3370, %v3370
      %v3403 = vpack.c.b16 %v3371, %v3371
      %v3404 = vpack.c.b16 %v3372, %v3372
      %v3405 = vpack.c.b16 %v3373, %v3373
      %v3406 = vpack.c.b16 %v3374, %v3374
      %v3407 = vpack.c.b16 %v3375, %v3375
      %v3408 = vpack.c.b16 %v3376, %v3376
      %v3410 = vshrl.u32 %v3377, 16
      %v3412 = vrot.slane %v3410, 7
      %v3413 = vshll.u32 %v3377, 16
      %v3415 = vor.u32 %v3412, %v3413
      %v3416 = vrot.slane %v3412, 4
      %v3418 = vshrl.u32 %v3378, 16
      %v3420 = vrot.slane %v3418, 7
      %v3421 = vshll.u32 %v3378, 16
      %v3423 = vor.u32 %v3420, %v3421
      %v3424 = vsel %vm423, %v3416, %v3423
      %v3425 = vrot.slane %v3420, 4
      %v3427 = vshrl.u32 %v3379, 16
      %v3429 = vrot.slane %v3427, 7
      %v3430 = vshll.u32 %v3379, 16
      %v3432 = vor.u32 %v3429, %v3430
      %v3433 = vrot.slane %v3429, 4
      %v3435 = vshrl.u32 %v3380, 16
      %v3437 = vrot.slane %v3435, 7
      %v3438 = vshll.u32 %v3380, 16
      %v3440 = vor.u32 %v3437, %v3438
      %v3441 = vsel %vm423, %v3433, %v3440
      %v3442 = vrot.slane %v3437, 4
      %v3444 = vshrl.u32 %v3381, 16
      %v3446 = vrot.slane %v3444, 7
      %v3447 = vshll.u32 %v3381, 16
      %v3449 = vor.u32 %v3446, %v3447
      %v3450 = vrot.slane %v3446, 4
      %v3452 = vshrl.u32 %v3382, 16
      %v3454 = vrot.slane %v3452, 7
      %v3455 = vshll.u32 %v3382, 16
      %v3457 = vor.u32 %v3454, %v3455
      %v3458 = vsel %vm423, %v3450, %v3457
      %v3459 = vrot.slane %v3454, 4
      %v3461 = vshrl.u32 %v3383, 16
      %v3463 = vrot.slane %v3461, 7
      %v3464 = vshll.u32 %v3383, 16
      %v3466 = vor.u32 %v3463, %v3464
      %v3467 = vrot.slane %v3463, 4
      %v3469 = vshrl.u32 %v3384, 16
      %v3471 = vrot.slane %v3469, 7
      %v3472 = vshll.u32 %v3384, 16
      %v3474 = vor.u32 %v3471, %v3472
      %v3475 = vsel %vm423, %v3467, %v3474
      %v3476 = vrot.slane %v3471, 4
      %v3478 = vshrl.u32 %v3385, 16
      %v3480 = vrot.slane %v3478, 7
      %v3481 = vshll.u32 %v3385, 16
      %v3483 = vor.u32 %v3480, %v3481
      %v3484 = vrot.slane %v3480, 4
      %v3486 = vshrl.u32 %v3386, 16
      %v3488 = vrot.slane %v3486, 7
      %v3489 = vshll.u32 %v3386, 16
      %v3491 = vor.u32 %v3488, %v3489
      %v3492 = vsel %vm423, %v3484, %v3491
      %v3493 = vrot.slane %v3488, 4
      %v3495 = vshrl.u32 %v3387, 16
      %v3497 = vrot.slane %v3495, 7
      %v3498 = vshll.u32 %v3387, 16
      %v3500 = vor.u32 %v3497, %v3498
      %v3501 = vrot.slane %v3497, 4
      %v3503 = vshrl.u32 %v3388, 16
      %v3505 = vrot.slane %v3503, 7
      %v3506 = vshll.u32 %v3388, 16
      %v3508 = vor.u32 %v3505, %v3506
      %v3509 = vsel %vm423, %v3501, %v3508
      %v3510 = vrot.slane %v3505, 4
      %v3512 = vshrl.u32 %v3389, 16
      %v3514 = vrot.slane %v3512, 7
      %v3515 = vshll.u32 %v3389, 16
      %v3517 = vor.u32 %v3514, %v3515
      %v3518 = vrot.slane %v3514, 4
      %v3520 = vshrl.u32 %v3390, 16
      %v3522 = vrot.slane %v3520, 7
      %v3523 = vshll.u32 %v3390, 16
      %v3525 = vor.u32 %v3522, %v3523
      %v3526 = vsel %vm423, %v3518, %v3525
      %v3527 = vrot.slane %v3522, 4
      %v3529 = vshrl.u32 %v3391, 16
      %v3531 = vrot.slane %v3529, 7
      %v3532 = vshll.u32 %v3391, 16
      %v3534 = vor.u32 %v3531, %v3532
      %v3535 = vrot.slane %v3531, 4
      %v3537 = vshrl.u32 %v3392, 16
      %v3539 = vrot.slane %v3537, 7
      %v3540 = vshll.u32 %v3392, 16
      %v3542 = vor.u32 %v3539, %v3540
      %v3543 = vsel %vm423, %v3535, %v3542
      %v3544 = vrot.slane %v3539, 4
      %v3546 = vshrl.u32 %v3393, 16
      %v3548 = vrot.slane %v3546, 7
      %v3549 = vshll.u32 %v3393, 16
      %v3551 = vor.u32 %v3548, %v3549
      %v3552 = vrot.slane %v3548, 4
      %v3554 = vshrl.u32 %v3394, 16
      %v3556 = vrot.slane %v3554, 7
      %v3557 = vshll.u32 %v3394, 16
      %v3559 = vor.u32 %v3556, %v3557
      %v3560 = vsel %vm423, %v3552, %v3559
      %v3561 = vrot.slane %v3556, 4
      %v3563 = vshrl.u32 %v3395, 16
      %v3565 = vrot.slane %v3563, 7
      %v3566 = vshll.u32 %v3395, 16
      %v3568 = vor.u32 %v3565, %v3566
      %v3569 = vrot.slane %v3565, 4
      %v3571 = vshrl.u32 %v3396, 16
      %v3573 = vrot.slane %v3571, 7
      %v3574 = vshll.u32 %v3396, 16
      %v3576 = vor.u32 %v3573, %v3574
      %v3577 = vsel %vm423, %v3569, %v3576
      %v3578 = vrot.slane %v3573, 4
      %v3580 = vshrl.u32 %v3397, 16
      %v3582 = vrot.slane %v3580, 7
      %v3583 = vshll.u32 %v3397, 16
      %v3585 = vor.u32 %v3582, %v3583
      %v3586 = vrot.slane %v3582, 4
      %v3588 = vshrl.u32 %v3398, 16
      %v3590 = vrot.slane %v3588, 7
      %v3591 = vshll.u32 %v3398, 16
      %v3593 = vor.u32 %v3590, %v3591
      %v3594 = vsel %vm423, %v3586, %v3593
      %v3595 = vrot.slane %v3590, 4
      %v3597 = vshrl.u32 %v3399, 16
      %v3599 = vrot.slane %v3597, 7
      %v3600 = vshll.u32 %v3399, 16
      %v3602 = vor.u32 %v3599, %v3600
      %v3603 = vrot.slane %v3599, 4
      %v3605 = vshrl.u32 %v3400, 16
      %v3607 = vrot.slane %v3605, 7
      %v3608 = vshll.u32 %v3400, 16
      %v3610 = vor.u32 %v3607, %v3608
      %v3611 = vsel %vm423, %v3603, %v3610
      %v3612 = vrot.slane %v3607, 4
      %v3614 = vshrl.u32 %v3401, 16
      %v3616 = vrot.slane %v3614, 7
      %v3617 = vshll.u32 %v3401, 16
      %v3619 = vor.u32 %v3616, %v3617
      %v3620 = vrot.slane %v3616, 4
      %v3622 = vshrl.u32 %v3402, 16
      %v3624 = vrot.slane %v3622, 7
      %v3625 = vshll.u32 %v3402, 16
      %v3627 = vor.u32 %v3624, %v3625
      %v3628 = vsel %vm423, %v3620, %v3627
      %v3629 = vrot.slane %v3624, 4
      %v3631 = vshrl.u32 %v3403, 16
      %v3633 = vrot.slane %v3631, 7
      %v3634 = vshll.u32 %v3403, 16
      %v3636 = vor.u32 %v3633, %v3634
      %v3637 = vrot.slane %v3633, 4
      %v3639 = vshrl.u32 %v3404, 16
      %v3641 = vrot.slane %v3639, 7
      %v3642 = vshll.u32 %v3404, 16
      %v3644 = vor.u32 %v3641, %v3642
      %v3645 = vsel %vm423, %v3637, %v3644
      %v3646 = vrot.slane %v3641, 4
      %v3648 = vshrl.u32 %v3405, 16
      %v3650 = vrot.slane %v3648, 7
      %v3651 = vshll.u32 %v3405, 16
      %v3653 = vor.u32 %v3650, %v3651
      %v3654 = vrot.slane %v3650, 4
      %v3656 = vshrl.u32 %v3406, 16
      %v3658 = vrot.slane %v3656, 7
      %v3659 = vshll.u32 %v3406, 16
      %v3661 = vor.u32 %v3658, %v3659
      %v3662 = vsel %vm423, %v3654, %v3661
      %v3663 = vrot.slane %v3658, 4
      %v3665 = vshrl.u32 %v3407, 16
      %v3667 = vrot.slane %v3665, 7
      %v3668 = vshll.u32 %v3407, 16
      %v3670 = vor.u32 %v3667, %v3668
      %v3671 = vrot.slane %v3667, 4
      %v3673 = vshrl.u32 %v3408, 16
      %v3675 = vrot.slane %v3673, 7
      %v3676 = vshll.u32 %v3408, 16
      %v3678 = vor.u32 %v3675, %v3676
      %v3679 = vsel %vm423, %v3671, %v3678
      %v3680 = vrot.slane %v3675, 4
      %v3729 = vsel %vm746, %v3415, %v928
      %3730 = vst [vmem:[%s744] sm:$0xf] %v3729
      %3731 = vst.msk [vmem:[%s744 + $0x4] sm:$0xf] %vm172, %v3424
      %v3732 = vld [vmem:[%s744 + $0x8] sm:$0x1]
      %v3733 = vsel %vm183, %v3425, %v3732
      %3734 = vst [vmem:[%s744 + $0x8] sm:$0x1] %v3733
      %v3735 = vld [vmem:[%s744 + $0xc] sm:$0xf]
      %v3736 = vsel %vm746, %v3432, %v3735
      %3737 = vst [vmem:[%s744 + $0xc] sm:$0xf] %v3736
      %3738 = vst.msk [vmem:[%s744 + $0x10] sm:$0xf] %vm172, %v3441
      %v3739 = vld [vmem:[%s744 + $0x14] sm:$0x1]
      %v3740 = vsel %vm183, %v3442, %v3739
      %3741 = vst [vmem:[%s744 + $0x14] sm:$0x1] %v3740
      %v3742 = vld [vmem:[%s744 + $0x18] sm:$0xf]
      %v3743 = vsel %vm746, %v3449, %v3742
      %3744 = vst [vmem:[%s744 + $0x18] sm:$0xf] %v3743
      %3745 = vst.msk [vmem:[%s744 + $0x1c] sm:$0xf] %vm172, %v3458
      %v3746 = vld [vmem:[%s744 + $0x20] sm:$0x1]
      %v3747 = vsel %vm183, %v3459, %v3746
      %3748 = vst [vmem:[%s744 + $0x20] sm:$0x1] %v3747
      %v3749 = vld [vmem:[%s744 + $0x24] sm:$0xf]
      %v3750 = vsel %vm746, %v3466, %v3749
      %3751 = vst [vmem:[%s744 + $0x24] sm:$0xf] %v3750
      %3752 = vst.msk [vmem:[%s744 + $0x28] sm:$0xf] %vm172, %v3475
      %v3753 = vld [vmem:[%s744 + $0x2c] sm:$0x1]
      %v3754 = vsel %vm183, %v3476, %v3753
      %3755 = vst [vmem:[%s744 + $0x2c] sm:$0x1] %v3754
      %v3756 = vld [vmem:[%s744 + $0x30] sm:$0xf]
      %v3757 = vsel %vm746, %v3483, %v3756
      %3758 = vst [vmem:[%s744 + $0x30] sm:$0xf] %v3757
      %3759 = vst.msk [vmem:[%s744 + $0x34] sm:$0xf] %vm172, %v3492
      %v3760 = vld [vmem:[%s744 + $0x38] sm:$0x1]
      %v3761 = vsel %vm183, %v3493, %v3760
      %3762 = vst [vmem:[%s744 + $0x38] sm:$0x1] %v3761
      %v3763 = vld [vmem:[%s744 + $0x3c] sm:$0xf]
      %v3764 = vsel %vm746, %v3500, %v3763
      %3765 = vst [vmem:[%s744 + $0x3c] sm:$0xf] %v3764
      %3766 = vst.msk [vmem:[%s744 + $0x40] sm:$0xf] %vm172, %v3509
      %v3767 = vld [vmem:[%s744 + $0x44] sm:$0x1]
      %v3768 = vsel %vm183, %v3510, %v3767
      %3769 = vst [vmem:[%s744 + $0x44] sm:$0x1] %v3768
      %v3770 = vld [vmem:[%s744 + $0x48] sm:$0xf]
      %v3771 = vsel %vm746, %v3517, %v3770
      %3772 = vst [vmem:[%s744 + $0x48] sm:$0xf] %v3771
      %3773 = vst.msk [vmem:[%s744 + $0x4c] sm:$0xf] %vm172, %v3526
      %v3774 = vld [vmem:[%s744 + $0x50] sm:$0x1]
      %v3775 = vsel %vm183, %v3527, %v3774
      %3776 = vst [vmem:[%s744 + $0x50] sm:$0x1] %v3775
      %v3777 = vld [vmem:[%s744 + $0x54] sm:$0xf]
      %v3778 = vsel %vm746, %v3534, %v3777
      %3779 = vst [vmem:[%s744 + $0x54] sm:$0xf] %v3778
      %3780 = vst.msk [vmem:[%s744 + $0x58] sm:$0xf] %vm172, %v3543
      %v3781 = vld [vmem:[%s744 + $0x5c] sm:$0x1]
      %v3782 = vsel %vm183, %v3544, %v3781
      %3783 = vst [vmem:[%s744 + $0x5c] sm:$0x1] %v3782
      %v3784 = vld [vmem:[%s744 + $0x60] sm:$0xf]
      %v3785 = vsel %vm746, %v3551, %v3784
      %3786 = vst [vmem:[%s744 + $0x60] sm:$0xf] %v3785
      %3787 = vst.msk [vmem:[%s744 + $0x64] sm:$0xf] %vm172, %v3560
      %v3788 = vld [vmem:[%s744 + $0x68] sm:$0x1]
      %v3789 = vsel %vm183, %v3561, %v3788
      %3790 = vst [vmem:[%s744 + $0x68] sm:$0x1] %v3789
      %v3791 = vld [vmem:[%s744 + $0x6c] sm:$0xf]
      %v3792 = vsel %vm746, %v3568, %v3791
      %3793 = vst [vmem:[%s744 + $0x6c] sm:$0xf] %v3792
      %3794 = vst.msk [vmem:[%s744 + $0x70] sm:$0xf] %vm172, %v3577
      %v3795 = vld [vmem:[%s744 + $0x74] sm:$0x1]
      %v3796 = vsel %vm183, %v3578, %v3795
      %3797 = vst [vmem:[%s744 + $0x74] sm:$0x1] %v3796
      %v3798 = vld [vmem:[%s744 + $0x78] sm:$0xf]
      %v3799 = vsel %vm746, %v3585, %v3798
      %3800 = vst [vmem:[%s744 + $0x78] sm:$0xf] %v3799
      %3801 = vst.msk [vmem:[%s744 + $0x7c] sm:$0xf] %vm172, %v3594
      %v3802 = vld [vmem:[%s744 + $0x80] sm:$0x1]
      %v3803 = vsel %vm183, %v3595, %v3802
      %3804 = vst [vmem:[%s744 + $0x80] sm:$0x1] %v3803
      %v3805 = vld [vmem:[%s744 + $0x84] sm:$0xf]
      %v3806 = vsel %vm746, %v3602, %v3805
      %3807 = vst [vmem:[%s744 + $0x84] sm:$0xf] %v3806
      %3808 = vst.msk [vmem:[%s744 + $0x88] sm:$0xf] %vm172, %v3611
      %v3809 = vld [vmem:[%s744 + $0x8c] sm:$0x1]
      %v3810 = vsel %vm183, %v3612, %v3809
      %3811 = vst [vmem:[%s744 + $0x8c] sm:$0x1] %v3810
      %v3812 = vld [vmem:[%s744 + $0x90] sm:$0xf]
      %v3813 = vsel %vm746, %v3619, %v3812
      %3814 = vst [vmem:[%s744 + $0x90] sm:$0xf] %v3813
      %3815 = vst.msk [vmem:[%s744 + $0x94] sm:$0xf] %vm172, %v3628
      %v3816 = vld [vmem:[%s744 + $0x98] sm:$0x1]
      %v3817 = vsel %vm183, %v3629, %v3816
      %3818 = vst [vmem:[%s744 + $0x98] sm:$0x1] %v3817
      %v3819 = vld [vmem:[%s744 + $0x9c] sm:$0xf]
      %v3820 = vsel %vm746, %v3636, %v3819
      %3821 = vst [vmem:[%s744 + $0x9c] sm:$0xf] %v3820
      %3822 = vst.msk [vmem:[%s744 + $0xa0] sm:$0xf] %vm172, %v3645
      %v3823 = vld [vmem:[%s744 + $0xa4] sm:$0x1]
      %v3824 = vsel %vm183, %v3646, %v3823
      %3825 = vst [vmem:[%s744 + $0xa4] sm:$0x1] %v3824
      %v3826 = vld [vmem:[%s744 + $0xa8] sm:$0xf]
      %v3827 = vsel %vm746, %v3653, %v3826
      %3828 = vst [vmem:[%s744 + $0xa8] sm:$0xf] %v3827
      %3829 = vst.msk [vmem:[%s744 + $0xac] sm:$0xf] %vm172, %v3662
      %v3830 = vld [vmem:[%s744 + $0xb0] sm:$0x1]
      %v3831 = vsel %vm183, %v3663, %v3830
      %3832 = vst [vmem:[%s744 + $0xb0] sm:$0x1] %v3831
      %v3833 = vld [vmem:[%s744 + $0xb4] sm:$0xf]
      %v3834 = vsel %vm746, %v3670, %v3833
      %3835 = vst [vmem:[%s744 + $0xb4] sm:$0xf] %v3834
      %3836 = vst.msk [vmem:[%s744 + $0xb8] sm:$0xf] %vm172, %v3679
      %v3837 = vld [vmem:[%s744 + $0xbc] sm:$0x1]
      %v3838 = vsel %vm183, %v3680, %v3837
      %3839 = vst [vmem:[%s744 + $0xbc] sm:$0x1] %v3838
      %v3840 = vld [vmem:[%s2] sm:$0xf]
      %v3841 = vld [vmem:[%s2 + $0x4] sm:$0xf]
      %v3842 = vld [vmem:[%s2 + $0x8] sm:$0xf]
      %v3843 = vld [vmem:[%s2 + $0xc] sm:$0xf]
      %v3844 = vld [vmem:[%s2 + $0x10] sm:$0x3]
      %v3845 = vld [vmem:[#allocation2] sm:$0xf]
      %v3846 = vld [vmem:[#allocation2 + $0x4] sm:$0xf]
      %v3847 = vld [vmem:[#allocation2 + $0xc] sm:$0xf]
      %v3848 = vld [vmem:[#allocation2 + $0x10] sm:$0xf]
      %v3849 = vld [vmem:[#allocation2 + $0x18] sm:$0xf]
      %v3850 = vld [vmem:[#allocation2 + $0x1c] sm:$0xf]
      %v3851 = vld [vmem:[#allocation2 + $0x24] sm:$0xf]
      %v3852 = vld [vmem:[#allocation2 + $0x28] sm:$0xf]
      %v3853 = vld [vmem:[#allocation2 + $0x30] sm:$0xf]
      %v3854 = vld [vmem:[#allocation2 + $0x34] sm:$0xf]
      %v3855 = vld [vmem:[#allocation2 + $0x3c] sm:$0xf]
      %v3856 = vld [vmem:[#allocation2 + $0x40] sm:$0xf]
      %v3857 = vld [vmem:[#allocation2 + $0x48] sm:$0xf]
      %v3858 = vld [vmem:[#allocation2 + $0x4c] sm:$0xf]
      %v3859 = vld [vmem:[#allocation2 + $0x54] sm:$0xf]
      %v3860 = vld [vmem:[#allocation2 + $0x58] sm:$0xf]
      %v3861 = vld [vmem:[#allocation2 + $0x60] sm:$0xf]
      %v3862 = vld [vmem:[#allocation2 + $0x64] sm:$0xf]
      %v3863 = vld [vmem:[#allocation2 + $0x6c] sm:$0xf]
      %v3864 = vld [vmem:[#allocation2 + $0x70] sm:$0xf]
      %v3865 = vld [vmem:[#allocation2 + $0x78] sm:$0xf]
      %v3866 = vld [vmem:[#allocation2 + $0x7c] sm:$0xf]
      %v3867 = vld [vmem:[#allocation2 + $0x84] sm:$0xf]
      %v3868 = vld [vmem:[#allocation2 + $0x88] sm:$0xf]
      %v3869 = vld [vmem:[#allocation2 + $0x90] sm:$0xf]
      %v3870 = vld [vmem:[#allocation2 + $0x94] sm:$0xf]
      %v3871 = vld [vmem:[#allocation2 + $0x9c] sm:$0xf]
      %v3872 = vld [vmem:[#allocation2 + $0xa0] sm:$0xf]
      %v3873 = vld [vmem:[#allocation2 + $0xa8] sm:$0xf]
      %v3874 = vld [vmem:[#allocation2 + $0xac] sm:$0xf]
      %v3875 = vld [vmem:[#allocation2 + $0xb4] sm:$0xf]
      %v3876 = vld [vmem:[#allocation2 + $0xb8] sm:$0xf]
      %v3877 = vld [vmem:[#allocation2 + $0x8] sm:$0x1]
      %v3878 = vld [vmem:[#allocation2 + $0x14] sm:$0x1]
      %v3879 = vld [vmem:[#allocation2 + $0x20] sm:$0x1]
      %v3880 = vld [vmem:[#allocation2 + $0x2c] sm:$0x1]
      %v3881 = vld [vmem:[#allocation2 + $0x38] sm:$0x1]
      %v3882 = vld [vmem:[#allocation2 + $0x44] sm:$0x1]
      %v3883 = vld [vmem:[#allocation2 + $0x50] sm:$0x1]
      %v3884 = vld [vmem:[#allocation2 + $0x5c] sm:$0x1]
      %v3885 = vld [vmem:[#allocation2 + $0x68] sm:$0x1]
      %v3886 = vld [vmem:[#allocation2 + $0x74] sm:$0x1]
      %v3887 = vld [vmem:[#allocation2 + $0x80] sm:$0x1]
      %v3888 = vld [vmem:[#allocation2 + $0x8c] sm:$0x1]
      %v3889 = vld [vmem:[#allocation2 + $0x98] sm:$0x1]
      %v3890 = vld [vmem:[#allocation2 + $0xa4] sm:$0x1]
      %v3891 = vld [vmem:[#allocation2 + $0xb0] sm:$0x1]
      %v3892 = vld [vmem:[#allocation2 + $0xbc] sm:$0x1]
      %v3893 = vld [vmem:[#allocation2] sm:$0xe]
      %v3894 = vld [vmem:[#allocation2 + $0xc] sm:$0xe]
      %v3895 = vld [vmem:[#allocation2 + $0x18] sm:$0xe]
      %v3896 = vld [vmem:[#allocation2 + $0x24] sm:$0xe]
      %v3897 = vld [vmem:[#allocation2 + $0x30] sm:$0xe]
      %v3898 = vld [vmem:[#allocation2 + $0x3c] sm:$0xe]
      %v3899 = vld [vmem:[#allocation2 + $0x48] sm:$0xe]
      %v3900 = vld [vmem:[#allocation2 + $0x54] sm:$0xe]
      %v3901 = vld [vmem:[#allocation2 + $0x60] sm:$0xe]
      %v3902 = vld [vmem:[#allocation2 + $0x6c] sm:$0xe]
      %v3903 = vld [vmem:[#allocation2 + $0x78] sm:$0xe]
      %v3904 = vld [vmem:[#allocation2 + $0x84] sm:$0xe]
      %v3905 = vld [vmem:[#allocation2 + $0x90] sm:$0xe]
      %v3906 = vld [vmem:[#allocation2 + $0x9c] sm:$0xe]
      %v3907 = vld [vmem:[#allocation2 + $0xa8] sm:$0xe]
      %v3908 = vld [vmem:[#allocation2 + $0xb4] sm:$0xe]
      %v3909 = vld [vmem:[%s744] sm:$0xf]
      %v3910 = vld [vmem:[%s744 + $0x4] sm:$0xf]
      %v3911 = vld [vmem:[%s744 + $0xc] sm:$0xf]
      %v3912 = vld [vmem:[%s744 + $0x10] sm:$0xf]
      %v3913 = vld [vmem:[%s744 + $0x18] sm:$0xf]
      %v3914 = vld [vmem:[%s744 + $0x1c] sm:$0xf]
      %v3915 = vld [vmem:[%s744 + $0x24] sm:$0xf]
      %v3916 = vld [vmem:[%s744 + $0x28] sm:$0xf]
      %v3917 = vld [vmem:[%s744 + $0x30] sm:$0xf]
      %v3918 = vld [vmem:[%s744 + $0x34] sm:$0xf]
      %v3919 = vld [vmem:[%s744 + $0x3c] sm:$0xf]
      %v3920 = vld [vmem:[%s744 + $0x40] sm:$0xf]
      %v3921 = vld [vmem:[%s744 + $0x48] sm:$0xf]
      %v3922 = vld [vmem:[%s744 + $0x4c] sm:$0xf]
      %v3923 = vld [vmem:[%s744 + $0x54] sm:$0xf]
      %v3924 = vld [vmem:[%s744 + $0x58] sm:$0xf]
      %v3925 = vld [vmem:[%s744 + $0x60] sm:$0xf]
      %v3926 = vld [vmem:[%s744 + $0x64] sm:$0xf]
      %v3927 = vld [vmem:[%s744 + $0x6c] sm:$0xf]
      %v3928 = vld [vmem:[%s744 + $0x70] sm:$0xf]
      %v3929 = vld [vmem:[%s744 + $0x78] sm:$0xf]
      %v3930 = vld [vmem:[%s744 + $0x7c] sm:$0xf]
      %v3931 = vld [vmem:[%s744 + $0x84] sm:$0xf]
      %v3932 = vld [vmem:[%s744 + $0x88] sm:$0xf]
      %v3933 = vld [vmem:[%s744 + $0x90] sm:$0xf]
      %v3934 = vld [vmem:[%s744 + $0x94] sm:$0xf]
      %v3935 = vld [vmem:[%s744 + $0x9c] sm:$0xf]
      %v3936 = vld [vmem:[%s744 + $0xa0] sm:$0xf]
      %v3937 = vld [vmem:[%s744 + $0xa8] sm:$0xf]
      %v3938 = vld [vmem:[%s744 + $0xac] sm:$0xf]
      %v3939 = vld [vmem:[%s744 + $0xb4] sm:$0xf]
      %v3940 = vld [vmem:[%s744 + $0xb8] sm:$0xf]
      %v3941 = vld [vmem:[%s744 + $0x8] sm:$0x1]
      %v3942 = vld [vmem:[%s744 + $0x14] sm:$0x1]
      %v3943 = vld [vmem:[%s744 + $0x20] sm:$0x1]
      %v3944 = vld [vmem:[%s744 + $0x2c] sm:$0x1]
      %v3945 = vld [vmem:[%s744 + $0x38] sm:$0x1]
      %v3946 = vld [vmem:[%s744 + $0x44] sm:$0x1]
      %v3947 = vld [vmem:[%s744 + $0x50] sm:$0x1]
      %v3948 = vld [vmem:[%s744 + $0x5c] sm:$0x1]
      %v3949 = vld [vmem:[%s744 + $0x68] sm:$0x1]
      %v3950 = vld [vmem:[%s744 + $0x74] sm:$0x1]
      %v3951 = vld [vmem:[%s744 + $0x80] sm:$0x1]
      %v3952 = vld [vmem:[%s744 + $0x8c] sm:$0x1]
      %v3953 = vld [vmem:[%s744 + $0x98] sm:$0x1]
      %v3954 = vld [vmem:[%s744 + $0xa4] sm:$0x1]
      %v3955 = vld [vmem:[%s744 + $0xb0] sm:$0x1]
      %v3956 = vld [vmem:[%s744 + $0xbc] sm:$0x1]
      %v3957 = vld [vmem:[%s744] sm:$0xe]
      %v3958 = vld [vmem:[%s744 + $0xc] sm:$0xe]
      %v3959 = vld [vmem:[%s744 + $0x18] sm:$0xe]
      %v3960 = vld [vmem:[%s744 + $0x24] sm:$0xe]
      %v3961 = vld [vmem:[%s744 + $0x30] sm:$0xe]
      %v3962 = vld [vmem:[%s744 + $0x3c] sm:$0xe]
      %v3963 = vld [vmem:[%s744 + $0x48] sm:$0xe]
      %v3964 = vld [vmem:[%s744 + $0x54] sm:$0xe]
      %v3965 = vld [vmem:[%s744 + $0x60] sm:$0xe]
      %v3966 = vld [vmem:[%s744 + $0x6c] sm:$0xe]
      %v3967 = vld [vmem:[%s744 + $0x78] sm:$0xe]
      %v3968 = vld [vmem:[%s744 + $0x84] sm:$0xe]
      %v3969 = vld [vmem:[%s744 + $0x90] sm:$0xe]
      %v3970 = vld [vmem:[%s744 + $0x9c] sm:$0xe]
      %v3971 = vld [vmem:[%s744 + $0xa8] sm:$0xe]
      %v3972 = vld [vmem:[%s744 + $0xb4] sm:$0xe]
      %v3973 = vld [vmem:[%s992] sm:$0xf]
      %v3974 = vld [vmem:[%s992 + $0x4] sm:$0xf]
      %v3975 = vld [vmem:[%s992 + $0xc] sm:$0xf]
      %v3976 = vld [vmem:[%s992 + $0x10] sm:$0xf]
      %v3977 = vld [vmem:[%s992 + $0x18] sm:$0xf]
      %v3978 = vld [vmem:[%s992 + $0x1c] sm:$0xf]
      %v3979 = vld [vmem:[%s992 + $0x24] sm:$0xf]
      %v3980 = vld [vmem:[%s992 + $0x28] sm:$0xf]
      %v3981 = vld [vmem:[%s992 + $0x30] sm:$0xf]
      %v3982 = vld [vmem:[%s992 + $0x34] sm:$0xf]
      %v3983 = vld [vmem:[%s992 + $0x3c] sm:$0xf]
      %v3984 = vld [vmem:[%s992 + $0x40] sm:$0xf]
      %v3985 = vld [vmem:[%s992 + $0x48] sm:$0xf]
      %v3986 = vld [vmem:[%s992 + $0x4c] sm:$0xf]
      %v3987 = vld [vmem:[%s992 + $0x54] sm:$0xf]
      %v3988 = vld [vmem:[%s992 + $0x58] sm:$0xf]
      %v3989 = vld [vmem:[%s992 + $0x60] sm:$0xf]
      %v3990 = vld [vmem:[%s992 + $0x64] sm:$0xf]
      %v3991 = vld [vmem:[%s992 + $0x6c] sm:$0xf]
      %v3992 = vld [vmem:[%s992 + $0x70] sm:$0xf]
      %v3993 = vld [vmem:[%s992 + $0x78] sm:$0xf]
      %v3994 = vld [vmem:[%s992 + $0x7c] sm:$0xf]
      %v3995 = vld [vmem:[%s992 + $0x84] sm:$0xf]
      %v3996 = vld [vmem:[%s992 + $0x88] sm:$0xf]
      %v3997 = vld [vmem:[%s992 + $0x90] sm:$0xf]
      %v3998 = vld [vmem:[%s992 + $0x94] sm:$0xf]
      %v3999 = vld [vmem:[%s992 + $0x9c] sm:$0xf]
      %v4000 = vld [vmem:[%s992 + $0xa0] sm:$0xf]
      %v4001 = vld [vmem:[%s992 + $0xa8] sm:$0xf]
      %v4002 = vld [vmem:[%s992 + $0xac] sm:$0xf]
      %v4003 = vld [vmem:[%s992 + $0xb4] sm:$0xf]
      %v4004 = vld [vmem:[%s992 + $0xb8] sm:$0xf]
      %v4005 = vld [vmem:[%s992 + $0x8] sm:$0x1]
      %v4006 = vld [vmem:[%s992 + $0x14] sm:$0x1]
      %v4007 = vld [vmem:[%s992 + $0x20] sm:$0x1]
      %v4008 = vld [vmem:[%s992 + $0x2c] sm:$0x1]
      %v4009 = vld [vmem:[%s992 + $0x38] sm:$0x1]
      %v4010 = vld [vmem:[%s992 + $0x44] sm:$0x1]
      %v4011 = vld [vmem:[%s992 + $0x50] sm:$0x1]
      %v4012 = vld [vmem:[%s992 + $0x5c] sm:$0x1]
      %v4013 = vld [vmem:[%s992 + $0x68] sm:$0x1]
      %v4014 = vld [vmem:[%s992 + $0x74] sm:$0x1]
      %v4015 = vld [vmem:[%s992 + $0x80] sm:$0x1]
      %v4016 = vld [vmem:[%s992 + $0x8c] sm:$0x1]
      %v4017 = vld [vmem:[%s992 + $0x98] sm:$0x1]
      %v4018 = vld [vmem:[%s992 + $0xa4] sm:$0x1]
      %v4019 = vld [vmem:[%s992 + $0xb0] sm:$0x1]
      %v4020 = vld [vmem:[%s992 + $0xbc] sm:$0x1]
      %v4021 = vld [vmem:[%s992] sm:$0xe]
      %v4022 = vld [vmem:[%s992 + $0xc] sm:$0xe]
      %v4023 = vld [vmem:[%s992 + $0x18] sm:$0xe]
      %v4024 = vld [vmem:[%s992 + $0x24] sm:$0xe]
      %v4025 = vld [vmem:[%s992 + $0x30] sm:$0xe]
      %v4026 = vld [vmem:[%s992 + $0x3c] sm:$0xe]
      %v4027 = vld [vmem:[%s992 + $0x48] sm:$0xe]
      %v4028 = vld [vmem:[%s992 + $0x54] sm:$0xe]
      %v4029 = vld [vmem:[%s992 + $0x60] sm:$0xe]
      %v4030 = vld [vmem:[%s992 + $0x6c] sm:$0xe]
      %v4031 = vld [vmem:[%s992 + $0x78] sm:$0xe]
      %v4032 = vld [vmem:[%s992 + $0x84] sm:$0xe]
      %v4033 = vld [vmem:[%s992 + $0x90] sm:$0xe]
      %v4034 = vld [vmem:[%s992 + $0x9c] sm:$0xe]
      %v4035 = vld [vmem:[%s992 + $0xa8] sm:$0xe]
      %v4036 = vld [vmem:[%s992 + $0xb4] sm:$0xe]
      %v4069 = vunpack.c.l.b16 %v3845
      %v4070 = vunpack.c.l.b16 %v3846
      %v4071 = vunpack.c.l.b16 %v3847
      %v4072 = vunpack.c.l.b16 %v3848
      %v4073 = vunpack.c.l.b16 %v3849
      %v4074 = vunpack.c.l.b16 %v3850
      %v4075 = vunpack.c.l.b16 %v3851
      %v4076 = vunpack.c.l.b16 %v3852
      %v4077 = vunpack.c.l.b16 %v3853
      %v4078 = vunpack.c.l.b16 %v3854
      %v4079 = vunpack.c.l.b16 %v3855
      %v4080 = vunpack.c.l.b16 %v3856
      %v4081 = vunpack.c.l.b16 %v3857
      %v4082 = vunpack.c.l.b16 %v3858
      %v4083 = vunpack.c.l.b16 %v3859
      %v4084 = vunpack.c.l.b16 %v3860
      %v4085 = vunpack.c.l.b16 %v3861
      %v4086 = vunpack.c.l.b16 %v3862
      %v4087 = vunpack.c.l.b16 %v3863
      %v4088 = vunpack.c.l.b16 %v3864
      %v4089 = vunpack.c.l.b16 %v3865
      %v4090 = vunpack.c.l.b16 %v3866
      %v4091 = vunpack.c.l.b16 %v3867
      %v4092 = vunpack.c.l.b16 %v3868
      %v4093 = vunpack.c.l.b16 %v3869
      %v4094 = vunpack.c.l.b16 %v3870
      %v4095 = vunpack.c.l.b16 %v3871
      %v4096 = vunpack.c.l.b16 %v3872
      %v4097 = vunpack.c.l.b16 %v3873
      %v4098 = vunpack.c.l.b16 %v3874
      %v4099 = vunpack.c.l.b16 %v3875
      %v4100 = vunpack.c.l.b16 %v3876
      %v4101 = vpack.c.b16 %v4070, %v4069
      %v4102 = vpack.c.b16 %v4072, %v4071
      %v4103 = vpack.c.b16 %v4074, %v4073
      %v4104 = vpack.c.b16 %v4076, %v4075
      %v4105 = vpack.c.b16 %v4078, %v4077
      %v4106 = vpack.c.b16 %v4080, %v4079
      %v4107 = vpack.c.b16 %v4082, %v4081
      %v4108 = vpack.c.b16 %v4084, %v4083
      %v4109 = vpack.c.b16 %v4086, %v4085
      %v4110 = vpack.c.b16 %v4088, %v4087
      %v4111 = vpack.c.b16 %v4090, %v4089
      %v4112 = vpack.c.b16 %v4092, %v4091
      %v4113 = vpack.c.b16 %v4094, %v4093
      %v4114 = vpack.c.b16 %v4096, %v4095
      %v4115 = vpack.c.b16 %v4098, %v4097
      %v4116 = vpack.c.b16 %v4100, %v4099
      %v4133 = vunpack.c.l.b16 %v3877
      %v4134 = vunpack.c.l.b16 %v3878
      %v4135 = vunpack.c.l.b16 %v3879
      %v4136 = vunpack.c.l.b16 %v3880
      %v4137 = vunpack.c.l.b16 %v3881
      %v4138 = vunpack.c.l.b16 %v3882
      %v4139 = vunpack.c.l.b16 %v3883
      %v4140 = vunpack.c.l.b16 %v3884
      %v4141 = vunpack.c.l.b16 %v3885
      %v4142 = vunpack.c.l.b16 %v3886
      %v4143 = vunpack.c.l.b16 %v3887
      %v4144 = vunpack.c.l.b16 %v3888
      %v4145 = vunpack.c.l.b16 %v3889
      %v4146 = vunpack.c.l.b16 %v3890
      %v4147 = vunpack.c.l.b16 %v3891
      %v4148 = vunpack.c.l.b16 %v3892
      %v4149 = vpack.c.b16 %v4133, %v4133
      %v4150 = vpack.c.b16 %v4134, %v4134
      %v4151 = vpack.c.b16 %v4135, %v4135
      %v4152 = vpack.c.b16 %v4136, %v4136
      %v4153 = vpack.c.b16 %v4137, %v4137
      %v4154 = vpack.c.b16 %v4138, %v4138
      %v4155 = vpack.c.b16 %v4139, %v4139
      %v4156 = vpack.c.b16 %v4140, %v4140
      %v4157 = vpack.c.b16 %v4141, %v4141
      %v4158 = vpack.c.b16 %v4142, %v4142
      %v4159 = vpack.c.b16 %v4143, %v4143
      %v4160 = vpack.c.b16 %v4144, %v4144
      %v4161 = vpack.c.b16 %v4145, %v4145
      %v4162 = vpack.c.b16 %v4146, %v4146
      %v4163 = vpack.c.b16 %v4147, %v4147
      %v4164 = vpack.c.b16 %v4148, %v4148
      %v4166 = vshrl.u32 %v4101, 16
      %v4168 = vshll.u32 %v4101, 16
      %v4170 = vrot.slane %v4168, 1
      %v4171 = vor.u32 %v4166, %v4170
      %v4173 = vshll.u32 %v4149, 16
      %v4175 = vrot.slane %v4173, 1
      %v4176 = vsel %vm1185, %v4171, %v4175
      %v4178 = vshrl.u32 %v4102, 16
      %v4180 = vshll.u32 %v4102, 16
      %v4182 = vrot.slane %v4180, 1
      %v4183 = vor.u32 %v4178, %v4182
      %v4185 = vshll.u32 %v4150, 16
      %v4187 = vrot.slane %v4185, 1
      %v4188 = vsel %vm1185, %v4183, %v4187
      %v4190 = vshrl.u32 %v4103, 16
      %v4192 = vshll.u32 %v4103, 16
      %v4194 = vrot.slane %v4192, 1
      %v4195 = vor.u32 %v4190, %v4194
      %v4197 = vshll.u32 %v4151, 16
      %v4199 = vrot.slane %v4197, 1
      %v4200 = vsel %vm1185, %v4195, %v4199
      %v4202 = vshrl.u32 %v4104, 16
      %v4204 = vshll.u32 %v4104, 16
      %v4206 = vrot.slane %v4204, 1
      %v4207 = vor.u32 %v4202, %v4206
      %v4209 = vshll.u32 %v4152, 16
      %v4211 = vrot.slane %v4209, 1
      %v4212 = vsel %vm1185, %v4207, %v4211
      %v4214 = vshrl.u32 %v4105, 16
      %v4216 = vshll.u32 %v4105, 16
      %v4218 = vrot.slane %v4216, 1
      %v4219 = vor.u32 %v4214, %v4218
      %v4221 = vshll.u32 %v4153, 16
      %v4223 = vrot.slane %v4221, 1
      %v4224 = vsel %vm1185, %v4219, %v4223
      %v4226 = vshrl.u32 %v4106, 16
      %v4228 = vshll.u32 %v4106, 16
      %v4230 = vrot.slane %v4228, 1
      %v4231 = vor.u32 %v4226, %v4230
      %v4233 = vshll.u32 %v4154, 16
      %v4235 = vrot.slane %v4233, 1
      %v4236 = vsel %vm1185, %v4231, %v4235
      %v4238 = vshrl.u32 %v4107, 16
      %v4240 = vshll.u32 %v4107, 16
      %v4242 = vrot.slane %v4240, 1
      %v4243 = vor.u32 %v4238, %v4242
      %v4245 = vshll.u32 %v4155, 16
      %v4247 = vrot.slane %v4245, 1
      %v4248 = vsel %vm1185, %v4243, %v4247
      %v4250 = vshrl.u32 %v4108, 16
      %v4252 = vshll.u32 %v4108, 16
      %v4254 = vrot.slane %v4252, 1
      %v4255 = vor.u32 %v4250, %v4254
      %v4257 = vshll.u32 %v4156, 16
      %v4259 = vrot.slane %v4257, 1
      %v4260 = vsel %vm1185, %v4255, %v4259
      %v4262 = vshrl.u32 %v4109, 16
      %v4264 = vshll.u32 %v4109, 16
      %v4266 = vrot.slane %v4264, 1
      %v4267 = vor.u32 %v4262, %v4266
      %v4269 = vshll.u32 %v4157, 16
      %v4271 = vrot.slane %v4269, 1
      %v4272 = vsel %vm1185, %v4267, %v4271
      %v4274 = vshrl.u32 %v4110, 16
      %v4276 = vshll.u32 %v4110, 16
      %v4278 = vrot.slane %v4276, 1
      %v4279 = vor.u32 %v4274, %v4278
      %v4281 = vshll.u32 %v4158, 16
      %v4283 = vrot.slane %v4281, 1
      %v4284 = vsel %vm1185, %v4279, %v4283
      %v4286 = vshrl.u32 %v4111, 16
      %v4288 = vshll.u32 %v4111, 16
      %v4290 = vrot.slane %v4288, 1
      %v4291 = vor.u32 %v4286, %v4290
      %v4293 = vshll.u32 %v4159, 16
      %v4295 = vrot.slane %v4293, 1
      %v4296 = vsel %vm1185, %v4291, %v4295
      %v4298 = vshrl.u32 %v4112, 16
      %v4300 = vshll.u32 %v4112, 16
      %v4302 = vrot.slane %v4300, 1
      %v4303 = vor.u32 %v4298, %v4302
      %v4305 = vshll.u32 %v4160, 16
      %v4307 = vrot.slane %v4305, 1
      %v4308 = vsel %vm1185, %v4303, %v4307
      %v4310 = vshrl.u32 %v4113, 16
      %v4312 = vshll.u32 %v4113, 16
      %v4314 = vrot.slane %v4312, 1
      %v4315 = vor.u32 %v4310, %v4314
      %v4317 = vshll.u32 %v4161, 16
      %v4319 = vrot.slane %v4317, 1
      %v4320 = vsel %vm1185, %v4315, %v4319
      %v4322 = vshrl.u32 %v4114, 16
      %v4324 = vshll.u32 %v4114, 16
      %v4326 = vrot.slane %v4324, 1
      %v4327 = vor.u32 %v4322, %v4326
      %v4329 = vshll.u32 %v4162, 16
      %v4331 = vrot.slane %v4329, 1
      %v4332 = vsel %vm1185, %v4327, %v4331
      %v4334 = vshrl.u32 %v4115, 16
      %v4336 = vshll.u32 %v4115, 16
      %v4338 = vrot.slane %v4336, 1
      %v4339 = vor.u32 %v4334, %v4338
      %v4341 = vshll.u32 %v4163, 16
      %v4343 = vrot.slane %v4341, 1
      %v4344 = vsel %vm1185, %v4339, %v4343
      %v4346 = vshrl.u32 %v4116, 16
      %v4348 = vshll.u32 %v4116, 16
      %v4350 = vrot.slane %v4348, 1
      %v4351 = vor.u32 %v4346, %v4350
      %v4353 = vshll.u32 %v4164, 16
      %v4355 = vrot.slane %v4353, 1
      %v4356 = vsel %vm1185, %v4351, %v4355
      %4357 = vrot.lane.b32.xlu0 %v4176, 4
      %v4358 = vpop.permute.xlu0 %4357
      %4359 = vrot.lane.b32.xlu0 %v4188, 4
      %v4360 = vpop.permute.xlu0 %4359
      %4361 = vrot.lane.b32.xlu0 %v4200, 4
      %v4362 = vpop.permute.xlu0 %4361
      %4363 = vrot.lane.b32.xlu0 %v4212, 4
      %v4364 = vpop.permute.xlu0 %4363
      %4365 = vrot.lane.b32.xlu0 %v4224, 4
      %v4366 = vpop.permute.xlu0 %4365
      %4367 = vrot.lane.b32.xlu0 %v4236, 4
      %v4368 = vpop.permute.xlu0 %4367
      %4369 = vrot.lane.b32.xlu0 %v4248, 4
      %v4370 = vpop.permute.xlu0 %4369
      %4371 = vrot.lane.b32.xlu0 %v4260, 4
      %v4372 = vpop.permute.xlu0 %4371
      %4373 = vrot.lane.b32.xlu0 %v4272, 4
      %v4374 = vpop.permute.xlu0 %4373
      %4375 = vrot.lane.b32.xlu0 %v4284, 4
      %v4376 = vpop.permute.xlu0 %4375
      %4377 = vrot.lane.b32.xlu0 %v4296, 4
      %v4378 = vpop.permute.xlu0 %4377
      %4379 = vrot.lane.b32.xlu0 %v4308, 4
      %v4380 = vpop.permute.xlu0 %4379
      %4381 = vrot.lane.b32.xlu0 %v4320, 4
      %v4382 = vpop.permute.xlu0 %4381
      %4383 = vrot.lane.b32.xlu0 %v4332, 4
      %v4384 = vpop.permute.xlu0 %4383
      %4385 = vrot.lane.b32.xlu0 %v4344, 4
      %v4386 = vpop.permute.xlu0 %4385
      %4387 = vrot.lane.b32.xlu0 %v4356, 4
      %v4388 = vpop.permute.xlu0 %4387
      %v4405 = vunpack.c.l.b16 %v3893
      %v4406 = vunpack.c.l.b16 %v3894
      %v4407 = vunpack.c.l.b16 %v3895
      %v4408 = vunpack.c.l.b16 %v3896
      %v4409 = vunpack.c.l.b16 %v3897
      %v4410 = vunpack.c.l.b16 %v3898
      %v4411 = vunpack.c.l.b16 %v3899
      %v4412 = vunpack.c.l.b16 %v3900
      %v4413 = vunpack.c.l.b16 %v3901
      %v4414 = vunpack.c.l.b16 %v3902
      %v4415 = vunpack.c.l.b16 %v3903
      %v4416 = vunpack.c.l.b16 %v3904
      %v4417 = vunpack.c.l.b16 %v3905
      %v4418 = vunpack.c.l.b16 %v3906
      %v4419 = vunpack.c.l.b16 %v3907
      %v4420 = vunpack.c.l.b16 %v3908
      %v4421 = vpack.c.b16 %v4070, %v4405
      %v4422 = vpack.c.b16 %v4072, %v4406
      %v4423 = vpack.c.b16 %v4074, %v4407
      %v4424 = vpack.c.b16 %v4076, %v4408
      %v4425 = vpack.c.b16 %v4078, %v4409
      %v4426 = vpack.c.b16 %v4080, %v4410
      %v4427 = vpack.c.b16 %v4082, %v4411
      %v4428 = vpack.c.b16 %v4084, %v4412
      %v4429 = vpack.c.b16 %v4086, %v4413
      %v4430 = vpack.c.b16 %v4088, %v4414
      %v4431 = vpack.c.b16 %v4090, %v4415
      %v4432 = vpack.c.b16 %v4092, %v4416
      %v4433 = vpack.c.b16 %v4094, %v4417
      %v4434 = vpack.c.b16 %v4096, %v4418
      %v4435 = vpack.c.b16 %v4098, %v4419
      %v4436 = vpack.c.b16 %v4100, %v4420
      %v4437 = vrot.slane %v4421, 1
      %v4438 = vrot.slane %v4149, 1
      %v4439 = vsel %vm1458, %v4437, %v4438
      %v4440 = vrot.slane %v4422, 1
      %v4441 = vrot.slane %v4150, 1
      %v4442 = vsel %vm1458, %v4440, %v4441
      %v4443 = vrot.slane %v4423, 1
      %v4444 = vrot.slane %v4151, 1
      %v4445 = vsel %vm1458, %v4443, %v4444
      %v4446 = vrot.slane %v4424, 1
      %v4447 = vrot.slane %v4152, 1
      %v4448 = vsel %vm1458, %v4446, %v4447
      %v4449 = vrot.slane %v4425, 1
      %v4450 = vrot.slane %v4153, 1
      %v4451 = vsel %vm1458, %v4449, %v4450
      %v4452 = vrot.slane %v4426, 1
      %v4453 = vrot.slane %v4154, 1
      %v4454 = vsel %vm1458, %v4452, %v4453
      %v4455 = vrot.slane %v4427, 1
      %v4456 = vrot.slane %v4155, 1
      %v4457 = vsel %vm1458, %v4455, %v4456
      %v4458 = vrot.slane %v4428, 1
      %v4459 = vrot.slane %v4156, 1
      %v4460 = vsel %vm1458, %v4458, %v4459
      %v4461 = vrot.slane %v4429, 1
      %v4462 = vrot.slane %v4157, 1
      %v4463 = vsel %vm1458, %v4461, %v4462
      %v4464 = vrot.slane %v4430, 1
      %v4465 = vrot.slane %v4158, 1
      %v4466 = vsel %vm1458, %v4464, %v4465
      %v4467 = vrot.slane %v4431, 1
      %v4468 = vrot.slane %v4159, 1
      %v4469 = vsel %vm1458, %v4467, %v4468
      %v4470 = vrot.slane %v4432, 1
      %v4471 = vrot.slane %v4160, 1
      %v4472 = vsel %vm1458, %v4470, %v4471
      %v4473 = vrot.slane %v4433, 1
      %v4474 = vrot.slane %v4161, 1
      %v4475 = vsel %vm1458, %v4473, %v4474
      %v4476 = vrot.slane %v4434, 1
      %v4477 = vrot.slane %v4162, 1
      %v4478 = vsel %vm1458, %v4476, %v4477
      %v4479 = vrot.slane %v4435, 1
      %v4480 = vrot.slane %v4163, 1
      %v4481 = vsel %vm1458, %v4479, %v4480
      %v4482 = vrot.slane %v4436, 1
      %v4483 = vrot.slane %v4164, 1
      %v4484 = vsel %vm1458, %v4482, %v4483
      %4485 = vrot.lane.b32.xlu0 %v4439, 8
      %v4486 = vpop.permute.xlu0 %4485
      %4487 = vrot.lane.b32.xlu0 %v4442, 8
      %v4488 = vpop.permute.xlu0 %4487
      %4489 = vrot.lane.b32.xlu0 %v4445, 8
      %v4490 = vpop.permute.xlu0 %4489
      %4491 = vrot.lane.b32.xlu0 %v4448, 8
      %v4492 = vpop.permute.xlu0 %4491
      %4493 = vrot.lane.b32.xlu0 %v4451, 8
      %v4494 = vpop.permute.xlu0 %4493
      %4495 = vrot.lane.b32.xlu0 %v4454, 8
      %v4496 = vpop.permute.xlu0 %4495
      %4497 = vrot.lane.b32.xlu0 %v4457, 8
      %v4498 = vpop.permute.xlu0 %4497
      %4499 = vrot.lane.b32.xlu0 %v4460, 8
      %v4500 = vpop.permute.xlu0 %4499
      %4501 = vrot.lane.b32.xlu0 %v4463, 8
      %v4502 = vpop.permute.xlu0 %4501
      %4503 = vrot.lane.b32.xlu0 %v4466, 8
      %v4504 = vpop.permute.xlu0 %4503
      %4505 = vrot.lane.b32.xlu0 %v4469, 8
      %v4506 = vpop.permute.xlu0 %4505
      %4507 = vrot.lane.b32.xlu0 %v4472, 8
      %v4508 = vpop.permute.xlu0 %4507
      %4509 = vrot.lane.b32.xlu0 %v4475, 8
      %v4510 = vpop.permute.xlu0 %4509
      %4511 = vrot.lane.b32.xlu0 %v4478, 8
      %v4512 = vpop.permute.xlu0 %4511
      %4513 = vrot.lane.b32.xlu0 %v4481, 8
      %v4514 = vpop.permute.xlu0 %4513
      %4515 = vrot.lane.b32.xlu0 %v4484, 8
      %v4516 = vpop.permute.xlu0 %4515
      %v4549 = vunpack.c.l.b16 %v3909
      %v4550 = vunpack.c.l.b16 %v3910
      %v4551 = vunpack.c.l.b16 %v3911
      %v4552 = vunpack.c.l.b16 %v3912
      %v4553 = vunpack.c.l.b16 %v3913
      %v4554 = vunpack.c.l.b16 %v3914
      %v4555 = vunpack.c.l.b16 %v3915
      %v4556 = vunpack.c.l.b16 %v3916
      %v4557 = vunpack.c.l.b16 %v3917
      %v4558 = vunpack.c.l.b16 %v3918
      %v4559 = vunpack.c.l.b16 %v3919
      %v4560 = vunpack.c.l.b16 %v3920
      %v4561 = vunpack.c.l.b16 %v3921
      %v4562 = vunpack.c.l.b16 %v3922
      %v4563 = vunpack.c.l.b16 %v3923
      %v4564 = vunpack.c.l.b16 %v3924
      %v4565 = vunpack.c.l.b16 %v3925
      %v4566 = vunpack.c.l.b16 %v3926
      %v4567 = vunpack.c.l.b16 %v3927
      %v4568 = vunpack.c.l.b16 %v3928
      %v4569 = vunpack.c.l.b16 %v3929
      %v4570 = vunpack.c.l.b16 %v3930
      %v4571 = vunpack.c.l.b16 %v3931
      %v4572 = vunpack.c.l.b16 %v3932
      %v4573 = vunpack.c.l.b16 %v3933
      %v4574 = vunpack.c.l.b16 %v3934
      %v4575 = vunpack.c.l.b16 %v3935
      %v4576 = vunpack.c.l.b16 %v3936
      %v4577 = vunpack.c.l.b16 %v3937
      %v4578 = vunpack.c.l.b16 %v3938
      %v4579 = vunpack.c.l.b16 %v3939
      %v4580 = vunpack.c.l.b16 %v3940
      %v4581 = vpack.c.b16 %v4550, %v4549
      %v4582 = vpack.c.b16 %v4552, %v4551
      %v4583 = vpack.c.b16 %v4554, %v4553
      %v4584 = vpack.c.b16 %v4556, %v4555
      %v4585 = vpack.c.b16 %v4558, %v4557
      %v4586 = vpack.c.b16 %v4560, %v4559
      %v4587 = vpack.c.b16 %v4562, %v4561
      %v4588 = vpack.c.b16 %v4564, %v4563
      %v4589 = vpack.c.b16 %v4566, %v4565
      %v4590 = vpack.c.b16 %v4568, %v4567
      %v4591 = vpack.c.b16 %v4570, %v4569
      %v4592 = vpack.c.b16 %v4572, %v4571
      %v4593 = vpack.c.b16 %v4574, %v4573
      %v4594 = vpack.c.b16 %v4576, %v4575
      %v4595 = vpack.c.b16 %v4578, %v4577
      %v4596 = vpack.c.b16 %v4580, %v4579
      %4597 = vrot.lane.b32.xlu0 %v4581, 12
      %v4598 = vpop.permute.xlu0 %4597
      %4599 = vrot.lane.b32.xlu0 %v4582, 12
      %v4600 = vpop.permute.xlu0 %4599
      %4601 = vrot.lane.b32.xlu0 %v4583, 12
      %v4602 = vpop.permute.xlu0 %4601
      %4603 = vrot.lane.b32.xlu0 %v4584, 12
      %v4604 = vpop.permute.xlu0 %4603
      %4605 = vrot.lane.b32.xlu0 %v4585, 12
      %v4606 = vpop.permute.xlu0 %4605
      %4607 = vrot.lane.b32.xlu0 %v4586, 12
      %v4608 = vpop.permute.xlu0 %4607
      %4609 = vrot.lane.b32.xlu0 %v4587, 12
      %v4610 = vpop.permute.xlu0 %4609
      %4611 = vrot.lane.b32.xlu0 %v4588, 12
      %v4612 = vpop.permute.xlu0 %4611
      %4613 = vrot.lane.b32.xlu0 %v4589, 12
      %v4614 = vpop.permute.xlu0 %4613
      %4615 = vrot.lane.b32.xlu0 %v4590, 12
      %v4616 = vpop.permute.xlu0 %4615
      %4617 = vrot.lane.b32.xlu0 %v4591, 12
      %v4618 = vpop.permute.xlu0 %4617
      %4619 = vrot.lane.b32.xlu0 %v4592, 12
      %v4620 = vpop.permute.xlu0 %4619
      %4621 = vrot.lane.b32.xlu0 %v4593, 12
      %v4622 = vpop.permute.xlu0 %4621
      %4623 = vrot.lane.b32.xlu0 %v4594, 12
      %v4624 = vpop.permute.xlu0 %4623
      %4625 = vrot.lane.b32.xlu0 %v4595, 12
      %v4626 = vpop.permute.xlu0 %4625
      %4627 = vrot.lane.b32.xlu0 %v4596, 12
      %v4628 = vpop.permute.xlu0 %4627
      %v4645 = vunpack.c.l.b16 %v3941
      %v4646 = vunpack.c.l.b16 %v3942
      %v4647 = vunpack.c.l.b16 %v3943
      %v4648 = vunpack.c.l.b16 %v3944
      %v4649 = vunpack.c.l.b16 %v3945
      %v4650 = vunpack.c.l.b16 %v3946
      %v4651 = vunpack.c.l.b16 %v3947
      %v4652 = vunpack.c.l.b16 %v3948
      %v4653 = vunpack.c.l.b16 %v3949
      %v4654 = vunpack.c.l.b16 %v3950
      %v4655 = vunpack.c.l.b16 %v3951
      %v4656 = vunpack.c.l.b16 %v3952
      %v4657 = vunpack.c.l.b16 %v3953
      %v4658 = vunpack.c.l.b16 %v3954
      %v4659 = vunpack.c.l.b16 %v3955
      %v4660 = vunpack.c.l.b16 %v3956
      %v4661 = vpack.c.b16 %v4645, %v4645
      %v4662 = vpack.c.b16 %v4646, %v4646
      %v4663 = vpack.c.b16 %v4647, %v4647
      %v4664 = vpack.c.b16 %v4648, %v4648
      %v4665 = vpack.c.b16 %v4649, %v4649
      %v4666 = vpack.c.b16 %v4650, %v4650
      %v4667 = vpack.c.b16 %v4651, %v4651
      %v4668 = vpack.c.b16 %v4652, %v4652
      %v4669 = vpack.c.b16 %v4653, %v4653
      %v4670 = vpack.c.b16 %v4654, %v4654
      %v4671 = vpack.c.b16 %v4655, %v4655
      %v4672 = vpack.c.b16 %v4656, %v4656
      %v4673 = vpack.c.b16 %v4657, %v4657
      %v4674 = vpack.c.b16 %v4658, %v4658
      %v4675 = vpack.c.b16 %v4659, %v4659
      %v4676 = vpack.c.b16 %v4660, %v4660
      %v4678 = vshrl.u32 %v4581, 16
      %v4680 = vshll.u32 %v4581, 16
      %v4682 = vrot.slane %v4680, 1
      %v4683 = vor.u32 %v4678, %v4682
      %v4685 = vshll.u32 %v4661, 16
      %v4687 = vrot.slane %v4685, 1
      %v4688 = vsel %vm1185, %v4683, %v4687
      %v4690 = vshrl.u32 %v4582, 16
      %v4692 = vshll.u32 %v4582, 16
      %v4694 = vrot.slane %v4692, 1
      %v4695 = vor.u32 %v4690, %v4694
      %v4697 = vshll.u32 %v4662, 16
      %v4699 = vrot.slane %v4697, 1
      %v4700 = vsel %vm1185, %v4695, %v4699
      %v4702 = vshrl.u32 %v4583, 16
      %v4704 = vshll.u32 %v4583, 16
      %v4706 = vrot.slane %v4704, 1
      %v4707 = vor.u32 %v4702, %v4706
      %v4709 = vshll.u32 %v4663, 16
      %v4711 = vrot.slane %v4709, 1
      %v4712 = vsel %vm1185, %v4707, %v4711
      %v4714 = vshrl.u32 %v4584, 16
      %v4716 = vshll.u32 %v4584, 16
      %v4718 = vrot.slane %v4716, 1
      %v4719 = vor.u32 %v4714, %v4718
      %v4721 = vshll.u32 %v4664, 16
      %v4723 = vrot.slane %v4721, 1
      %v4724 = vsel %vm1185, %v4719, %v4723
      %v4726 = vshrl.u32 %v4585, 16
      %v4728 = vshll.u32 %v4585, 16
      %v4730 = vrot.slane %v4728, 1
      %v4731 = vor.u32 %v4726, %v4730
      %v4733 = vshll.u32 %v4665, 16
      %v4735 = vrot.slane %v4733, 1
      %v4736 = vsel %vm1185, %v4731, %v4735
      %v4738 = vshrl.u32 %v4586, 16
      %v4740 = vshll.u32 %v4586, 16
      %v4742 = vrot.slane %v4740, 1
      %v4743 = vor.u32 %v4738, %v4742
      %v4745 = vshll.u32 %v4666, 16
      %v4747 = vrot.slane %v4745, 1
      %v4748 = vsel %vm1185, %v4743, %v4747
      %v4750 = vshrl.u32 %v4587, 16
      %v4752 = vshll.u32 %v4587, 16
      %v4754 = vrot.slane %v4752, 1
      %v4755 = vor.u32 %v4750, %v4754
      %v4757 = vshll.u32 %v4667, 16
      %v4759 = vrot.slane %v4757, 1
      %v4760 = vsel %vm1185, %v4755, %v4759
      %v4762 = vshrl.u32 %v4588, 16
      %v4764 = vshll.u32 %v4588, 16
      %v4766 = vrot.slane %v4764, 1
      %v4767 = vor.u32 %v4762, %v4766
      %v4769 = vshll.u32 %v4668, 16
      %v4771 = vrot.slane %v4769, 1
      %v4772 = vsel %vm1185, %v4767, %v4771
      %v4774 = vshrl.u32 %v4589, 16
      %v4776 = vshll.u32 %v4589, 16
      %v4778 = vrot.slane %v4776, 1
      %v4779 = vor.u32 %v4774, %v4778
      %v4781 = vshll.u32 %v4669, 16
      %v4783 = vrot.slane %v4781, 1
      %v4784 = vsel %vm1185, %v4779, %v4783
      %v4786 = vshrl.u32 %v4590, 16
      %v4788 = vshll.u32 %v4590, 16
      %v4790 = vrot.slane %v4788, 1
      %v4791 = vor.u32 %v4786, %v4790
      %v4793 = vshll.u32 %v4670, 16
      %v4795 = vrot.slane %v4793, 1
      %v4796 = vsel %vm1185, %v4791, %v4795
      %v4798 = vshrl.u32 %v4591, 16
      %v4800 = vshll.u32 %v4591, 16
      %v4802 = vrot.slane %v4800, 1
      %v4803 = vor.u32 %v4798, %v4802
      %v4805 = vshll.u32 %v4671, 16
      %v4807 = vrot.slane %v4805, 1
      %v4808 = vsel %vm1185, %v4803, %v4807
      %v4810 = vshrl.u32 %v4592, 16
      %v4812 = vshll.u32 %v4592, 16
      %v4814 = vrot.slane %v4812, 1
      %v4815 = vor.u32 %v4810, %v4814
      %v4817 = vshll.u32 %v4672, 16
      %v4819 = vrot.slane %v4817, 1
      %v4820 = vsel %vm1185, %v4815, %v4819
      %v4822 = vshrl.u32 %v4593, 16
      %v4824 = vshll.u32 %v4593, 16
      %v4826 = vrot.slane %v4824, 1
      %v4827 = vor.u32 %v4822, %v4826
      %v4829 = vshll.u32 %v4673, 16
      %v4831 = vrot.slane %v4829, 1
      %v4832 = vsel %vm1185, %v4827, %v4831
      %v4834 = vshrl.u32 %v4594, 16
      %v4836 = vshll.u32 %v4594, 16
      %v4838 = vrot.slane %v4836, 1
      %v4839 = vor.u32 %v4834, %v4838
      %v4841 = vshll.u32 %v4674, 16
      %v4843 = vrot.slane %v4841, 1
      %v4844 = vsel %vm1185, %v4839, %v4843
      %v4846 = vshrl.u32 %v4595, 16
      %v4848 = vshll.u32 %v4595, 16
      %v4850 = vrot.slane %v4848, 1
      %v4851 = vor.u32 %v4846, %v4850
      %v4853 = vshll.u32 %v4675, 16
      %v4855 = vrot.slane %v4853, 1
      %v4856 = vsel %vm1185, %v4851, %v4855
      %v4858 = vshrl.u32 %v4596, 16
      %v4860 = vshll.u32 %v4596, 16
      %v4862 = vrot.slane %v4860, 1
      %v4863 = vor.u32 %v4858, %v4862
      %v4865 = vshll.u32 %v4676, 16
      %v4867 = vrot.slane %v4865, 1
      %v4868 = vsel %vm1185, %v4863, %v4867
      %4869 = vrot.lane.b32.xlu0 %v4688, 16
      %v4870 = vpop.permute.xlu0 %4869
      %4871 = vrot.lane.b32.xlu0 %v4700, 16
      %v4872 = vpop.permute.xlu0 %4871
      %4873 = vrot.lane.b32.xlu0 %v4712, 16
      %v4874 = vpop.permute.xlu0 %4873
      %4875 = vrot.lane.b32.xlu0 %v4724, 16
      %v4876 = vpop.permute.xlu0 %4875
      %4877 = vrot.lane.b32.xlu0 %v4736, 16
      %v4878 = vpop.permute.xlu0 %4877
      %4879 = vrot.lane.b32.xlu0 %v4748, 16
      %v4880 = vpop.permute.xlu0 %4879
      %4881 = vrot.lane.b32.xlu0 %v4760, 16
      %v4882 = vpop.permute.xlu0 %4881
      %4883 = vrot.lane.b32.xlu0 %v4772, 16
      %v4884 = vpop.permute.xlu0 %4883
      %4885 = vrot.lane.b32.xlu0 %v4784, 16
      %v4886 = vpop.permute.xlu0 %4885
      %4887 = vrot.lane.b32.xlu0 %v4796, 16
      %v4888 = vpop.permute.xlu0 %4887
      %4889 = vrot.lane.b32.xlu0 %v4808, 16
      %v4890 = vpop.permute.xlu0 %4889
      %4891 = vrot.lane.b32.xlu0 %v4820, 16
      %v4892 = vpop.permute.xlu0 %4891
      %4893 = vrot.lane.b32.xlu0 %v4832, 16
      %v4894 = vpop.permute.xlu0 %4893
      %4895 = vrot.lane.b32.xlu0 %v4844, 16
      %v4896 = vpop.permute.xlu0 %4895
      %4897 = vrot.lane.b32.xlu0 %v4856, 16
      %v4898 = vpop.permute.xlu0 %4897
      %4899 = vrot.lane.b32.xlu0 %v4868, 16
      %v4900 = vpop.permute.xlu0 %4899
      %v4917 = vunpack.c.l.b16 %v3957
      %v4918 = vunpack.c.l.b16 %v3958
      %v4919 = vunpack.c.l.b16 %v3959
      %v4920 = vunpack.c.l.b16 %v3960
      %v4921 = vunpack.c.l.b16 %v3961
      %v4922 = vunpack.c.l.b16 %v3962
      %v4923 = vunpack.c.l.b16 %v3963
      %v4924 = vunpack.c.l.b16 %v3964
      %v4925 = vunpack.c.l.b16 %v3965
      %v4926 = vunpack.c.l.b16 %v3966
      %v4927 = vunpack.c.l.b16 %v3967
      %v4928 = vunpack.c.l.b16 %v3968
      %v4929 = vunpack.c.l.b16 %v3969
      %v4930 = vunpack.c.l.b16 %v3970
      %v4931 = vunpack.c.l.b16 %v3971
      %v4932 = vunpack.c.l.b16 %v3972
      %v4933 = vpack.c.b16 %v4550, %v4917
      %v4934 = vpack.c.b16 %v4552, %v4918
      %v4935 = vpack.c.b16 %v4554, %v4919
      %v4936 = vpack.c.b16 %v4556, %v4920
      %v4937 = vpack.c.b16 %v4558, %v4921
      %v4938 = vpack.c.b16 %v4560, %v4922
      %v4939 = vpack.c.b16 %v4562, %v4923
      %v4940 = vpack.c.b16 %v4564, %v4924
      %v4941 = vpack.c.b16 %v4566, %v4925
      %v4942 = vpack.c.b16 %v4568, %v4926
      %v4943 = vpack.c.b16 %v4570, %v4927
      %v4944 = vpack.c.b16 %v4572, %v4928
      %v4945 = vpack.c.b16 %v4574, %v4929
      %v4946 = vpack.c.b16 %v4576, %v4930
      %v4947 = vpack.c.b16 %v4578, %v4931
      %v4948 = vpack.c.b16 %v4580, %v4932
      %v4949 = vrot.slane %v4933, 1
      %v4950 = vrot.slane %v4661, 1
      %v4951 = vsel %vm1458, %v4949, %v4950
      %v4952 = vrot.slane %v4934, 1
      %v4953 = vrot.slane %v4662, 1
      %v4954 = vsel %vm1458, %v4952, %v4953
      %v4955 = vrot.slane %v4935, 1
      %v4956 = vrot.slane %v4663, 1
      %v4957 = vsel %vm1458, %v4955, %v4956
      %v4958 = vrot.slane %v4936, 1
      %v4959 = vrot.slane %v4664, 1
      %v4960 = vsel %vm1458, %v4958, %v4959
      %v4961 = vrot.slane %v4937, 1
      %v4962 = vrot.slane %v4665, 1
      %v4963 = vsel %vm1458, %v4961, %v4962
      %v4964 = vrot.slane %v4938, 1
      %v4965 = vrot.slane %v4666, 1
      %v4966 = vsel %vm1458, %v4964, %v4965
      %v4967 = vrot.slane %v4939, 1
      %v4968 = vrot.slane %v4667, 1
      %v4969 = vsel %vm1458, %v4967, %v4968
      %v4970 = vrot.slane %v4940, 1
      %v4971 = vrot.slane %v4668, 1
      %v4972 = vsel %vm1458, %v4970, %v4971
      %v4973 = vrot.slane %v4941, 1
      %v4974 = vrot.slane %v4669, 1
      %v4975 = vsel %vm1458, %v4973, %v4974
      %v4976 = vrot.slane %v4942, 1
      %v4977 = vrot.slane %v4670, 1
      %v4978 = vsel %vm1458, %v4976, %v4977
      %v4979 = vrot.slane %v4943, 1
      %v4980 = vrot.slane %v4671, 1
      %v4981 = vsel %vm1458, %v4979, %v4980
      %v4982 = vrot.slane %v4944, 1
      %v4983 = vrot.slane %v4672, 1
      %v4984 = vsel %vm1458, %v4982, %v4983
      %v4985 = vrot.slane %v4945, 1
      %v4986 = vrot.slane %v4673, 1
      %v4987 = vsel %vm1458, %v4985, %v4986
      %v4988 = vrot.slane %v4946, 1
      %v4989 = vrot.slane %v4674, 1
      %v4990 = vsel %vm1458, %v4988, %v4989
      %v4991 = vrot.slane %v4947, 1
      %v4992 = vrot.slane %v4675, 1
      %v4993 = vsel %vm1458, %v4991, %v4992
      %v4994 = vrot.slane %v4948, 1
      %v4995 = vrot.slane %v4676, 1
      %v4996 = vsel %vm1458, %v4994, %v4995
      %4997 = vrot.lane.b32.xlu0 %v4951, 20
      %v4998 = vpop.permute.xlu0 %4997
      %4999 = vrot.lane.b32.xlu0 %v4954, 20
      %v5000 = vpop.permute.xlu0 %4999
      %5001 = vrot.lane.b32.xlu0 %v4957, 20
      %v5002 = vpop.permute.xlu0 %5001
      %5003 = vrot.lane.b32.xlu0 %v4960, 20
      %v5004 = vpop.permute.xlu0 %5003
      %5005 = vrot.lane.b32.xlu0 %v4963, 20
      %v5006 = vpop.permute.xlu0 %5005
      %5007 = vrot.lane.b32.xlu0 %v4966, 20
      %v5008 = vpop.permute.xlu0 %5007
      %5009 = vrot.lane.b32.xlu0 %v4969, 20
      %v5010 = vpop.permute.xlu0 %5009
      %5011 = vrot.lane.b32.xlu0 %v4972, 20
      %v5012 = vpop.permute.xlu0 %5011
      %5013 = vrot.lane.b32.xlu0 %v4975, 20
      %v5014 = vpop.permute.xlu0 %5013
      %5015 = vrot.lane.b32.xlu0 %v4978, 20
      %v5016 = vpop.permute.xlu0 %5015
      %5017 = vrot.lane.b32.xlu0 %v4981, 20
      %v5018 = vpop.permute.xlu0 %5017
      %5019 = vrot.lane.b32.xlu0 %v4984, 20
      %v5020 = vpop.permute.xlu0 %5019
      %5021 = vrot.lane.b32.xlu0 %v4987, 20
      %v5022 = vpop.permute.xlu0 %5021
      %5023 = vrot.lane.b32.xlu0 %v4990, 20
      %v5024 = vpop.permute.xlu0 %5023
      %5025 = vrot.lane.b32.xlu0 %v4993, 20
      %v5026 = vpop.permute.xlu0 %5025
      %5027 = vrot.lane.b32.xlu0 %v4996, 20
      %v5028 = vpop.permute.xlu0 %5027
      %v5061 = vunpack.c.l.b16 %v3973
      %v5062 = vunpack.c.l.b16 %v3974
      %v5063 = vunpack.c.l.b16 %v3975
      %v5064 = vunpack.c.l.b16 %v3976
      %v5065 = vunpack.c.l.b16 %v3977
      %v5066 = vunpack.c.l.b16 %v3978
      %v5067 = vunpack.c.l.b16 %v3979
      %v5068 = vunpack.c.l.b16 %v3980
      %v5069 = vunpack.c.l.b16 %v3981
      %v5070 = vunpack.c.l.b16 %v3982
      %v5071 = vunpack.c.l.b16 %v3983
      %v5072 = vunpack.c.l.b16 %v3984
      %v5073 = vunpack.c.l.b16 %v3985
      %v5074 = vunpack.c.l.b16 %v3986
      %v5075 = vunpack.c.l.b16 %v3987
      %v5076 = vunpack.c.l.b16 %v3988
      %v5077 = vunpack.c.l.b16 %v3989
      %v5078 = vunpack.c.l.b16 %v3990
      %v5079 = vunpack.c.l.b16 %v3991
      %v5080 = vunpack.c.l.b16 %v3992
      %v5081 = vunpack.c.l.b16 %v3993
      %v5082 = vunpack.c.l.b16 %v3994
      %v5083 = vunpack.c.l.b16 %v3995
      %v5084 = vunpack.c.l.b16 %v3996
      %v5085 = vunpack.c.l.b16 %v3997
      %v5086 = vunpack.c.l.b16 %v3998
      %v5087 = vunpack.c.l.b16 %v3999
      %v5088 = vunpack.c.l.b16 %v4000
      %v5089 = vunpack.c.l.b16 %v4001
      %v5090 = vunpack.c.l.b16 %v4002
      %v5091 = vunpack.c.l.b16 %v4003
      %v5092 = vunpack.c.l.b16 %v4004
      %v5093 = vpack.c.b16 %v5062, %v5061
      %v5094 = vpack.c.b16 %v5064, %v5063
      %v5095 = vpack.c.b16 %v5066, %v5065
      %v5096 = vpack.c.b16 %v5068, %v5067
      %v5097 = vpack.c.b16 %v5070, %v5069
      %v5098 = vpack.c.b16 %v5072, %v5071
      %v5099 = vpack.c.b16 %v5074, %v5073
      %v5100 = vpack.c.b16 %v5076, %v5075
      %v5101 = vpack.c.b16 %v5078, %v5077
      %v5102 = vpack.c.b16 %v5080, %v5079
      %v5103 = vpack.c.b16 %v5082, %v5081
      %v5104 = vpack.c.b16 %v5084, %v5083
      %v5105 = vpack.c.b16 %v5086, %v5085
      %v5106 = vpack.c.b16 %v5088, %v5087
      %v5107 = vpack.c.b16 %v5090, %v5089
      %v5108 = vpack.c.b16 %v5092, %v5091
      %5109 = vrot.lane.b32.xlu0 %v5093, 24
      %v5110 = vpop.permute.xlu0 %5109
      %5111 = vrot.lane.b32.xlu0 %v5094, 24
      %v5112 = vpop.permute.xlu0 %5111
      %5113 = vrot.lane.b32.xlu0 %v5095, 24
      %v5114 = vpop.permute.xlu0 %5113
      %5115 = vrot.lane.b32.xlu0 %v5096, 24
      %v5116 = vpop.permute.xlu0 %5115
      %5117 = vrot.lane.b32.xlu0 %v5097, 24
      %v5118 = vpop.permute.xlu0 %5117
      %5119 = vrot.lane.b32.xlu0 %v5098, 24
      %v5120 = vpop.permute.xlu0 %5119
      %5121 = vrot.lane.b32.xlu0 %v5099, 24
      %v5122 = vpop.permute.xlu0 %5121
      %5123 = vrot.lane.b32.xlu0 %v5100, 24
      %v5124 = vpop.permute.xlu0 %5123
      %5125 = vrot.lane.b32.xlu0 %v5101, 24
      %v5126 = vpop.permute.xlu0 %5125
      %5127 = vrot.lane.b32.xlu0 %v5102, 24
      %v5128 = vpop.permute.xlu0 %5127
      %5129 = vrot.lane.b32.xlu0 %v5103, 24
      %v5130 = vpop.permute.xlu0 %5129
      %5131 = vrot.lane.b32.xlu0 %v5104, 24
      %v5132 = vpop.permute.xlu0 %5131
      %5133 = vrot.lane.b32.xlu0 %v5105, 24
      %v5134 = vpop.permute.xlu0 %5133
      %5135 = vrot.lane.b32.xlu0 %v5106, 24
      %v5136 = vpop.permute.xlu0 %5135
      %5137 = vrot.lane.b32.xlu0 %v5107, 24
      %v5138 = vpop.permute.xlu0 %5137
      %5139 = vrot.lane.b32.xlu0 %v5108, 24
      %v5140 = vpop.permute.xlu0 %5139
      %v5157 = vunpack.c.l.b16 %v4005
      %v5158 = vunpack.c.l.b16 %v4006
      %v5159 = vunpack.c.l.b16 %v4007
      %v5160 = vunpack.c.l.b16 %v4008
      %v5161 = vunpack.c.l.b16 %v4009
      %v5162 = vunpack.c.l.b16 %v4010
      %v5163 = vunpack.c.l.b16 %v4011
      %v5164 = vunpack.c.l.b16 %v4012
      %v5165 = vunpack.c.l.b16 %v4013
      %v5166 = vunpack.c.l.b16 %v4014
      %v5167 = vunpack.c.l.b16 %v4015
      %v5168 = vunpack.c.l.b16 %v4016
      %v5169 = vunpack.c.l.b16 %v4017
      %v5170 = vunpack.c.l.b16 %v4018
      %v5171 = vunpack.c.l.b16 %v4019
      %v5172 = vunpack.c.l.b16 %v4020
      %v5173 = vpack.c.b16 %v5157, %v5157
      %v5174 = vpack.c.b16 %v5158, %v5158
      %v5175 = vpack.c.b16 %v5159, %v5159
      %v5176 = vpack.c.b16 %v5160, %v5160
      %v5177 = vpack.c.b16 %v5161, %v5161
      %v5178 = vpack.c.b16 %v5162, %v5162
      %v5179 = vpack.c.b16 %v5163, %v5163
      %v5180 = vpack.c.b16 %v5164, %v5164
      %v5181 = vpack.c.b16 %v5165, %v5165
      %v5182 = vpack.c.b16 %v5166, %v5166
      %v5183 = vpack.c.b16 %v5167, %v5167
      %v5184 = vpack.c.b16 %v5168, %v5168
      %v5185 = vpack.c.b16 %v5169, %v5169
      %v5186 = vpack.c.b16 %v5170, %v5170
      %v5187 = vpack.c.b16 %v5171, %v5171
      %v5188 = vpack.c.b16 %v5172, %v5172
      %v5190 = vshrl.u32 %v5093, 16
      %v5192 = vshll.u32 %v5093, 16
      %v5194 = vrot.slane %v5192, 1
      %v5195 = vor.u32 %v5190, %v5194
      %v5197 = vshll.u32 %v5173, 16
      %v5199 = vrot.slane %v5197, 1
      %v5200 = vsel %vm1185, %v5195, %v5199
      %v5202 = vshrl.u32 %v5094, 16
      %v5204 = vshll.u32 %v5094, 16
      %v5206 = vrot.slane %v5204, 1
      %v5207 = vor.u32 %v5202, %v5206
      %v5209 = vshll.u32 %v5174, 16
      %v5211 = vrot.slane %v5209, 1
      %v5212 = vsel %vm1185, %v5207, %v5211
      %v5214 = vshrl.u32 %v5095, 16
      %v5216 = vshll.u32 %v5095, 16
      %v5218 = vrot.slane %v5216, 1
      %v5219 = vor.u32 %v5214, %v5218
      %v5221 = vshll.u32 %v5175, 16
      %v5223 = vrot.slane %v5221, 1
      %v5224 = vsel %vm1185, %v5219, %v5223
      %v5226 = vshrl.u32 %v5096, 16
      %v5228 = vshll.u32 %v5096, 16
      %v5230 = vrot.slane %v5228, 1
      %v5231 = vor.u32 %v5226, %v5230
      %v5233 = vshll.u32 %v5176, 16
      %v5235 = vrot.slane %v5233, 1
      %v5236 = vsel %vm1185, %v5231, %v5235
      %v5238 = vshrl.u32 %v5097, 16
      %v5240 = vshll.u32 %v5097, 16
      %v5242 = vrot.slane %v5240, 1
      %v5243 = vor.u32 %v5238, %v5242
      %v5245 = vshll.u32 %v5177, 16
      %v5247 = vrot.slane %v5245, 1
      %v5248 = vsel %vm1185, %v5243, %v5247
      %v5250 = vshrl.u32 %v5098, 16
      %v5252 = vshll.u32 %v5098, 16
      %v5254 = vrot.slane %v5252, 1
      %v5255 = vor.u32 %v5250, %v5254
      %v5257 = vshll.u32 %v5178, 16
      %v5259 = vrot.slane %v5257, 1
      %v5260 = vsel %vm1185, %v5255, %v5259
      %v5262 = vshrl.u32 %v5099, 16
      %v5264 = vshll.u32 %v5099, 16
      %v5266 = vrot.slane %v5264, 1
      %v5267 = vor.u32 %v5262, %v5266
      %v5269 = vshll.u32 %v5179, 16
      %v5271 = vrot.slane %v5269, 1
      %v5272 = vsel %vm1185, %v5267, %v5271
      %v5274 = vshrl.u32 %v5100, 16
      %v5276 = vshll.u32 %v5100, 16
      %v5278 = vrot.slane %v5276, 1
      %v5279 = vor.u32 %v5274, %v5278
      %v5281 = vshll.u32 %v5180, 16
      %v5283 = vrot.slane %v5281, 1
      %v5284 = vsel %vm1185, %v5279, %v5283
      %v5286 = vshrl.u32 %v5101, 16
      %v5288 = vshll.u32 %v5101, 16
      %v5290 = vrot.slane %v5288, 1
      %v5291 = vor.u32 %v5286, %v5290
      %v5293 = vshll.u32 %v5181, 16
      %v5295 = vrot.slane %v5293, 1
      %v5296 = vsel %vm1185, %v5291, %v5295
      %v5298 = vshrl.u32 %v5102, 16
      %v5300 = vshll.u32 %v5102, 16
      %v5302 = vrot.slane %v5300, 1
      %v5303 = vor.u32 %v5298, %v5302
      %v5305 = vshll.u32 %v5182, 16
      %v5307 = vrot.slane %v5305, 1
      %v5308 = vsel %vm1185, %v5303, %v5307
      %v5310 = vshrl.u32 %v5103, 16
      %v5312 = vshll.u32 %v5103, 16
      %v5314 = vrot.slane %v5312, 1
      %v5315 = vor.u32 %v5310, %v5314
      %v5317 = vshll.u32 %v5183, 16
      %v5319 = vrot.slane %v5317, 1
      %v5320 = vsel %vm1185, %v5315, %v5319
      %v5322 = vshrl.u32 %v5104, 16
      %v5324 = vshll.u32 %v5104, 16
      %v5326 = vrot.slane %v5324, 1
      %v5327 = vor.u32 %v5322, %v5326
      %v5329 = vshll.u32 %v5184, 16
      %v5331 = vrot.slane %v5329, 1
      %v5332 = vsel %vm1185, %v5327, %v5331
      %v5334 = vshrl.u32 %v5105, 16
      %v5336 = vshll.u32 %v5105, 16
      %v5338 = vrot.slane %v5336, 1
      %v5339 = vor.u32 %v5334, %v5338
      %v5341 = vshll.u32 %v5185, 16
      %v5343 = vrot.slane %v5341, 1
      %v5344 = vsel %vm1185, %v5339, %v5343
      %v5346 = vshrl.u32 %v5106, 16
      %v5348 = vshll.u32 %v5106, 16
      %v5350 = vrot.slane %v5348, 1
      %v5351 = vor.u32 %v5346, %v5350
      %v5353 = vshll.u32 %v5186, 16
      %v5355 = vrot.slane %v5353, 1
      %v5356 = vsel %vm1185, %v5351, %v5355
      %v5358 = vshrl.u32 %v5107, 16
      %v5360 = vshll.u32 %v5107, 16
      %v5362 = vrot.slane %v5360, 1
      %v5363 = vor.u32 %v5358, %v5362
      %v5365 = vshll.u32 %v5187, 16
      %v5367 = vrot.slane %v5365, 1
      %v5368 = vsel %vm1185, %v5363, %v5367
      %v5370 = vshrl.u32 %v5108, 16
      %v5372 = vshll.u32 %v5108, 16
      %v5374 = vrot.slane %v5372, 1
      %v5375 = vor.u32 %v5370, %v5374
      %v5377 = vshll.u32 %v5188, 16
      %v5379 = vrot.slane %v5377, 1
      %v5380 = vsel %vm1185, %v5375, %v5379
      %5381 = vrot.lane.b32.xlu0 %v5200, 28
      %v5382 = vpop.permute.xlu0 %5381
      %5383 = vrot.lane.b32.xlu0 %v5212, 28
      %v5384 = vpop.permute.xlu0 %5383
      %5385 = vrot.lane.b32.xlu0 %v5224, 28
      %v5386 = vpop.permute.xlu0 %5385
      %5387 = vrot.lane.b32.xlu0 %v5236, 28
      %v5388 = vpop.permute.xlu0 %5387
      %5389 = vrot.lane.b32.xlu0 %v5248, 28
      %v5390 = vpop.permute.xlu0 %5389
      %5391 = vrot.lane.b32.xlu0 %v5260, 28
      %v5392 = vpop.permute.xlu0 %5391
      %5393 = vrot.lane.b32.xlu0 %v5272, 28
      %v5394 = vpop.permute.xlu0 %5393
      %5395 = vrot.lane.b32.xlu0 %v5284, 28
      %v5396 = vpop.permute.xlu0 %5395
      %5397 = vrot.lane.b32.xlu0 %v5296, 28
      %v5398 = vpop.permute.xlu0 %5397
      %5399 = vrot.lane.b32.xlu0 %v5308, 28
      %v5400 = vpop.permute.xlu0 %5399
      %5401 = vrot.lane.b32.xlu0 %v5320, 28
      %v5402 = vpop.permute.xlu0 %5401
      %5403 = vrot.lane.b32.xlu0 %v5332, 28
      %v5404 = vpop.permute.xlu0 %5403
      %5405 = vrot.lane.b32.xlu0 %v5344, 28
      %v5406 = vpop.permute.xlu0 %5405
      %5407 = vrot.lane.b32.xlu0 %v5356, 28
      %v5408 = vpop.permute.xlu0 %5407
      %5409 = vrot.lane.b32.xlu0 %v5368, 28
      %v5410 = vpop.permute.xlu0 %5409
      %5411 = vrot.lane.b32.xlu0 %v5380, 28
      %v5412 = vpop.permute.xlu0 %5411
      %v5429 = vunpack.c.l.b16 %v4021
      %v5430 = vunpack.c.l.b16 %v4022
      %v5431 = vunpack.c.l.b16 %v4023
      %v5432 = vunpack.c.l.b16 %v4024
      %v5433 = vunpack.c.l.b16 %v4025
      %v5434 = vunpack.c.l.b16 %v4026
      %v5435 = vunpack.c.l.b16 %v4027
      %v5436 = vunpack.c.l.b16 %v4028
      %v5437 = vunpack.c.l.b16 %v4029
      %v5438 = vunpack.c.l.b16 %v4030
      %v5439 = vunpack.c.l.b16 %v4031
      %v5440 = vunpack.c.l.b16 %v4032
      %v5441 = vunpack.c.l.b16 %v4033
      %v5442 = vunpack.c.l.b16 %v4034
      %v5443 = vunpack.c.l.b16 %v4035
      %v5444 = vunpack.c.l.b16 %v4036
      %v5445 = vpack.c.b16 %v5062, %v5429
      %v5446 = vpack.c.b16 %v5064, %v5430
      %v5447 = vpack.c.b16 %v5066, %v5431
      %v5448 = vpack.c.b16 %v5068, %v5432
      %v5449 = vpack.c.b16 %v5070, %v5433
      %v5450 = vpack.c.b16 %v5072, %v5434
      %v5451 = vpack.c.b16 %v5074, %v5435
      %v5452 = vpack.c.b16 %v5076, %v5436
      %v5453 = vpack.c.b16 %v5078, %v5437
      %v5454 = vpack.c.b16 %v5080, %v5438
      %v5455 = vpack.c.b16 %v5082, %v5439
      %v5456 = vpack.c.b16 %v5084, %v5440
      %v5457 = vpack.c.b16 %v5086, %v5441
      %v5458 = vpack.c.b16 %v5088, %v5442
      %v5459 = vpack.c.b16 %v5090, %v5443
      %v5460 = vpack.c.b16 %v5092, %v5444
      %v5461 = vrot.slane %v5445, 1
      %v5462 = vrot.slane %v5173, 1
      %v5463 = vsel %vm1458, %v5461, %v5462
      %v5464 = vrot.slane %v5446, 1
      %v5465 = vrot.slane %v5174, 1
      %v5466 = vsel %vm1458, %v5464, %v5465
      %v5467 = vrot.slane %v5447, 1
      %v5468 = vrot.slane %v5175, 1
      %v5469 = vsel %vm1458, %v5467, %v5468
      %v5470 = vrot.slane %v5448, 1
      %v5471 = vrot.slane %v5176, 1
      %v5472 = vsel %vm1458, %v5470, %v5471
      %v5473 = vrot.slane %v5449, 1
      %v5474 = vrot.slane %v5177, 1
      %v5475 = vsel %vm1458, %v5473, %v5474
      %v5476 = vrot.slane %v5450, 1
      %v5477 = vrot.slane %v5178, 1
      %v5478 = vsel %vm1458, %v5476, %v5477
      %v5479 = vrot.slane %v5451, 1
      %v5480 = vrot.slane %v5179, 1
      %v5481 = vsel %vm1458, %v5479, %v5480
      %v5482 = vrot.slane %v5452, 1
      %v5483 = vrot.slane %v5180, 1
      %v5484 = vsel %vm1458, %v5482, %v5483
      %v5485 = vrot.slane %v5453, 1
      %v5486 = vrot.slane %v5181, 1
      %v5487 = vsel %vm1458, %v5485, %v5486
      %v5488 = vrot.slane %v5454, 1
      %v5489 = vrot.slane %v5182, 1
      %v5490 = vsel %vm1458, %v5488, %v5489
      %v5491 = vrot.slane %v5455, 1
      %v5492 = vrot.slane %v5183, 1
      %v5493 = vsel %vm1458, %v5491, %v5492
      %v5494 = vrot.slane %v5456, 1
      %v5495 = vrot.slane %v5184, 1
      %v5496 = vsel %vm1458, %v5494, %v5495
      %v5497 = vrot.slane %v5457, 1
      %v5498 = vrot.slane %v5185, 1
      %v5499 = vsel %vm1458, %v5497, %v5498
      %v5500 = vrot.slane %v5458, 1
      %v5501 = vrot.slane %v5186, 1
      %v5502 = vsel %vm1458, %v5500, %v5501
      %v5503 = vrot.slane %v5459, 1
      %v5504 = vrot.slane %v5187, 1
      %v5505 = vsel %vm1458, %v5503, %v5504
      %v5506 = vrot.slane %v5460, 1
      %v5507 = vrot.slane %v5188, 1
      %v5508 = vsel %vm1458, %v5506, %v5507
      %5509 = vrot.lane.b32.xlu0 %v5463, 32
      %v5510 = vpop.permute.xlu0 %5509
      %5511 = vrot.lane.b32.xlu0 %v5466, 32
      %v5512 = vpop.permute.xlu0 %5511
      %5513 = vrot.lane.b32.xlu0 %v5469, 32
      %v5514 = vpop.permute.xlu0 %5513
      %5515 = vrot.lane.b32.xlu0 %v5472, 32
      %v5516 = vpop.permute.xlu0 %5515
      %5517 = vrot.lane.b32.xlu0 %v5475, 32
      %v5518 = vpop.permute.xlu0 %5517
      %5519 = vrot.lane.b32.xlu0 %v5478, 32
      %v5520 = vpop.permute.xlu0 %5519
      %5521 = vrot.lane.b32.xlu0 %v5481, 32
      %v5522 = vpop.permute.xlu0 %5521
      %5523 = vrot.lane.b32.xlu0 %v5484, 32
      %v5524 = vpop.permute.xlu0 %5523
      %5525 = vrot.lane.b32.xlu0 %v5487, 32
      %v5526 = vpop.permute.xlu0 %5525
      %5527 = vrot.lane.b32.xlu0 %v5490, 32
      %v5528 = vpop.permute.xlu0 %5527
      %5529 = vrot.lane.b32.xlu0 %v5493, 32
      %v5530 = vpop.permute.xlu0 %5529
      %5531 = vrot.lane.b32.xlu0 %v5496, 32
      %v5532 = vpop.permute.xlu0 %5531
      %5533 = vrot.lane.b32.xlu0 %v5499, 32
      %v5534 = vpop.permute.xlu0 %5533
      %5535 = vrot.lane.b32.xlu0 %v5502, 32
      %v5536 = vpop.permute.xlu0 %5535
      %5537 = vrot.lane.b32.xlu0 %v5505, 32
      %v5538 = vpop.permute.xlu0 %5537
      %5539 = vrot.lane.b32.xlu0 %v5508, 32
      %v5540 = vpop.permute.xlu0 %5539
      %v5542 = vsel %vm2563, %v4101, %v4358
      %v5544 = vsel %vm2563, %v4102, %v4360
      %v5546 = vsel %vm2563, %v4103, %v4362
      %v5548 = vsel %vm2563, %v4104, %v4364
      %v5550 = vsel %vm2563, %v4105, %v4366
      %v5552 = vsel %vm2563, %v4106, %v4368
      %v5554 = vsel %vm2563, %v4107, %v4370
      %v5556 = vsel %vm2563, %v4108, %v4372
      %v5558 = vsel %vm2563, %v4109, %v4374
      %v5560 = vsel %vm2563, %v4110, %v4376
      %v5562 = vsel %vm2563, %v4111, %v4378
      %v5564 = vsel %vm2563, %v4112, %v4380
      %v5566 = vsel %vm2563, %v4113, %v4382
      %v5568 = vsel %vm2563, %v4114, %v4384
      %v5570 = vsel %vm2563, %v4115, %v4386
      %v5572 = vsel %vm2563, %v4116, %v4388
      %v5574 = vsel %vm2596, %v5542, %v4486
      %v5576 = vsel %vm2596, %v5544, %v4488
      %v5578 = vsel %vm2596, %v5546, %v4490
      %v5580 = vsel %vm2596, %v5548, %v4492
      %v5582 = vsel %vm2596, %v5550, %v4494
      %v5584 = vsel %vm2596, %v5552, %v4496
      %v5586 = vsel %vm2596, %v5554, %v4498
      %v5588 = vsel %vm2596, %v5556, %v4500
      %v5590 = vsel %vm2596, %v5558, %v4502
      %v5592 = vsel %vm2596, %v5560, %v4504
      %v5594 = vsel %vm2596, %v5562, %v4506
      %v5596 = vsel %vm2596, %v5564, %v4508
      %v5598 = vsel %vm2596, %v5566, %v4510
      %v5600 = vsel %vm2596, %v5568, %v4512
      %v5602 = vsel %vm2596, %v5570, %v4514
      %v5604 = vsel %vm2596, %v5572, %v4516
      %v5606 = vsel %vm2629, %v5574, %v4598
      %v5608 = vsel %vm2629, %v5576, %v4600
      %v5610 = vsel %vm2629, %v5578, %v4602
      %v5612 = vsel %vm2629, %v5580, %v4604
      %v5614 = vsel %vm2629, %v5582, %v4606
      %v5616 = vsel %vm2629, %v5584, %v4608
      %v5618 = vsel %vm2629, %v5586, %v4610
      %v5620 = vsel %vm2629, %v5588, %v4612
      %v5622 = vsel %vm2629, %v5590, %v4614
      %v5624 = vsel %vm2629, %v5592, %v4616
      %v5626 = vsel %vm2629, %v5594, %v4618
      %v5628 = vsel %vm2629, %v5596, %v4620
      %v5630 = vsel %vm2629, %v5598, %v4622
      %v5632 = vsel %vm2629, %v5600, %v4624
      %v5634 = vsel %vm2629, %v5602, %v4626
      %v5636 = vsel %vm2629, %v5604, %v4628
      %v5638 = vsel %vm2662, %v5606, %v4870
      %v5640 = vsel %vm2662, %v5608, %v4872
      %v5642 = vsel %vm2662, %v5610, %v4874
      %v5644 = vsel %vm2662, %v5612, %v4876
      %v5646 = vsel %vm2662, %v5614, %v4878
      %v5648 = vsel %vm2662, %v5616, %v4880
      %v5650 = vsel %vm2662, %v5618, %v4882
      %v5652 = vsel %vm2662, %v5620, %v4884
      %v5654 = vsel %vm2662, %v5622, %v4886
      %v5656 = vsel %vm2662, %v5624, %v4888
      %v5658 = vsel %vm2662, %v5626, %v4890
      %v5660 = vsel %vm2662, %v5628, %v4892
      %v5662 = vsel %vm2662, %v5630, %v4894
      %v5664 = vsel %vm2662, %v5632, %v4896
      %v5666 = vsel %vm2662, %v5634, %v4898
      %v5668 = vsel %vm2662, %v5636, %v4900
      %v5670 = vsel %vm2695, %v5638, %v4998
      %v5672 = vsel %vm2695, %v5640, %v5000
      %v5674 = vsel %vm2695, %v5642, %v5002
      %v5676 = vsel %vm2695, %v5644, %v5004
      %v5678 = vsel %vm2695, %v5646, %v5006
      %v5680 = vsel %vm2695, %v5648, %v5008
      %v5682 = vsel %vm2695, %v5650, %v5010
      %v5684 = vsel %vm2695, %v5652, %v5012
      %v5686 = vsel %vm2695, %v5654, %v5014
      %v5688 = vsel %vm2695, %v5656, %v5016
      %v5690 = vsel %vm2695, %v5658, %v5018
      %v5692 = vsel %vm2695, %v5660, %v5020
      %v5694 = vsel %vm2695, %v5662, %v5022
      %v5696 = vsel %vm2695, %v5664, %v5024
      %v5698 = vsel %vm2695, %v5666, %v5026
      %v5700 = vsel %vm2695, %v5668, %v5028
      %v5702 = vsel %vm2728, %v5670, %v5110
      %v5704 = vsel %vm2728, %v5672, %v5112
      %v5706 = vsel %vm2728, %v5674, %v5114
      %v5708 = vsel %vm2728, %v5676, %v5116
      %v5710 = vsel %vm2728, %v5678, %v5118
      %v5712 = vsel %vm2728, %v5680, %v5120
      %v5714 = vsel %vm2728, %v5682, %v5122
      %v5716 = vsel %vm2728, %v5684, %v5124
      %v5718 = vsel %vm2728, %v5686, %v5126
      %v5720 = vsel %vm2728, %v5688, %v5128
      %v5722 = vsel %vm2728, %v5690, %v5130
      %v5724 = vsel %vm2728, %v5692, %v5132
      %v5726 = vsel %vm2728, %v5694, %v5134
      %v5728 = vsel %vm2728, %v5696, %v5136
      %v5730 = vsel %vm2728, %v5698, %v5138
      %v5732 = vsel %vm2728, %v5700, %v5140
      %v5734 = vsel %vm2761, %v5702, %v5382
      %v5736 = vsel %vm2761, %v5704, %v5384
      %v5738 = vsel %vm2761, %v5706, %v5386
      %v5740 = vsel %vm2761, %v5708, %v5388
      %v5742 = vsel %vm2761, %v5710, %v5390
      %v5744 = vsel %vm2761, %v5712, %v5392
      %v5746 = vsel %vm2761, %v5714, %v5394
      %v5748 = vsel %vm2761, %v5716, %v5396
      %v5750 = vsel %vm2761, %v5718, %v5398
      %v5752 = vsel %vm2761, %v5720, %v5400
      %v5754 = vsel %vm2761, %v5722, %v5402
      %v5756 = vsel %vm2761, %v5724, %v5404
      %v5758 = vsel %vm2761, %v5726, %v5406
      %v5760 = vsel %vm2761, %v5728, %v5408
      %v5762 = vsel %vm2761, %v5730, %v5410
      %v5764 = vsel %vm2761, %v5732, %v5412
      %v5766 = vsel %vm2794, %v5734, %v5510
      %v5768 = vsel %vm2794, %v5736, %v5512
      %v5770 = vsel %vm2794, %v5738, %v5514
      %v5772 = vsel %vm2794, %v5740, %v5516
      %v5774 = vsel %vm2794, %v5742, %v5518
      %v5776 = vsel %vm2794, %v5744, %v5520
      %v5778 = vsel %vm2794, %v5746, %v5522
      %v5780 = vsel %vm2794, %v5748, %v5524
      %v5782 = vsel %vm2794, %v5750, %v5526
      %v5784 = vsel %vm2794, %v5752, %v5528
      %v5786 = vsel %vm2794, %v5754, %v5530
      %v5788 = vsel %vm2794, %v5756, %v5532
      %v5790 = vsel %vm2794, %v5758, %v5534
      %v5792 = vsel %vm2794, %v5760, %v5536
      %v5794 = vsel %vm2794, %v5762, %v5538
      %v5796 = vsel %vm2794, %v5764, %v5540
      %v5802 = vunpack.c.l.b16 %v3840
      %v5803 = vunpack.c.l.b16 %v3841
      %v5804 = vunpack.c.l.b16 %v3842
      %v5805 = vunpack.c.l.b16 %v3843
      %v5806 = vunpack.c.l.b16 %v3844
      %v5807 = vpack.c.b16 %v5803, %v5802
      %v5808 = vpack.c.b16 %v5805, %v5804
      %v5809 = vpack.c.b16 %v5806, %v5806
      %v5812 = vsel %vm2842, %v5766, 0
      %v5814 = vsel %vm2842, %v5768, 0
      %v5816 = vsel %vm2842, %v5770, 0
      %v5818 = vsel %vm2842, %v5772, 0
      %v5820 = vsel %vm2842, %v5774, 0
      %v5822 = vsel %vm2842, %v5776, 0
      %v5824 = vsel %vm2842, %v5778, 0
      %v5826 = vsel %vm2842, %v5780, 0
      %v5828 = vsel %vm2842, %v5782, 0
      %v5830 = vsel %vm2842, %v5784, 0
      %v5832 = vsel %vm2842, %v5786, 0
      %v5834 = vsel %vm2842, %v5788, 0
      %v5836 = vsel %vm2842, %v5790, 0
      %v5838 = vsel %vm2842, %v5792, 0
      %v5840 = vsel %vm2842, %v5794, 0
      %v5842 = vsel %vm2842, %v5796, 0
      %v5845 = vsel %vm2875, %v5809, 0
      %5847 = vmatprep.subr.bf16.mxu0 0
      %5848 = vmatpush1.bf16.msra.mxu0 %v5807
      %5849 = vmatprep.subr.bf16.mxu0 0
      %5850 = vmatpush1.bf16.msra.mxu0 %v5808
      %5851 = vmatprep.subr.bf16.mxu0 0
      %5852 = vmatpush1.bf16.msra.mxu0 %v5845
      %5853 = vmatprep.subr.bf16.mxu0 0
      %5854 = vmatpush1.bf16.msra.mxu0 0
      %5855 = vmatprep.subr.bf16.mxu0 0
      %5856 = vmatpush1.bf16.msra.mxu0 0
      %5857 = vmatprep.subr.bf16.mxu0 0
      %5858 = vmatpush1.bf16.msra.mxu0 0
      %5859 = vmatprep.subr.bf16.mxu0 0
      %5860 = vmatpush1.bf16.msra.mxu0 0
      %5861 = vmatprep.subr.bf16.mxu0 0
      %5862 = vmatpush1.bf16.msra.mxu0 0
      %5863 = vmatprep.subr.bf16.mxu0 0
      %5864 = vmatpush1.bf16.msra.mxu0 0
      %5865 = vmatprep.subr.bf16.mxu0 0
      %5866 = vmatpush1.bf16.msra.mxu0 0
      %5867 = vmatprep.subr.bf16.mxu0 0
      %5868 = vmatpush1.bf16.msra.mxu0 0
      %5869 = vmatprep.subr.bf16.mxu0 0
      %5870 = vmatpush1.bf16.msra.mxu0 0
      %5871 = vmatprep.subr.bf16.mxu0 0
      %5872 = vmatpush1.bf16.msra.mxu0 0
      %5873 = vmatprep.subr.bf16.mxu0 0
      %5874 = vmatpush1.bf16.msra.mxu0 0
      %5875 = vmatprep.subr.bf16.mxu0 0
      %5876 = vmatpush1.bf16.msra.mxu0 0
      %5877 = vmatprep.subr.bf16.mxu0 0
      %5878 = vmatpush1.bf16.msra.mxu0 0
      %5879 = vmatprep.mubr.bf16.mxu0 0
      %5880 = vmatmul.mubr.bf16.gmra.mrb[0].mxu0 %v5812
      %v5881 = vpop.f32.mrb[0].mxu0
      %v5882 = vadd.f32 0.0, %v5881
      %v5883 = vpop.f32.mrb[0].mxu0
      %v5884 = vpop.f32.mrb[0].mxu0
      %v5885 = vadd.f32 0.0, %v5884
      %v5886 = vpop.f32.mrb[0].mxu0
      %5887 = vmatprep.mubr.bf16.mxu0 0
      %5888 = vmatmul.mubr.bf16.gmra.mrb[0].mxu0 %v5814
      %v5889 = vpop.f32.mrb[0].mxu0
      %v5890 = vadd.f32 0.0, %v5889
      %v5891 = vpop.f32.mrb[0].mxu0
      %v5892 = vpop.f32.mrb[0].mxu0
      %v5893 = vadd.f32 0.0, %v5892
      %v5894 = vpop.f32.mrb[0].mxu0
      %5895 = vmatprep.mubr.bf16.mxu0 0
      %5896 = vmatmul.mubr.bf16.gmra.mrb[0].mxu0 %v5816
      %v5897 = vpop.f32.mrb[0].mxu0
      %v5898 = vadd.f32 0.0, %v5897
      %v5899 = vpop.f32.mrb[0].mxu0
      %v5900 = vpop.f32.mrb[0].mxu0
      %v5901 = vadd.f32 0.0, %v5900
      %v5902 = vpop.f32.mrb[0].mxu0
      %5903 = vmatprep.mubr.bf16.mxu0 0
      %5904 = vmatmul.mubr.bf16.gmra.mrb[0].mxu0 %v5818
      %v5905 = vpop.f32.mrb[0].mxu0
      %v5906 = vadd.f32 0.0, %v5905
      %v5907 = vpop.f32.mrb[0].mxu0
      %v5908 = vpop.f32.mrb[0].mxu0
      %v5909 = vadd.f32 0.0, %v5908
      %v5910 = vpop.f32.mrb[0].mxu0
      %5911 = vmatprep.mubr.bf16.mxu0 0
      %5912 = vmatmul.mubr.bf16.gmra.mrb[0].mxu0 %v5820
      %v5913 = vpop.f32.mrb[0].mxu0
      %v5914 = vadd.f32 0.0, %v5913
      %v5915 = vpop.f32.mrb[0].mxu0
      %v5916 = vpop.f32.mrb[0].mxu0
      %v5917 = vadd.f32 0.0, %v5916
      %v5918 = vpop.f32.mrb[0].mxu0
      %5919 = vmatprep.mubr.bf16.mxu0 0
      %5920 = vmatmul.mubr.bf16.gmra.mrb[0].mxu0 %v5822
      %v5921 = vpop.f32.mrb[0].mxu0
      %v5922 = vadd.f32 0.0, %v5921
      %v5923 = vpop.f32.mrb[0].mxu0
      %v5924 = vpop.f32.mrb[0].mxu0
      %v5925 = vadd.f32 0.0, %v5924
      %v5926 = vpop.f32.mrb[0].mxu0
      %5927 = vmatprep.mubr.bf16.mxu0 0
      %5928 = vmatmul.mubr.bf16.gmra.mrb[0].mxu0 %v5824
      %v5929 = vpop.f32.mrb[0].mxu0
      %v5930 = vadd.f32 0.0, %v5929
      %v5931 = vpop.f32.mrb[0].mxu0
      %v5932 = vpop.f32.mrb[0].mxu0
      %v5933 = vadd.f32 0.0, %v5932
      %v5934 = vpop.f32.mrb[0].mxu0
      %5935 = vmatprep.mubr.bf16.mxu0 0
      %5936 = vmatmul.mubr.bf16.gmra.mrb[0].mxu0 %v5826
      %v5937 = vpop.f32.mrb[0].mxu0
      %v5938 = vadd.f32 0.0, %v5937
      %v5939 = vpop.f32.mrb[0].mxu0
      %v5940 = vpop.f32.mrb[0].mxu0
      %v5941 = vadd.f32 0.0, %v5940
      %v5942 = vpop.f32.mrb[0].mxu0
      %5943 = vmatprep.mubr.bf16.mxu0 0
      %5944 = vmatmul.mubr.bf16.gmra.mrb[0].mxu0 %v5828
      %v5945 = vpop.f32.mrb[0].mxu0
      %v5946 = vadd.f32 0.0, %v5945
      %v5947 = vpop.f32.mrb[0].mxu0
      %v5948 = vpop.f32.mrb[0].mxu0
      %v5949 = vadd.f32 0.0, %v5948
      %v5950 = vpop.f32.mrb[0].mxu0
      %5951 = vmatprep.mubr.bf16.mxu0 0
      %5952 = vmatmul.mubr.bf16.gmra.mrb[0].mxu0 %v5830
      %v5953 = vpop.f32.mrb[0].mxu0
      %v5954 = vadd.f32 0.0, %v5953
      %v5955 = vpop.f32.mrb[0].mxu0
      %v5956 = vpop.f32.mrb[0].mxu0
      %v5957 = vadd.f32 0.0, %v5956
      %v5958 = vpop.f32.mrb[0].mxu0
      %5959 = vmatprep.mubr.bf16.mxu0 0
      %5960 = vmatmul.mubr.bf16.gmra.mrb[0].mxu0 %v5832
      %v5961 = vpop.f32.mrb[0].mxu0
      %v5962 = vadd.f32 0.0, %v5961
      %v5963 = vpop.f32.mrb[0].mxu0
      %v5964 = vpop.f32.mrb[0].mxu0
      %v5965 = vadd.f32 0.0, %v5964
      %v5966 = vpop.f32.mrb[0].mxu0
      %5967 = vmatprep.mubr.bf16.mxu0 0
      %5968 = vmatmul.mubr.bf16.gmra.mrb[0].mxu0 %v5834
      %v5969 = vpop.f32.mrb[0].mxu0
      %v5970 = vadd.f32 0.0, %v5969
      %v5971 = vpop.f32.mrb[0].mxu0
      %v5972 = vpop.f32.mrb[0].mxu0
      %v5973 = vadd.f32 0.0, %v5972
      %v5974 = vpop.f32.mrb[0].mxu0
      %5975 = vmatprep.mubr.bf16.mxu0 0
      %5976 = vmatmul.mubr.bf16.gmra.mrb[0].mxu0 %v5836
      %v5977 = vpop.f32.mrb[0].mxu0
      %v5978 = vadd.f32 0.0, %v5977
      %v5979 = vpop.f32.mrb[0].mxu0
      %v5980 = vpop.f32.mrb[0].mxu0
      %v5981 = vadd.f32 0.0, %v5980
      %v5982 = vpop.f32.mrb[0].mxu0
      %5983 = vmatprep.mubr.bf16.mxu0 0
      %5984 = vmatmul.mubr.bf16.gmra.mrb[0].mxu0 %v5838
      %v5985 = vpop.f32.mrb[0].mxu0
      %v5986 = vadd.f32 0.0, %v5985
      %v5987 = vpop.f32.mrb[0].mxu0
      %v5988 = vpop.f32.mrb[0].mxu0
      %v5989 = vadd.f32 0.0, %v5988
      %v5990 = vpop.f32.mrb[0].mxu0
      %5991 = vmatprep.mubr.bf16.mxu0 0
      %5992 = vmatmul.mubr.bf16.gmra.mrb[0].mxu0 %v5840
      %v5993 = vpop.f32.mrb[0].mxu0
      %v5994 = vadd.f32 0.0, %v5993
      %v5995 = vpop.f32.mrb[0].mxu0
      %v5996 = vpop.f32.mrb[0].mxu0
      %v5997 = vadd.f32 0.0, %v5996
      %v5998 = vpop.f32.mrb[0].mxu0
      %5999 = vmatprep.mubr.bf16.mxu0 0
      %6000 = vmatmul.mubr.bf16.gmra.mrb[0].mxu0 %v5842
      %v6001 = vpop.f32.mrb[0].mxu0
      %v6002 = vadd.f32 0.0, %v6001
      %v6003 = vpop.f32.mrb[0].mxu0
      %v6004 = vpop.f32.mrb[0].mxu0
      %v6005 = vadd.f32 0.0, %v6004
      %v6006 = vpop.f32.mrb[0].mxu0
      %6007 = vdwg.mxu0
      %v6008 = vsel %vm2563, %v5882, 0.0
      %v6009 = vsel %vm2563, %v5885, 0.0
      %v6010 = vadd.f32 %v6008, %v6009
      %v6011 = vsel %vm2563, %v5890, 0.0
      %v6012 = vadd.f32 %v6010, %v6011
      %v6013 = vsel %vm2563, %v5893, 0.0
      %v6014 = vadd.f32 %v6012, %v6013
      %v6015 = vsel %vm2563, %v5898, 0.0
      %v6016 = vadd.f32 %v6014, %v6015
      %v6017 = vsel %vm2563, %v5901, 0.0
      %v6018 = vadd.f32 %v6016, %v6017
      %v6019 = vsel %vm2563, %v5906, 0.0
      %v6020 = vadd.f32 %v6018, %v6019
      %v6021 = vsel %vm2563, %v5909, 0.0
      %v6022 = vadd.f32 %v6020, %v6021
      %v6023 = vsel %vm2563, %v5914, 0.0
      %v6024 = vadd.f32 %v6022, %v6023
      %v6025 = vsel %vm2563, %v5917, 0.0
      %v6026 = vadd.f32 %v6024, %v6025
      %v6027 = vsel %vm2563, %v5922, 0.0
      %v6028 = vadd.f32 %v6026, %v6027
      %v6029 = vsel %vm2563, %v5925, 0.0
      %v6030 = vadd.f32 %v6028, %v6029
      %v6031 = vsel %vm2563, %v5930, 0.0
      %v6032 = vadd.f32 %v6030, %v6031
      %v6033 = vsel %vm2563, %v5933, 0.0
      %v6034 = vadd.f32 %v6032, %v6033
      %v6035 = vsel %vm2563, %v5938, 0.0
      %v6036 = vadd.f32 %v6034, %v6035
      %v6037 = vsel %vm2563, %v5941, 0.0
      %v6038 = vadd.f32 %v6036, %v6037
      %v6039 = vsel %vm2563, %v5946, 0.0
      %v6040 = vadd.f32 %v6038, %v6039
      %v6041 = vsel %vm2563, %v5949, 0.0
      %v6042 = vadd.f32 %v6040, %v6041
      %v6043 = vsel %vm2563, %v5954, 0.0
      %v6044 = vadd.f32 %v6042, %v6043
      %v6045 = vsel %vm2563, %v5957, 0.0
      %v6046 = vadd.f32 %v6044, %v6045
      %v6047 = vsel %vm2563, %v5962, 0.0
      %v6048 = vadd.f32 %v6046, %v6047
      %v6049 = vsel %vm2563, %v5965, 0.0
      %v6050 = vadd.f32 %v6048, %v6049
      %v6051 = vsel %vm2563, %v5970, 0.0
      %v6052 = vadd.f32 %v6050, %v6051
      %v6053 = vsel %vm2563, %v5973, 0.0
      %v6054 = vadd.f32 %v6052, %v6053
      %v6055 = vsel %vm2563, %v5978, 0.0
      %v6056 = vadd.f32 %v6054, %v6055
      %v6057 = vsel %vm2563, %v5981, 0.0
      %v6058 = vadd.f32 %v6056, %v6057
      %v6059 = vsel %vm2563, %v5986, 0.0
      %v6060 = vadd.f32 %v6058, %v6059
      %v6061 = vsel %vm2563, %v5989, 0.0
      %v6062 = vadd.f32 %v6060, %v6061
      %v6063 = vsel %vm2563, %v5994, 0.0
      %v6064 = vadd.f32 %v6062, %v6063
      %v6065 = vsel %vm2563, %v5997, 0.0
      %v6066 = vadd.f32 %v6064, %v6065
      %v6067 = vsel %vm2563, %v6002, 0.0
      %v6068 = vadd.f32 %v6066, %v6067
      %v6069 = vsel %vm2563, %v6005, 0.0
      %v6070 = vadd.f32 %v6068, %v6069
      %v6071 = vrot.slane %v6070, 4
      %v6072 = vadd.f32 %v6070, %v6071
      %v6073 = vrot.slane %v6072, 2
      %v6074 = vadd.f32 %v6072, %v6073
      %v6075 = vrot.slane %v6074, 1
      %v6076 = vadd.f32 %v6074, %v6075
      %v6077 = vmul.f32 %v5882, %v5882
      %v6078 = vmul.f32 %v5885, %v5885
      %v6079 = vmul.f32 %v5890, %v5890
      %v6080 = vmul.f32 %v5893, %v5893
      %v6081 = vmul.f32 %v5898, %v5898
      %v6082 = vmul.f32 %v5901, %v5901
      %v6083 = vmul.f32 %v5906, %v5906
      %v6084 = vmul.f32 %v5909, %v5909
      %v6085 = vmul.f32 %v5914, %v5914
      %v6086 = vmul.f32 %v5917, %v5917
      %v6087 = vmul.f32 %v5922, %v5922
      %v6088 = vmul.f32 %v5925, %v5925
      %v6089 = vmul.f32 %v5930, %v5930
      %v6090 = vmul.f32 %v5933, %v5933
      %v6091 = vmul.f32 %v5938, %v5938
      %v6092 = vmul.f32 %v5941, %v5941
      %v6093 = vmul.f32 %v5946, %v5946
      %v6094 = vmul.f32 %v5949, %v5949
      %v6095 = vmul.f32 %v5954, %v5954
      %v6096 = vmul.f32 %v5957, %v5957
      %v6097 = vmul.f32 %v5962, %v5962
      %v6098 = vmul.f32 %v5965, %v5965
      %v6099 = vmul.f32 %v5970, %v5970
      %v6100 = vmul.f32 %v5973, %v5973
      %v6101 = vmul.f32 %v5978, %v5978
      %v6102 = vmul.f32 %v5981, %v5981
      %v6103 = vmul.f32 %v5986, %v5986
      %v6104 = vmul.f32 %v5989, %v5989
      %v6105 = vmul.f32 %v5994, %v5994
      %v6106 = vmul.f32 %v5997, %v5997
      %v6107 = vmul.f32 %v6002, %v6002
      %v6108 = vmul.f32 %v6005, %v6005
      %v6109 = vsel %vm2563, %v6077, 0.0
      %v6110 = vsel %vm2563, %v6078, 0.0
      %v6111 = vadd.f32 %v6109, %v6110
      %v6112 = vsel %vm2563, %v6079, 0.0
      %v6113 = vadd.f32 %v6111, %v6112
      %v6114 = vsel %vm2563, %v6080, 0.0
      %v6115 = vadd.f32 %v6113, %v6114
      %v6116 = vsel %vm2563, %v6081, 0.0
      %v6117 = vadd.f32 %v6115, %v6116
      %v6118 = vsel %vm2563, %v6082, 0.0
      %v6119 = vadd.f32 %v6117, %v6118
      %v6120 = vsel %vm2563, %v6083, 0.0
      %v6121 = vadd.f32 %v6119, %v6120
      %v6122 = vsel %vm2563, %v6084, 0.0
      %v6123 = vadd.f32 %v6121, %v6122
      %v6124 = vsel %vm2563, %v6085, 0.0
      %v6125 = vadd.f32 %v6123, %v6124
      %v6126 = vsel %vm2563, %v6086, 0.0
      %v6127 = vadd.f32 %v6125, %v6126
      %v6128 = vsel %vm2563, %v6087, 0.0
      %v6129 = vadd.f32 %v6127, %v6128
      %v6130 = vsel %vm2563, %v6088, 0.0
      %v6131 = vadd.f32 %v6129, %v6130
      %v6132 = vsel %vm2563, %v6089, 0.0
      %v6133 = vadd.f32 %v6131, %v6132
      %v6134 = vsel %vm2563, %v6090, 0.0
      %v6135 = vadd.f32 %v6133, %v6134
      %v6136 = vsel %vm2563, %v6091, 0.0
      %v6137 = vadd.f32 %v6135, %v6136
      %v6138 = vsel %vm2563, %v6092, 0.0
      %v6139 = vadd.f32 %v6137, %v6138
      %v6140 = vsel %vm2563, %v6093, 0.0
      %v6141 = vadd.f32 %v6139, %v6140
      %v6142 = vsel %vm2563, %v6094, 0.0
      %v6143 = vadd.f32 %v6141, %v6142
      %v6144 = vsel %vm2563, %v6095, 0.0
      %v6145 = vadd.f32 %v6143, %v6144
      %v6146 = vsel %vm2563, %v6096, 0.0
      %v6147 = vadd.f32 %v6145, %v6146
      %v6148 = vsel %vm2563, %v6097, 0.0
      %v6149 = vadd.f32 %v6147, %v6148
      %v6150 = vsel %vm2563, %v6098, 0.0
      %v6151 = vadd.f32 %v6149, %v6150
      %v6152 = vsel %vm2563, %v6099, 0.0
      %v6153 = vadd.f32 %v6151, %v6152
      %v6154 = vsel %vm2563, %v6100, 0.0
      %v6155 = vadd.f32 %v6153, %v6154
      %v6156 = vsel %vm2563, %v6101, 0.0
      %v6157 = vadd.f32 %v6155, %v6156
      %v6158 = vsel %vm2563, %v6102, 0.0
      %v6159 = vadd.f32 %v6157, %v6158
      %v6160 = vsel %vm2563, %v6103, 0.0
      %v6161 = vadd.f32 %v6159, %v6160
      %v6162 = vsel %vm2563, %v6104, 0.0
      %v6163 = vadd.f32 %v6161, %v6162
      %v6164 = vsel %vm2563, %v6105, 0.0
      %v6165 = vadd.f32 %v6163, %v6164
      %v6166 = vsel %vm2563, %v6106, 0.0
      %v6167 = vadd.f32 %v6165, %v6166
      %v6168 = vsel %vm2563, %v6107, 0.0
      %v6169 = vadd.f32 %v6167, %v6168
      %v6170 = vsel %vm2563, %v6108, 0.0
      %v6171 = vadd.f32 %v6169, %v6170
      %v6172 = vrot.slane %v6171, 4
      %v6173 = vadd.f32 %v6171, %v6172
      %v6174 = vrot.slane %v6173, 2
      %v6175 = vadd.f32 %v6173, %v6174
      %v6176 = vrot.slane %v6175, 1
      %v6177 = vadd.f32 %v6175, %v6176
      %v6178 = vmul.f32 %v6076, 0.00390625
      %v6179 = vmul.f32 %v6177, 0.00390625
      %v6180 = vmul.f32 %v6178, %v6178
      %v6181 = vsub.f32 %v6179, %v6180
      %v6182 = vmax.f32 %v6181, 0.0
      %v6183 = vsub.f32 %v5882, %v6178
      %v6184 = vsub.f32 %v5885, %v6178
      %v6185 = vsub.f32 %v5890, %v6178
      %v6186 = vsub.f32 %v5893, %v6178
      %v6187 = vsub.f32 %v5898, %v6178
      %v6188 = vsub.f32 %v5901, %v6178
      %v6189 = vsub.f32 %v5906, %v6178
      %v6190 = vsub.f32 %v5909, %v6178
      %v6191 = vsub.f32 %v5914, %v6178
      %v6192 = vsub.f32 %v5917, %v6178
      %v6193 = vsub.f32 %v5922, %v6178
      %v6194 = vsub.f32 %v5925, %v6178
      %v6195 = vsub.f32 %v5930, %v6178
      %v6196 = vsub.f32 %v5933, %v6178
      %v6197 = vsub.f32 %v5938, %v6178
      %v6198 = vsub.f32 %v5941, %v6178
      %v6199 = vsub.f32 %v5946, %v6178
      %v6200 = vsub.f32 %v5949, %v6178
      %v6201 = vsub.f32 %v5954, %v6178
      %v6202 = vsub.f32 %v5957, %v6178
      %v6203 = vsub.f32 %v5962, %v6178
      %v6204 = vsub.f32 %v5965, %v6178
      %v6205 = vsub.f32 %v5970, %v6178
      %v6206 = vsub.f32 %v5973, %v6178
      %v6207 = vsub.f32 %v5978, %v6178
      %v6208 = vsub.f32 %v5981, %v6178
      %v6209 = vsub.f32 %v5986, %v6178
      %v6210 = vsub.f32 %v5989, %v6178
      %v6211 = vsub.f32 %v5994, %v6178
      %v6212 = vsub.f32 %v5997, %v6178
      %v6213 = vsub.f32 %v6002, %v6178
      %v6214 = vsub.f32 %v6005, %v6178
      %v6215 = vadd.f32 %v6182, 1e-05
      %v6216 = vrsqrt.pop %v6215
      %v6217 = vmul.f32 %v6183, %v6216
      %v6218 = vmul.f32 %v6184, %v6216
      %v6219 = vmul.f32 %v6185, %v6216
      %v6220 = vmul.f32 %v6186, %v6216
      %v6221 = vmul.f32 %v6187, %v6216
      %v6222 = vmul.f32 %v6188, %v6216
      %v6223 = vmul.f32 %v6189, %v6216
      %v6224 = vmul.f32 %v6190, %v6216
      %v6225 = vmul.f32 %v6191, %v6216
      %v6226 = vmul.f32 %v6192, %v6216
      %v6227 = vmul.f32 %v6193, %v6216
      %v6228 = vmul.f32 %v6194, %v6216
      %v6229 = vmul.f32 %v6195, %v6216
      %v6230 = vmul.f32 %v6196, %v6216
      %v6231 = vmul.f32 %v6197, %v6216
      %v6232 = vmul.f32 %v6198, %v6216
      %v6233 = vmul.f32 %v6199, %v6216
      %v6234 = vmul.f32 %v6200, %v6216
      %v6235 = vmul.f32 %v6201, %v6216
      %v6236 = vmul.f32 %v6202, %v6216
      %v6237 = vmul.f32 %v6203, %v6216
      %v6238 = vmul.f32 %v6204, %v6216
      %v6239 = vmul.f32 %v6205, %v6216
      %v6240 = vmul.f32 %v6206, %v6216
      %v6241 = vmul.f32 %v6207, %v6216
      %v6242 = vmul.f32 %v6208, %v6216
      %v6243 = vmul.f32 %v6209, %v6216
      %v6244 = vmul.f32 %v6210, %v6216
      %v6245 = vmul.f32 %v6211, %v6216
      %v6246 = vmul.f32 %v6212, %v6216
      %v6247 = vmul.f32 %v6213, %v6216
      %v6248 = vmul.f32 %v6214, %v6216
      %v6249 = vadd.f32 %v6217, %v294
      %v6250 = vadd.f32 %v6218, %v295
      %v6251 = vadd.f32 %v6219, %v296
      %v6252 = vadd.f32 %v6220, %v297
      %v6253 = vadd.f32 %v6221, %v298
      %v6254 = vadd.f32 %v6222, %v299
      %v6255 = vadd.f32 %v6223, %v300
      %v6256 = vadd.f32 %v6224, %v301
      %v6257 = vadd.f32 %v6225, %v302
      %v6258 = vadd.f32 %v6226, %v303
      %v6259 = vadd.f32 %v6227, %v304
      %v6260 = vadd.f32 %v6228, %v305
      %v6261 = vadd.f32 %v6229, %v306
      %v6262 = vadd.f32 %v6230, %v307
      %v6263 = vadd.f32 %v6231, %v308
      %v6264 = vadd.f32 %v6232, %v309
      %v6265 = vadd.f32 %v6233, %v310
      %v6266 = vadd.f32 %v6234, %v311
      %v6267 = vadd.f32 %v6235, %v312
      %v6268 = vadd.f32 %v6236, %v313
      %v6269 = vadd.f32 %v6237, %v314
      %v6270 = vadd.f32 %v6238, %v315
      %v6271 = vadd.f32 %v6239, %v316
      %v6272 = vadd.f32 %v6240, %v317
      %v6273 = vadd.f32 %v6241, %v318
      %v6274 = vadd.f32 %v6242, %v319
      %v6275 = vadd.f32 %v6243, %v320
      %v6276 = vadd.f32 %v6244, %v321
      %v6277 = vadd.f32 %v6245, %v322
      %v6278 = vadd.f32 %v6246, %v323
      %v6279 = vadd.f32 %v6247, %v324
      %v6280 = vadd.f32 %v6248, %v325
      %v6281 = vmax.f32 %v6249, 0.0
      %v6282 = vmax.f32 %v6250, 0.0
      %v6283 = vmax.f32 %v6251, 0.0
      %v6284 = vmax.f32 %v6252, 0.0
      %v6285 = vmax.f32 %v6253, 0.0
      %v6286 = vmax.f32 %v6254, 0.0
      %v6287 = vmax.f32 %v6255, 0.0
      %v6288 = vmax.f32 %v6256, 0.0
      %v6289 = vmax.f32 %v6257, 0.0
      %v6290 = vmax.f32 %v6258, 0.0
      %v6291 = vmax.f32 %v6259, 0.0
      %v6292 = vmax.f32 %v6260, 0.0
      %v6293 = vmax.f32 %v6261, 0.0
      %v6294 = vmax.f32 %v6262, 0.0
      %v6295 = vmax.f32 %v6263, 0.0
      %v6296 = vmax.f32 %v6264, 0.0
      %v6297 = vmax.f32 %v6265, 0.0
      %v6298 = vmax.f32 %v6266, 0.0
      %v6299 = vmax.f32 %v6267, 0.0
      %v6300 = vmax.f32 %v6268, 0.0
      %v6301 = vmax.f32 %v6269, 0.0
      %v6302 = vmax.f32 %v6270, 0.0
      %v6303 = vmax.f32 %v6271, 0.0
      %v6304 = vmax.f32 %v6272, 0.0
      %v6305 = vmax.f32 %v6273, 0.0
      %v6306 = vmax.f32 %v6274, 0.0
      %v6307 = vmax.f32 %v6275, 0.0
      %v6308 = vmax.f32 %v6276, 0.0
      %v6309 = vmax.f32 %v6277, 0.0
      %v6310 = vmax.f32 %v6278, 0.0
      %v6311 = vmax.f32 %v6279, 0.0
      %v6312 = vmax.f32 %v6280, 0.0
      %6313 = vst.msk [vmem:[%s170] sm:$0xff] %vm2563, %v6281
      %6314 = vst.msk [vmem:[%s170 + $0x8] sm:$0xff] %vm2563, %v6282
      %6315 = vst.msk [vmem:[%s170 + $0x10] sm:$0xff] %vm2563, %v6283
      %6316 = vst.msk [vmem:[%s170 + $0x18] sm:$0xff] %vm2563, %v6284
      %6317 = vst.msk [vmem:[%s170 + $0x20] sm:$0xff] %vm2563, %v6285
      %6318 = vst.msk [vmem:[%s170 + $0x28] sm:$0xff] %vm2563, %v6286
      %6319 = vst.msk [vmem:[%s170 + $0x30] sm:$0xff] %vm2563, %v6287
      %6320 = vst.msk [vmem:[%s170 + $0x38] sm:$0xff] %vm2563, %v6288
      %6321 = vst.msk [vmem:[%s170 + $0x40] sm:$0xff] %vm2563, %v6289
      %6322 = vst.msk [vmem:[%s170 + $0x48] sm:$0xff] %vm2563, %v6290
      %6323 = vst.msk [vmem:[%s170 + $0x50] sm:$0xff] %vm2563, %v6291
      %6324 = vst.msk [vmem:[%s170 + $0x58] sm:$0xff] %vm2563, %v6292
      %6325 = vst.msk [vmem:[%s170 + $0x60] sm:$0xff] %vm2563, %v6293
      %6326 = vst.msk [vmem:[%s170 + $0x68] sm:$0xff] %vm2563, %v6294
      %6327 = vst.msk [vmem:[%s170 + $0x70] sm:$0xff] %vm2563, %v6295
      %6328 = vst.msk [vmem:[%s170 + $0x78] sm:$0xff] %vm2563, %v6296
      %6329 = vst.msk [vmem:[%s170 + $0x80] sm:$0xff] %vm2563, %v6297
      %6330 = vst.msk [vmem:[%s170 + $0x88] sm:$0xff] %vm2563, %v6298
      %6331 = vst.msk [vmem:[%s170 + $0x90] sm:$0xff] %vm2563, %v6299
      %6332 = vst.msk [vmem:[%s170 + $0x98] sm:$0xff] %vm2563, %v6300
      %6333 = vst.msk [vmem:[%s170 + $0xa0] sm:$0xff] %vm2563, %v6301
      %6334 = vst.msk [vmem:[%s170 + $0xa8] sm:$0xff] %vm2563, %v6302
      %6335 = vst.msk [vmem:[%s170 + $0xb0] sm:$0xff] %vm2563, %v6303
      %6336 = vst.msk [vmem:[%s170 + $0xb8] sm:$0xff] %vm2563, %v6304
      %6337 = vst.msk [vmem:[%s170 + $0xc0] sm:$0xff] %vm2563, %v6305
      %6338 = vst.msk [vmem:[%s170 + $0xc8] sm:$0xff] %vm2563, %v6306
      %6339 = vst.msk [vmem:[%s170 + $0xd0] sm:$0xff] %vm2563, %v6307
      %6340 = vst.msk [vmem:[%s170 + $0xd8] sm:$0xff] %vm2563, %v6308
      %6341 = vst.msk [vmem:[%s170 + $0xe0] sm:$0xff] %vm2563, %v6309
      %6342 = vst.msk [vmem:[%s170 + $0xe8] sm:$0xff] %vm2563, %v6310
      %6343 = vst.msk [vmem:[%s170 + $0xf0] sm:$0xff] %vm2563, %v6311
      %6344 = vst.msk [vmem:[%s170 + $0xf8] sm:$0xff] %vm2563, %v6312
      %p6345 = scmp.lt.s32.totalorder %s14, 1
      %s6346 = scalar_select %p6345, %s14, 1
      %s6347 = smul.addr %s6346, 32
      %s6348 = smul.addr %s6347, 8
      %s6349 = scalar_lea.vmem %s3, %s6348
      // Predicated region
      $region33: #{tpu_custom_call.1} parent=31 // pred_check
        %p6350 = pneg %p100
      $region34: #{tpu_custom_call.1} parent=31 // pred_check_branch
        %6352 = sbr.rel (%p6350) target = $region36
      $region35: #{tpu_custom_call.1} parent=31 // pred_region
        _
      $region36: #{tpu_custom_call.1} parent=31 // pred_fallthru
        _
    $region32: #{tpu_custom_call.1} parent=5 // pred_fallthru
      _
    %p6353 = scmp.le.s32.totalorder 2, %s9
    // Predicated region
    $region37: #{tpu_custom_call.1} parent=5 // pred_check
      %p6354 = pneg %p6353
    $region38: #{tpu_custom_call.1} parent=5 // pred_check_branch
      %6356 = sbr.rel (%p6354) target = $region40
    $region39: #{tpu_custom_call.1} parent=5 // pred_region
      %s6357 = ssub.s32 %s9, 2
      // Predicated region
      $region41: #{tpu_custom_call.1} parent=39 // pred_check
        %p6358 = pneg %p106
      $region42: #{tpu_custom_call.1} parent=39 // pred_check_branch
        %6360 = sbr.rel (%p6358) target = $region44
      $region43: #{tpu_custom_call.1} parent=39 // pred_region
        %p6361 = scmp.lt.s32.totalorder %s15, 1
        %s6362 = scalar_select %p6361, %s15, 1
        %s6363 = smul.addr %s6362, 32
        %s6364 = smul.addr %s6363, 8
        %s6365 = scalar_lea.vmem %s3, %s6364
      $region44: #{tpu_custom_call.1} parent=39 // pred_fallthru
        _
    $region40: #{tpu_custom_call.1} parent=5 // pred_fallthru
      _
  $region6: #{tpu_custom_call.1} parent=0 // loop_footer
    %s13 = sadd.s32 1, %s9
  $region7: #{tpu_custom_call.1} parent=0 // loop_footer_branch
    %8 = sbr.rel target = $region3
  $region8: #{tpu_custom_call.1} parent=0 // loop_exit
    _

</llo_original>
